<compile_context>
chip_gen: v6e
topology: v6e:2x2x1
jax: 0.10.0
libtpu: 0.0.40
codegen_flags: <defaults>
</compile_context>

<pallas_src>
import jax
import jax.numpy as jnp
from jax.experimental import pallas as pl
from jax.experimental.pallas import tpu as pltpu

# ---------------- model hyper-parameters (small, synthetic) -----------------
VOCAB = 100
MAX_POS = 16
D_MODEL = 32
N_HEADS = 4
D_HEAD = D_MODEL // N_HEADS
D_FF = 64
N_LAYERS = 2
LN_EPS = 1e-12
MXU_DTYPE = jnp.bfloat16      # MXU-native operand dtype (f32 accumulation)


def _ln(x, g, b):
    mu = jnp.mean(x, axis=-1, keepdims=True)
    var = jnp.mean((x - mu) ** 2, axis=-1, keepdims=True)
    return (x - mu) * jax.lax.rsqrt(var + LN_EPS) * g + b


# ------------------------------ Pallas kernel --------------------------------
def encoder_kernel(x_ref, bias_ref, wqkv_ref, wo_ref, w1_ref, w2_ref,
                   bslab_ref, out_ref):
    N, S, D = x_ref.shape
    h = x_ref[...].reshape(N * S, D)                          # f32 hidden (in vregs)
    # Hoist the mask-bias broadcast once for all layers & heads.
    bias_full = jnp.broadcast_to(bias_ref[...], (N, S, S))    # (N, S, S) f32

    for layer in range(N_LAYERS):          # static unroll -- no grid steps
        slab = bslab_ref[layer]            # (8, 128) packed per-layer bias slab
        bqkv   = slab[0:1, :3 * D]         # fused qkv bias (scale folded in bq)
        b1     = slab[1:2, :D_FF]
        bo     = slab[2:3, :D]
        g_sa, be_sa = slab[3:4, :D], slab[4:5, :D]
        b2     = slab[5:6, :D]
        g_out, be_out = slab[6:7, :D], slab[7:8, :D]

        # ---- multi-head self-attention -------------------------------------
        # Q/K/V in one fused bf16 matmul (Wq/bq already carry 1/sqrt(d_head)).
        qkv = jnp.dot(h.astype(MXU_DTYPE), wqkv_ref[layer],
                      preferred_element_type=jnp.float32) + bqkv      # (N*S, 3D)
        qkv3 = qkv.reshape(N, S, 3 * D).astype(MXU_DTYPE)             # bf16 operands

        ctx_heads = []
        # TODO(synk): heads stay a static 4-iteration loop over lane slices; a
        # head-merged (N*H, S, Dh) layout needs a (N,S,H,Dh)->(N,H,S,Dh)
        # transpose at Dh=8 whose Mosaic lowering is not reliable, so one
        # batched einsum per head is the lowering-safe choice.
        for hd in range(N_HEADS):
            lo = hd * D_HEAD
            q_h = qkv3[:, :, lo:lo + D_HEAD]                          # (N, S, Dh)
            k_h = qkv3[:, :, D + lo:D + lo + D_HEAD]
            v_h = qkv3[:, :, 2 * D + lo:2 * D + lo + D_HEAD]
            s = jnp.einsum("bqd,bkd->bqk", q_h, k_h,
                           preferred_element_type=jnp.float32) + bias_full
            s = s - jnp.max(s, axis=-1, keepdims=True)
            p = jnp.exp(s)
            p = p * pl.reciprocal(jnp.sum(p, axis=-1, keepdims=True), approx=True)
            ctx_heads.append(jnp.einsum("bqk,bkd->bqd", p.astype(MXU_DTYPE), v_h,
                                        preferred_element_type=jnp.float32))
        ctx = jnp.concatenate(ctx_heads, axis=-1).reshape(N * S, D)

        attn = jnp.dot(ctx.astype(MXU_DTYPE), wo_ref[layer],
                       preferred_element_type=jnp.float32) + bo
        h1 = _ln(h + attn, g_sa, be_sa)                    # residual + sa_layer_norm

        # ---- feed-forward ----------------------------------------------------
        f = jnp.dot(h1.astype(MXU_DTYPE), w1_ref[layer],
                    preferred_element_type=jnp.float32) + b1
        # TODO(synk): HF DistilBERT uses exact erf-GELU; tanh approximation here.
        f = jax.nn.gelu(f, approximate=True)
        f = jnp.dot(f.astype(MXU_DTYPE), w2_ref[layer],
                    preferred_element_type=jnp.float32) + b2
        h = _ln(h1 + f, g_out, be_out)                     # residual + output_layer_norm

    # Unmasked mean pool over sequence -- matches the reference
    # `last_hidden_state.mean(dim=1)` exactly.
    out_ref[...] = jnp.mean(h.reshape(N, S, D), axis=1)


# ------------------------------- wrapper --------------------------------------
def encoder_forward(params, ids, mask):
    """DistilBERT-style encoder + mean pooling as one pallas_call (no grid)."""
    N, S = ids.shape
    # Embedding gather + embedding layernorm: plain-JAX glue (data-dependent
    # gather has no clean BlockSpec equivalent).
    x = params["word_emb"][ids] + params["pos_emb"][None, :S, :]
    x = _ln(x, params["emb_g"], params["emb_b"]).astype(jnp.float32)

    # Additive key mask, computed once per forward.
    bias = jnp.where(mask > 0, 0.0, -1e9).astype(jnp.float32)[:, None, :]   # (N,1,S)

    vmem = pl.BlockSpec(memory_space=pltpu.MemorySpace.VMEM)   # whole-array VMEM
    out = pl.pallas_call(
        encoder_kernel,
        out_shape=jax.ShapeDtypeStruct((N, D_MODEL), jnp.float32),
        in_specs=[vmem] * 7,
        out_specs=vmem,
    )(x, bias,
      params["wqkv"], params["wo"], params["w1"], params["w2"], params["bslab"])
    return out


# -------------------------- parameter construction ----------------------------
def init_params(key):
    def nrm(k, shape):
        return (0.02 * jax.random.normal(k, shape)).astype(jnp.float32)

    keys = jax.random.split(key, 2 + N_LAYERS)
    D, F = D_MODEL, D_FF
    scale = 1.0 / (D_HEAD ** 0.5)

    wqkv, wo, w1, w2, bslab = [], [], [], [], []
    for li in range(N_LAYERS):
        lk = jax.random.split(keys[2 + li], 6)
        wq = nrm(lk[0], (D, D)) * scale                # attention scale folded in
        wk = nrm(lk[1], (D, D))
        wv = nrm(lk[2], (D, D))
        bq = jnp.zeros((D,), jnp.float32) * scale
        bk = jnp.zeros((D,), jnp.float32)
        bv = jnp.zeros((D,), jnp.float32)
        wqkv.append(jnp.concatenate([wq, wk, wv], axis=1))            # (D, 3D)
        wo.append(nrm(lk[3], (D, D)))
        w1.append(nrm(lk[4], (D, F)))
        w2.append(nrm(lk[5], (F, D)))

        # One packed (8, 128) bias/LN slab per layer (single DMA operand).
        slab = jnp.zeros((8, 128), jnp.float32)
        slab = slab.at[0, :3 * D].set(jnp.concatenate([bq, bk, bv]))  # bqkv
        slab = slab.at[1, :F].set(jnp.zeros((F,), jnp.float32))       # b1
        slab = slab.at[2, :D].set(jnp.zeros((D,), jnp.float32))       # bo
        slab = slab.at[3, :D].set(jnp.ones((D,), jnp.float32))        # sa_ln gamma
        slab = slab.at[4, :D].set(jnp.zeros((D,), jnp.float32))       # sa_ln beta
        slab = slab.at[5, :D].set(jnp.zeros((D,), jnp.float32))       # b2
        slab = slab.at[6, :D].set(jnp.ones((D,), jnp.float32))        # out_ln gamma
        slab = slab.at[7, :D].set(jnp.zeros((D,), jnp.float32))       # out_ln beta
        bslab.append(slab)

    return {
        "word_emb": nrm(keys[0], (VOCAB, D)),
        "pos_emb": nrm(keys[1], (MAX_POS, D)),
        "emb_g": jnp.ones((D,), jnp.float32),
        "emb_b": jnp.zeros((D,), jnp.float32),
        # Weights stored bf16 in HBM: MXU-native operands, half the DMA bytes.
        "wqkv": jnp.stack(wqkv).astype(MXU_DTYPE),     # (L, D, 3D)
        "wo": jnp.stack(wo).astype(MXU_DTYPE),         # (L, D, D)
        "w1": jnp.stack(w1).astype(MXU_DTYPE),         # (L, D, F)
        "w2": jnp.stack(w2).astype(MXU_DTYPE),         # (L, F, D)
        "bslab": jnp.stack(bslab),                     # (L, 8, 128) f32
    }


# ------------------------------ BiEncoder model --------------------------------
def bi_encoder_forward(params, q_ids, q_mask, p_ids, p_mask):
    # Query + passage batched into ONE fused encoder call (split afterwards).
    ids = jnp.concatenate([q_ids, p_ids], axis=0)
    mask = jnp.concatenate([q_mask, p_mask], axis=0)
    emb = encoder_forward(params, ids, mask)           # (2B, D)
    B = q_ids.shape[0]
    return emb[:B], emb[B:]


# ----------------------------------- main ---------------------------------------
if __name__ == "__main__":
    B, S = 2, 8
    root = jax.random.PRNGKey(0)
    k_param, k_q, k_p = jax.random.split(root, 3)

    params = init_params(k_param)

    q_ids = jax.random.randint(k_q, (B, S), 0, VOCAB, dtype=jnp.int32)
    p_ids = jax.random.randint(k_p, (B, S), 0, VOCAB, dtype=jnp.int32)
    q_mask = jnp.ones((B, S), jnp.int32).at[1, 6:].set(0)
    p_mask = jnp.ones((B, S), jnp.int32).at[0, 5:].set(0)

    fwd = jax.jit(bi_encoder_forward)
    q_emb, p_emb = fwd(params, q_ids, q_mask, p_ids, p_mask)
    jax.block_until_ready((q_emb, p_emb))

    assert q_emb.shape == (B, D_MODEL) and p_emb.shape == (B, D_MODEL)
    assert bool(jnp.all(jnp.isfinite(q_emb))) and bool(jnp.all(jnp.isfinite(p_emb)))
    print("KERNEL_OK")
</pallas_src>

<mosaic_0001>
module attributes {stable_mosaic.version = 11 : i64} {
  func.func @encoder_kernel(%arg0: memref<4x8x32xf32, #tpu.memory_space<vmem>>, %arg1: memref<4x1x8xf32, #tpu.memory_space<vmem>>, %arg2: memref<2x32x96xbf16, #tpu.memory_space<vmem>>, %arg3: memref<2x32x32xbf16, #tpu.memory_space<vmem>>, %arg4: memref<2x32x64xbf16, #tpu.memory_space<vmem>>, %arg5: memref<2x64x32xbf16, #tpu.memory_space<vmem>>, %arg6: memref<2x8x128xf32, #tpu.memory_space<vmem>>, %arg7: memref<4x32xf32, #tpu.memory_space<vmem>>) attributes {dimension_semantics = [], scalar_prefetch = 0 : i64, scratch_operands = 0 : i64, tpu.core_type = #tpu.core_type<tc>} {
    %c0 = arith.constant 0 : index
    %c0_0 = arith.constant 0 : index
    %c0_1 = arith.constant 0 : index
    %0 = vector.load %arg0[%c0, %c0_0, %c0_1] : memref<4x8x32xf32, #tpu.memory_space<vmem>>, vector<4x8x32xf32>
    %1 = vector.shape_cast %0 : vector<4x8x32xf32> to vector<32x32xf32>
    %c0_2 = arith.constant 0 : index
    %c0_3 = arith.constant 0 : index
    %c0_4 = arith.constant 0 : index
    %2 = vector.load %arg1[%c0_2, %c0_3, %c0_4] : memref<4x1x8xf32, #tpu.memory_space<vmem>>, vector<4x1x8xf32>
    %3 = vector.shape_cast %2 : vector<4x1x8xf32> to vector<4x1x8xf32>
    %4 = vector.broadcast %3 : vector<4x1x8xf32> to vector<4x8x8xf32>
    %c0_5 = arith.constant 0 : index
    %c0_6 = arith.constant 0 : index
    %c0_7 = arith.constant 0 : index
    %5 = vector.load %arg6[%c0_5, %c0_6, %c0_7] : memref<2x8x128xf32, #tpu.memory_space<vmem>>, vector<1x8x128xf32>
    %6 = vector.shape_cast %5 : vector<1x8x128xf32> to vector<8x128xf32>
    %7 = vector.extract_strided_slice %6 {offsets = [0, 0], sizes = [1, 96], strides = [1, 1]} : vector<8x128xf32> to vector<1x96xf32>
    %8 = vector.extract_strided_slice %6 {offsets = [1, 0], sizes = [1, 64], strides = [1, 1]} : vector<8x128xf32> to vector<1x64xf32>
    %9 = vector.extract_strided_slice %6 {offsets = [2, 0], sizes = [1, 32], strides = [1, 1]} : vector<8x128xf32> to vector<1x32xf32>
    %10 = vector.extract_strided_slice %6 {offsets = [3, 0], sizes = [1, 32], strides = [1, 1]} : vector<8x128xf32> to vector<1x32xf32>
    %11 = vector.extract_strided_slice %6 {offsets = [4, 0], sizes = [1, 32], strides = [1, 1]} : vector<8x128xf32> to vector<1x32xf32>
    %12 = vector.extract_strided_slice %6 {offsets = [5, 0], sizes = [1, 32], strides = [1, 1]} : vector<8x128xf32> to vector<1x32xf32>
    %13 = vector.extract_strided_slice %6 {offsets = [6, 0], sizes = [1, 32], strides = [1, 1]} : vector<8x128xf32> to vector<1x32xf32>
    %14 = vector.extract_strided_slice %6 {offsets = [7, 0], sizes = [1, 32], strides = [1, 1]} : vector<8x128xf32> to vector<1x32xf32>
    %15 = arith.truncf %1 : vector<32x32xf32> to vector<32x32xbf16>
    %c0_8 = arith.constant 0 : index
    %c0_9 = arith.constant 0 : index
    %c0_10 = arith.constant 0 : index
    %16 = vector.load %arg2[%c0_8, %c0_9, %c0_10] : memref<2x32x96xbf16, #tpu.memory_space<vmem>>, vector<1x32x96xbf16>
    %17 = vector.shape_cast %16 : vector<1x32x96xbf16> to vector<32x96xbf16>
    %cst = arith.constant dense<0.000000e+00> : vector<32x96xf32>
    %18 = tpu.matmul %15, %17, %cst {dimension_numbers = #tpu.dot_dimension_numbers<[1], [0], [0], [1], [0, 0, 1, 1], [], []>} : vector<32x32xbf16>, vector<32x96xbf16>, vector<32x96xf32> -> vector<32x96xf32>
    %19 = vector.broadcast %7 : vector<1x96xf32> to vector<32x96xf32>
    %20 = arith.addf %18, %19 : vector<32x96xf32>
    %21 = vector.shape_cast %20 : vector<32x96xf32> to vector<4x8x96xf32>
    %22 = arith.truncf %21 : vector<4x8x96xf32> to vector<4x8x96xbf16>
    %23 = vector.extract_strided_slice %22 {offsets = [0, 0, 0], sizes = [4, 8, 8], strides = [1, 1, 1]} : vector<4x8x96xbf16> to vector<4x8x8xbf16>
    %24 = vector.extract_strided_slice %22 {offsets = [0, 0, 32], sizes = [4, 8, 8], strides = [1, 1, 1]} : vector<4x8x96xbf16> to vector<4x8x8xbf16>
    %25 = vector.extract_strided_slice %22 {offsets = [0, 0, 64], sizes = [4, 8, 8], strides = [1, 1, 1]} : vector<4x8x96xbf16> to vector<4x8x8xbf16>
    "tpu.trace_start"() <{level = 10 : i32, message = "bqd,bkd->bqk"}> : () -> ()
    %cst_11 = arith.constant dense<0.000000e+00> : vector<4x8x8xf32>
    %26 = tpu.matmul %23, %24, %cst_11 {dimension_numbers = #tpu.dot_dimension_numbers<[2], [2], [1], [1], [0, 0, 0, 1, 1, 1], [0], [0]>} : vector<4x8x8xbf16>, vector<4x8x8xbf16>, vector<4x8x8xf32> -> vector<4x8x8xf32>
    "tpu.trace_stop"() : () -> ()
    %27 = arith.addf %26, %4 : vector<4x8x8xf32>
    %cst_12 = arith.constant dense<0xFF800000> : vector<4x8xf32>
    %28 = vector.multi_reduction <maximumf>, %27, %cst_12 [2] : vector<4x8x8xf32> to vector<4x8xf32>
    %29 = vector.shape_cast %28 : vector<4x8xf32> to vector<4x8x1xf32>
    %30 = vector.broadcast %29 : vector<4x8x1xf32> to vector<4x8x8xf32>
    %31 = arith.subf %27, %30 : vector<4x8x8xf32>
    %32 = math.exp %31 : vector<4x8x8xf32>
    %cst_13 = arith.constant dense<0.000000e+00> : vector<4x8xf32>
    %33 = vector.multi_reduction <add>, %32, %cst_13 [2] : vector<4x8x8xf32> to vector<4x8xf32>
    %34 = vector.shape_cast %33 : vector<4x8xf32> to vector<4x8x1xf32>
    %35 = tpu.reciprocal %34 {approx = true} : vector<4x8x1xf32> -> vector<4x8x1xf32>
    %36 = vector.broadcast %35 : vector<4x8x1xf32> to vector<4x8x8xf32>
    %37 = arith.mulf %32, %36 : vector<4x8x8xf32>
    %38 = arith.truncf %37 : vector<4x8x8xf32> to vector<4x8x8xbf16>
    "tpu.trace_start"() <{level = 10 : i32, message = "bqk,bkd->bqd"}> : () -> ()
    %cst_14 = arith.constant dense<0.000000e+00> : vector<4x8x8xf32>
    %39 = tpu.matmul %38, %25, %cst_14 {dimension_numbers = #tpu.dot_dimension_numbers<[2], [1], [1], [2], [0, 0, 0, 1, 1, 2], [0], [0]>} : vector<4x8x8xbf16>, vector<4x8x8xbf16>, vector<4x8x8xf32> -> vector<4x8x8xf32>
    "tpu.trace_stop"() : () -> ()
    %40 = vector.extract_strided_slice %22 {offsets = [0, 0, 8], sizes = [4, 8, 8], strides = [1, 1, 1]} : vector<4x8x96xbf16> to vector<4x8x8xbf16>
    %41 = vector.extract_strided_slice %22 {offsets = [0, 0, 40], sizes = [4, 8, 8], strides = [1, 1, 1]} : vector<4x8x96xbf16> to vector<4x8x8xbf16>
    %42 = vector.extract_strided_slice %22 {offsets = [0, 0, 72], sizes = [4, 8, 8], strides = [1, 1, 1]} : vector<4x8x96xbf16> to vector<4x8x8xbf16>
    "tpu.trace_start"() <{level = 10 : i32, message = "bqd,bkd->bqk"}> : () -> ()
    %cst_15 = arith.constant dense<0.000000e+00> : vector<4x8x8xf32>
    %43 = tpu.matmul %40, %41, %cst_15 {dimension_numbers = #tpu.dot_dimension_numbers<[2], [2], [1], [1], [0, 0, 0, 1, 1, 1], [0], [0]>} : vector<4x8x8xbf16>, vector<4x8x8xbf16>, vector<4x8x8xf32> -> vector<4x8x8xf32>
    "tpu.trace_stop"() : () -> ()
    %44 = arith.addf %43, %4 : vector<4x8x8xf32>
    %cst_16 = arith.constant dense<0xFF800000> : vector<4x8xf32>
    %45 = vector.multi_reduction <maximumf>, %44, %cst_16 [2] : vector<4x8x8xf32> to vector<4x8xf32>
    %46 = vector.shape_cast %45 : vector<4x8xf32> to vector<4x8x1xf32>
    %47 = vector.broadcast %46 : vector<4x8x1xf32> to vector<4x8x8xf32>
    %48 = arith.subf %44, %47 : vector<4x8x8xf32>
    %49 = math.exp %48 : vector<4x8x8xf32>
    %cst_17 = arith.constant dense<0.000000e+00> : vector<4x8xf32>
    %50 = vector.multi_reduction <add>, %49, %cst_17 [2] : vector<4x8x8xf32> to vector<4x8xf32>
    %51 = vector.shape_cast %50 : vector<4x8xf32> to vector<4x8x1xf32>
    %52 = tpu.reciprocal %51 {approx = true} : vector<4x8x1xf32> -> vector<4x8x1xf32>
    %53 = vector.broadcast %52 : vector<4x8x1xf32> to vector<4x8x8xf32>
    %54 = arith.mulf %49, %53 : vector<4x8x8xf32>
    %55 = arith.truncf %54 : vector<4x8x8xf32> to vector<4x8x8xbf16>
    "tpu.trace_start"() <{level = 10 : i32, message = "bqk,bkd->bqd"}> : () -> ()
    %cst_18 = arith.constant dense<0.000000e+00> : vector<4x8x8xf32>
    %56 = tpu.matmul %55, %42, %cst_18 {dimension_numbers = #tpu.dot_dimension_numbers<[2], [1], [1], [2], [0, 0, 0, 1, 1, 2], [0], [0]>} : vector<4x8x8xbf16>, vector<4x8x8xbf16>, vector<4x8x8xf32> -> vector<4x8x8xf32>
    "tpu.trace_stop"() : () -> ()
    %57 = vector.extract_strided_slice %22 {offsets = [0, 0, 16], sizes = [4, 8, 8], strides = [1, 1, 1]} : vector<4x8x96xbf16> to vector<4x8x8xbf16>
    %58 = vector.extract_strided_slice %22 {offsets = [0, 0, 48], sizes = [4, 8, 8], strides = [1, 1, 1]} : vector<4x8x96xbf16> to vector<4x8x8xbf16>
    %59 = vector.extract_strided_slice %22 {offsets = [0, 0, 80], sizes = [4, 8, 8], strides = [1, 1, 1]} : vector<4x8x96xbf16> to vector<4x8x8xbf16>
    "tpu.trace_start"() <{level = 10 : i32, message = "bqd,bkd->bqk"}> : () -> ()
    %cst_19 = arith.constant dense<0.000000e+00> : vector<4x8x8xf32>
    %60 = tpu.matmul %57, %58, %cst_19 {dimension_numbers = #tpu.dot_dimension_numbers<[2], [2], [1], [1], [0, 0, 0, 1, 1, 1], [0], [0]>} : vector<4x8x8xbf16>, vector<4x8x8xbf16>, vector<4x8x8xf32> -> vector<4x8x8xf32>
    "tpu.trace_stop"() : () -> ()
    %61 = arith.addf %60, %4 : vector<4x8x8xf32>
    %cst_20 = arith.constant dense<0xFF800000> : vector<4x8xf32>
    %62 = vector.multi_reduction <maximumf>, %61, %cst_20 [2] : vector<4x8x8xf32> to vector<4x8xf32>
    %63 = vector.shape_cast %62 : vector<4x8xf32> to vector<4x8x1xf32>
    %64 = vector.broadcast %63 : vector<4x8x1xf32> to vector<4x8x8xf32>
    %65 = arith.subf %61, %64 : vector<4x8x8xf32>
    %66 = math.exp %65 : vector<4x8x8xf32>
    %cst_21 = arith.constant dense<0.000000e+00> : vector<4x8xf32>
    %67 = vector.multi_reduction <add>, %66, %cst_21 [2] : vector<4x8x8xf32> to vector<4x8xf32>
    %68 = vector.shape_cast %67 : vector<4x8xf32> to vector<4x8x1xf32>
    %69 = tpu.reciprocal %68 {approx = true} : vector<4x8x1xf32> -> vector<4x8x1xf32>
    %70 = vector.broadcast %69 : vector<4x8x1xf32> to vector<4x8x8xf32>
    %71 = arith.mulf %66, %70 : vector<4x8x8xf32>
    %72 = arith.truncf %71 : vector<4x8x8xf32> to vector<4x8x8xbf16>
    "tpu.trace_start"() <{level = 10 : i32, message = "bqk,bkd->bqd"}> : () -> ()
    %cst_22 = arith.constant dense<0.000000e+00> : vector<4x8x8xf32>
    %73 = tpu.matmul %72, %59, %cst_22 {dimension_numbers = #tpu.dot_dimension_numbers<[2], [1], [1], [2], [0, 0, 0, 1, 1, 2], [0], [0]>} : vector<4x8x8xbf16>, vector<4x8x8xbf16>, vector<4x8x8xf32> -> vector<4x8x8xf32>
    "tpu.trace_stop"() : () -> ()
    %74 = vector.extract_strided_slice %22 {offsets = [0, 0, 24], sizes = [4, 8, 8], strides = [1, 1, 1]} : vector<4x8x96xbf16> to vector<4x8x8xbf16>
    %75 = vector.extract_strided_slice %22 {offsets = [0, 0, 56], sizes = [4, 8, 8], strides = [1, 1, 1]} : vector<4x8x96xbf16> to vector<4x8x8xbf16>
    %76 = vector.extract_strided_slice %22 {offsets = [0, 0, 88], sizes = [4, 8, 8], strides = [1, 1, 1]} : vector<4x8x96xbf16> to vector<4x8x8xbf16>
    "tpu.trace_start"() <{level = 10 : i32, message = "bqd,bkd->bqk"}> : () -> ()
    %cst_23 = arith.constant dense<0.000000e+00> : vector<4x8x8xf32>
    %77 = tpu.matmul %74, %75, %cst_23 {dimension_numbers = #tpu.dot_dimension_numbers<[2], [2], [1], [1], [0, 0, 0, 1, 1, 1], [0], [0]>} : vector<4x8x8xbf16>, vector<4x8x8xbf16>, vector<4x8x8xf32> -> vector<4x8x8xf32>
    "tpu.trace_stop"() : () -> ()
    %78 = arith.addf %77, %4 : vector<4x8x8xf32>
    %cst_24 = arith.constant dense<0xFF800000> : vector<4x8xf32>
    %79 = vector.multi_reduction <maximumf>, %78, %cst_24 [2] : vector<4x8x8xf32> to vector<4x8xf32>
    %80 = vector.shape_cast %79 : vector<4x8xf32> to vector<4x8x1xf32>
    %81 = vector.broadcast %80 : vector<4x8x1xf32> to vector<4x8x8xf32>
    %82 = arith.subf %78, %81 : vector<4x8x8xf32>
    %83 = math.exp %82 : vector<4x8x8xf32>
    %cst_25 = arith.constant dense<0.000000e+00> : vector<4x8xf32>
    %84 = vector.multi_reduction <add>, %83, %cst_25 [2] : vector<4x8x8xf32> to vector<4x8xf32>
    %85 = vector.shape_cast %84 : vector<4x8xf32> to vector<4x8x1xf32>
    %86 = tpu.reciprocal %85 {approx = true} : vector<4x8x1xf32> -> vector<4x8x1xf32>
    %87 = vector.broadcast %86 : vector<4x8x1xf32> to vector<4x8x8xf32>
    %88 = arith.mulf %83, %87 : vector<4x8x8xf32>
    %89 = arith.truncf %88 : vector<4x8x8xf32> to vector<4x8x8xbf16>
    "tpu.trace_start"() <{level = 10 : i32, message = "bqk,bkd->bqd"}> : () -> ()
    %cst_26 = arith.constant dense<0.000000e+00> : vector<4x8x8xf32>
    %90 = tpu.matmul %89, %76, %cst_26 {dimension_numbers = #tpu.dot_dimension_numbers<[2], [1], [1], [2], [0, 0, 0, 1, 1, 2], [0], [0]>} : vector<4x8x8xbf16>, vector<4x8x8xbf16>, vector<4x8x8xf32> -> vector<4x8x8xf32>
    "tpu.trace_stop"() : () -> ()
    %91 = tpu.concatenate %39, %56, %73, %90 in 2 : vector<4x8x8xf32>, vector<4x8x8xf32>, vector<4x8x8xf32>, vector<4x8x8xf32> -> vector<4x8x32xf32>
    %92 = vector.shape_cast %91 : vector<4x8x32xf32> to vector<32x32xf32>
    %93 = arith.truncf %92 : vector<32x32xf32> to vector<32x32xbf16>
    %c0_27 = arith.constant 0 : index
    %c0_28 = arith.constant 0 : index
    %c0_29 = arith.constant 0 : index
    %94 = vector.load %arg3[%c0_27, %c0_28, %c0_29] : memref<2x32x32xbf16, #tpu.memory_space<vmem>>, vector<1x32x32xbf16>
    %95 = vector.shape_cast %94 : vector<1x32x32xbf16> to vector<32x32xbf16>
    %cst_30 = arith.constant dense<0.000000e+00> : vector<32x32xf32>
    %96 = tpu.matmul %93, %95, %cst_30 {dimension_numbers = #tpu.dot_dimension_numbers<[1], [0], [0], [1], [0, 0, 1, 1], [], []>} : vector<32x32xbf16>, vector<32x32xbf16>, vector<32x32xf32> -> vector<32x32xf32>
    %97 = vector.broadcast %9 : vector<1x32xf32> to vector<32x32xf32>
    %98 = arith.addf %96, %97 : vector<32x32xf32>
    %99 = arith.addf %1, %98 : vector<32x32xf32>
    %cst_31 = arith.constant dense<0.000000e+00> : vector<32xf32>
    %100 = vector.multi_reduction <add>, %99, %cst_31 [1] : vector<32x32xf32> to vector<32xf32>
    %101 = vector.shape_cast %100 : vector<32xf32> to vector<32x1xf32>
    %cst_32 = arith.constant 3.200000e+01 : f32
    %102 = vector.broadcast %cst_32 : f32 to vector<32x1xf32>
    %103 = arith.divf %101, %102 : vector<32x1xf32>
    %104 = vector.broadcast %103 : vector<32x1xf32> to vector<32x32xf32>
    %105 = arith.subf %99, %104 : vector<32x32xf32>
    %106 = arith.mulf %105, %105 : vector<32x32xf32>
    %cst_33 = arith.constant dense<0.000000e+00> : vector<32xf32>
    %107 = vector.multi_reduction <add>, %106, %cst_33 [1] : vector<32x32xf32> to vector<32xf32>
    %108 = vector.shape_cast %107 : vector<32xf32> to vector<32x1xf32>
    %cst_34 = arith.constant 3.200000e+01 : f32
    %109 = vector.broadcast %cst_34 : f32 to vector<32x1xf32>
    %110 = arith.divf %108, %109 : vector<32x1xf32>
    %111 = vector.broadcast %103 : vector<32x1xf32> to vector<32x32xf32>
    %112 = arith.subf %99, %111 : vector<32x32xf32>
    %cst_35 = arith.constant 9.99999996E-13 : f32
    %113 = vector.broadcast %cst_35 : f32 to vector<32x1xf32>
    %114 = arith.addf %110, %113 : vector<32x1xf32>
    %115 = math.rsqrt %114 : vector<32x1xf32>
    %116 = vector.broadcast %115 : vector<32x1xf32> to vector<32x32xf32>
    %117 = arith.mulf %112, %116 : vector<32x32xf32>
    %118 = vector.broadcast %10 : vector<1x32xf32> to vector<32x32xf32>
    %119 = arith.mulf %117, %118 : vector<32x32xf32>
    %120 = vector.broadcast %11 : vector<1x32xf32> to vector<32x32xf32>
    %121 = arith.addf %119, %120 : vector<32x32xf32>
    %122 = arith.truncf %121 : vector<32x32xf32> to vector<32x32xbf16>
    %c0_36 = arith.constant 0 : index
    %c0_37 = arith.constant 0 : index
    %c0_38 = arith.constant 0 : index
    %123 = vector.load %arg4[%c0_36, %c0_37, %c0_38] : memref<2x32x64xbf16, #tpu.memory_space<vmem>>, vector<1x32x64xbf16>
    %124 = vector.shape_cast %123 : vector<1x32x64xbf16> to vector<32x64xbf16>
    %cst_39 = arith.constant dense<0.000000e+00> : vector<32x64xf32>
    %125 = tpu.matmul %122, %124, %cst_39 {dimension_numbers = #tpu.dot_dimension_numbers<[1], [0], [0], [1], [0, 0, 1, 1], [], []>} : vector<32x32xbf16>, vector<32x64xbf16>, vector<32x64xf32> -> vector<32x64xf32>
    %126 = vector.broadcast %8 : vector<1x64xf32> to vector<32x64xf32>
    %127 = arith.addf %125, %126 : vector<32x64xf32>
    %128 = arith.mulf %127, %127 : vector<32x64xf32>
    %129 = arith.mulf %127, %128 : vector<32x64xf32>
    %cst_40 = arith.constant 4.471500e-02 : f32
    %130 = vector.broadcast %cst_40 : f32 to vector<32x64xf32>
    %131 = arith.mulf %130, %129 : vector<32x64xf32>
    %132 = arith.addf %127, %131 : vector<32x64xf32>
    %cst_41 = arith.constant 0.797884583 : f32
    %133 = vector.broadcast %cst_41 : f32 to vector<32x64xf32>
    %134 = arith.mulf %133, %132 : vector<32x64xf32>
    %135 = math.tanh %134 : vector<32x64xf32>
    %cst_42 = arith.constant 1.000000e+00 : f32
    %136 = vector.broadcast %cst_42 : f32 to vector<32x64xf32>
    %137 = arith.addf %136, %135 : vector<32x64xf32>
    %cst_43 = arith.constant 5.000000e-01 : f32
    %138 = vector.broadcast %cst_43 : f32 to vector<32x64xf32>
    %139 = arith.mulf %138, %137 : vector<32x64xf32>
    %140 = arith.mulf %127, %139 : vector<32x64xf32>
    %141 = arith.truncf %140 : vector<32x64xf32> to vector<32x64xbf16>
    %c0_44 = arith.constant 0 : index
    %c0_45 = arith.constant 0 : index
    %c0_46 = arith.constant 0 : index
    %142 = vector.load %arg5[%c0_44, %c0_45, %c0_46] : memref<2x64x32xbf16, #tpu.memory_space<vmem>>, vector<1x64x32xbf16>
    %143 = vector.shape_cast %142 : vector<1x64x32xbf16> to vector<64x32xbf16>
    %cst_47 = arith.constant dense<0.000000e+00> : vector<32x32xf32>
    %144 = tpu.matmul %141, %143, %cst_47 {dimension_numbers = #tpu.dot_dimension_numbers<[1], [0], [0], [1], [0, 0, 1, 1], [], []>} : vector<32x64xbf16>, vector<64x32xbf16>, vector<32x32xf32> -> vector<32x32xf32>
    %145 = vector.broadcast %12 : vector<1x32xf32> to vector<32x32xf32>
    %146 = arith.addf %144, %145 : vector<32x32xf32>
    %147 = arith.addf %121, %146 : vector<32x32xf32>
    %cst_48 = arith.constant dense<0.000000e+00> : vector<32xf32>
    %148 = vector.multi_reduction <add>, %147, %cst_48 [1] : vector<32x32xf32> to vector<32xf32>
    %149 = vector.shape_cast %148 : vector<32xf32> to vector<32x1xf32>
    %cst_49 = arith.constant 3.200000e+01 : f32
    %150 = vector.broadcast %cst_49 : f32 to vector<32x1xf32>
    %151 = arith.divf %149, %150 : vector<32x1xf32>
    %152 = vector.broadcast %151 : vector<32x1xf32> to vector<32x32xf32>
    %153 = arith.subf %147, %152 : vector<32x32xf32>
    %154 = arith.mulf %153, %153 : vector<32x32xf32>
    %cst_50 = arith.constant dense<0.000000e+00> : vector<32xf32>
    %155 = vector.multi_reduction <add>, %154, %cst_50 [1] : vector<32x32xf32> to vector<32xf32>
    %156 = vector.shape_cast %155 : vector<32xf32> to vector<32x1xf32>
    %cst_51 = arith.constant 3.200000e+01 : f32
    %157 = vector.broadcast %cst_51 : f32 to vector<32x1xf32>
    %158 = arith.divf %156, %157 : vector<32x1xf32>
    %159 = vector.broadcast %151 : vector<32x1xf32> to vector<32x32xf32>
    %160 = arith.subf %147, %159 : vector<32x32xf32>
    %cst_52 = arith.constant 9.99999996E-13 : f32
    %161 = vector.broadcast %cst_52 : f32 to vector<32x1xf32>
    %162 = arith.addf %158, %161 : vector<32x1xf32>
    %163 = math.rsqrt %162 : vector<32x1xf32>
    %164 = vector.broadcast %163 : vector<32x1xf32> to vector<32x32xf32>
    %165 = arith.mulf %160, %164 : vector<32x32xf32>
    %166 = vector.broadcast %13 : vector<1x32xf32> to vector<32x32xf32>
    %167 = arith.mulf %165, %166 : vector<32x32xf32>
    %168 = vector.broadcast %14 : vector<1x32xf32> to vector<32x32xf32>
    %169 = arith.addf %167, %168 : vector<32x32xf32>
    %c1 = arith.constant 1 : index
    %c0_53 = arith.constant 0 : index
    %c0_54 = arith.constant 0 : index
    %170 = vector.load %arg6[%c1, %c0_53, %c0_54] : memref<2x8x128xf32, #tpu.memory_space<vmem>>, vector<1x8x128xf32>
    %171 = vector.shape_cast %170 : vector<1x8x128xf32> to vector<8x128xf32>
    %172 = vector.extract_strided_slice %171 {offsets = [0, 0], sizes = [1, 96], strides = [1, 1]} : vector<8x128xf32> to vector<1x96xf32>
    %173 = vector.extract_strided_slice %171 {offsets = [1, 0], sizes = [1, 64], strides = [1, 1]} : vector<8x128xf32> to vector<1x64xf32>
    %174 = vector.extract_strided_slice %171 {offsets = [2, 0], sizes = [1, 32], strides = [1, 1]} : vector<8x128xf32> to vector<1x32xf32>
    %175 = vector.extract_strided_slice %171 {offsets = [3, 0], sizes = [1, 32], strides = [1, 1]} : vector<8x128xf32> to vector<1x32xf32>
    %176 = vector.extract_strided_slice %171 {offsets = [4, 0], sizes = [1, 32], strides = [1, 1]} : vector<8x128xf32> to vector<1x32xf32>
    %177 = vector.extract_strided_slice %171 {offsets = [5, 0], sizes = [1, 32], strides = [1, 1]} : vector<8x128xf32> to vector<1x32xf32>
    %178 = vector.extract_strided_slice %171 {offsets = [6, 0], sizes = [1, 32], strides = [1, 1]} : vector<8x128xf32> to vector<1x32xf32>
    %179 = vector.extract_strided_slice %171 {offsets = [7, 0], sizes = [1, 32], strides = [1, 1]} : vector<8x128xf32> to vector<1x32xf32>
    %180 = arith.truncf %169 : vector<32x32xf32> to vector<32x32xbf16>
    %c1_55 = arith.constant 1 : index
    %c0_56 = arith.constant 0 : index
    %c0_57 = arith.constant 0 : index
    %181 = vector.load %arg2[%c1_55, %c0_56, %c0_57] : memref<2x32x96xbf16, #tpu.memory_space<vmem>>, vector<1x32x96xbf16>
    %182 = vector.shape_cast %181 : vector<1x32x96xbf16> to vector<32x96xbf16>
    %cst_58 = arith.constant dense<0.000000e+00> : vector<32x96xf32>
    %183 = tpu.matmul %180, %182, %cst_58 {dimension_numbers = #tpu.dot_dimension_numbers<[1], [0], [0], [1], [0, 0, 1, 1], [], []>} : vector<32x32xbf16>, vector<32x96xbf16>, vector<32x96xf32> -> vector<32x96xf32>
    %184 = vector.broadcast %172 : vector<1x96xf32> to vector<32x96xf32>
    %185 = arith.addf %183, %184 : vector<32x96xf32>
    %186 = vector.shape_cast %185 : vector<32x96xf32> to vector<4x8x96xf32>
    %187 = arith.truncf %186 : vector<4x8x96xf32> to vector<4x8x96xbf16>
    %188 = vector.extract_strided_slice %187 {offsets = [0, 0, 0], sizes = [4, 8, 8], strides = [1, 1, 1]} : vector<4x8x96xbf16> to vector<4x8x8xbf16>
    %189 = vector.extract_strided_slice %187 {offsets = [0, 0, 32], sizes = [4, 8, 8], strides = [1, 1, 1]} : vector<4x8x96xbf16> to vector<4x8x8xbf16>
    %190 = vector.extract_strided_slice %187 {offsets = [0, 0, 64], sizes = [4, 8, 8], strides = [1, 1, 1]} : vector<4x8x96xbf16> to vector<4x8x8xbf16>
    "tpu.trace_start"() <{level = 10 : i32, message = "bqd,bkd->bqk"}> : () -> ()
    %cst_59 = arith.constant dense<0.000000e+00> : vector<4x8x8xf32>
    %191 = tpu.matmul %188, %189, %cst_59 {dimension_numbers = #tpu.dot_dimension_numbers<[2], [2], [1], [1], [0, 0, 0, 1, 1, 1], [0], [0]>} : vector<4x8x8xbf16>, vector<4x8x8xbf16>, vector<4x8x8xf32> -> vector<4x8x8xf32>
    "tpu.trace_stop"() : () -> ()
    %192 = arith.addf %191, %4 : vector<4x8x8xf32>
    %cst_60 = arith.constant dense<0xFF800000> : vector<4x8xf32>
    %193 = vector.multi_reduction <maximumf>, %192, %cst_60 [2] : vector<4x8x8xf32> to vector<4x8xf32>
    %194 = vector.shape_cast %193 : vector<4x8xf32> to vector<4x8x1xf32>
    %195 = vector.broadcast %194 : vector<4x8x1xf32> to vector<4x8x8xf32>
    %196 = arith.subf %192, %195 : vector<4x8x8xf32>
    %197 = math.exp %196 : vector<4x8x8xf32>
    %cst_61 = arith.constant dense<0.000000e+00> : vector<4x8xf32>
    %198 = vector.multi_reduction <add>, %197, %cst_61 [2] : vector<4x8x8xf32> to vector<4x8xf32>
    %199 = vector.shape_cast %198 : vector<4x8xf32> to vector<4x8x1xf32>
    %200 = tpu.reciprocal %199 {approx = true} : vector<4x8x1xf32> -> vector<4x8x1xf32>
    %201 = vector.broadcast %200 : vector<4x8x1xf32> to vector<4x8x8xf32>
    %202 = arith.mulf %197, %201 : vector<4x8x8xf32>
    %203 = arith.truncf %202 : vector<4x8x8xf32> to vector<4x8x8xbf16>
    "tpu.trace_start"() <{level = 10 : i32, message = "bqk,bkd->bqd"}> : () -> ()
    %cst_62 = arith.constant dense<0.000000e+00> : vector<4x8x8xf32>
    %204 = tpu.matmul %203, %190, %cst_62 {dimension_numbers = #tpu.dot_dimension_numbers<[2], [1], [1], [2], [0, 0, 0, 1, 1, 2], [0], [0]>} : vector<4x8x8xbf16>, vector<4x8x8xbf16>, vector<4x8x8xf32> -> vector<4x8x8xf32>
    "tpu.trace_stop"() : () -> ()
    %205 = vector.extract_strided_slice %187 {offsets = [0, 0, 8], sizes = [4, 8, 8], strides = [1, 1, 1]} : vector<4x8x96xbf16> to vector<4x8x8xbf16>
    %206 = vector.extract_strided_slice %187 {offsets = [0, 0, 40], sizes = [4, 8, 8], strides = [1, 1, 1]} : vector<4x8x96xbf16> to vector<4x8x8xbf16>
    %207 = vector.extract_strided_slice %187 {offsets = [0, 0, 72], sizes = [4, 8, 8], strides = [1, 1, 1]} : vector<4x8x96xbf16> to vector<4x8x8xbf16>
    "tpu.trace_start"() <{level = 10 : i32, message = "bqd,bkd->bqk"}> : () -> ()
    %cst_63 = arith.constant dense<0.000000e+00> : vector<4x8x8xf32>
    %208 = tpu.matmul %205, %206, %cst_63 {dimension_numbers = #tpu.dot_dimension_numbers<[2], [2], [1], [1], [0, 0, 0, 1, 1, 1], [0], [0]>} : vector<4x8x8xbf16>, vector<4x8x8xbf16>, vector<4x8x8xf32> -> vector<4x8x8xf32>
    "tpu.trace_stop"() : () -> ()
    %209 = arith.addf %208, %4 : vector<4x8x8xf32>
    %cst_64 = arith.constant dense<0xFF800000> : vector<4x8xf32>
    %210 = vector.multi_reduction <maximumf>, %209, %cst_64 [2] : vector<4x8x8xf32> to vector<4x8xf32>
    %211 = vector.shape_cast %210 : vector<4x8xf32> to vector<4x8x1xf32>
    %212 = vector.broadcast %211 : vector<4x8x1xf32> to vector<4x8x8xf32>
    %213 = arith.subf %209, %212 : vector<4x8x8xf32>
    %214 = math.exp %213 : vector<4x8x8xf32>
    %cst_65 = arith.constant dense<0.000000e+00> : vector<4x8xf32>
    %215 = vector.multi_reduction <add>, %214, %cst_65 [2] : vector<4x8x8xf32> to vector<4x8xf32>
    %216 = vector.shape_cast %215 : vector<4x8xf32> to vector<4x8x1xf32>
    %217 = tpu.reciprocal %216 {approx = true} : vector<4x8x1xf32> -> vector<4x8x1xf32>
    %218 = vector.broadcast %217 : vector<4x8x1xf32> to vector<4x8x8xf32>
    %219 = arith.mulf %214, %218 : vector<4x8x8xf32>
    %220 = arith.truncf %219 : vector<4x8x8xf32> to vector<4x8x8xbf16>
    "tpu.trace_start"() <{level = 10 : i32, message = "bqk,bkd->bqd"}> : () -> ()
    %cst_66 = arith.constant dense<0.000000e+00> : vector<4x8x8xf32>
    %221 = tpu.matmul %220, %207, %cst_66 {dimension_numbers = #tpu.dot_dimension_numbers<[2], [1], [1], [2], [0, 0, 0, 1, 1, 2], [0], [0]>} : vector<4x8x8xbf16>, vector<4x8x8xbf16>, vector<4x8x8xf32> -> vector<4x8x8xf32>
    "tpu.trace_stop"() : () -> ()
    %222 = vector.extract_strided_slice %187 {offsets = [0, 0, 16], sizes = [4, 8, 8], strides = [1, 1, 1]} : vector<4x8x96xbf16> to vector<4x8x8xbf16>
    %223 = vector.extract_strided_slice %187 {offsets = [0, 0, 48], sizes = [4, 8, 8], strides = [1, 1, 1]} : vector<4x8x96xbf16> to vector<4x8x8xbf16>
    %224 = vector.extract_strided_slice %187 {offsets = [0, 0, 80], sizes = [4, 8, 8], strides = [1, 1, 1]} : vector<4x8x96xbf16> to vector<4x8x8xbf16>
    "tpu.trace_start"() <{level = 10 : i32, message = "bqd,bkd->bqk"}> : () -> ()
    %cst_67 = arith.constant dense<0.000000e+00> : vector<4x8x8xf32>
    %225 = tpu.matmul %222, %223, %cst_67 {dimension_numbers = #tpu.dot_dimension_numbers<[2], [2], [1], [1], [0, 0, 0, 1, 1, 1], [0], [0]>} : vector<4x8x8xbf16>, vector<4x8x8xbf16>, vector<4x8x8xf32> -> vector<4x8x8xf32>
    "tpu.trace_stop"() : () -> ()
    %226 = arith.addf %225, %4 : vector<4x8x8xf32>
    %cst_68 = arith.constant dense<0xFF800000> : vector<4x8xf32>
    %227 = vector.multi_reduction <maximumf>, %226, %cst_68 [2] : vector<4x8x8xf32> to vector<4x8xf32>
    %228 = vector.shape_cast %227 : vector<4x8xf32> to vector<4x8x1xf32>
    %229 = vector.broadcast %228 : vector<4x8x1xf32> to vector<4x8x8xf32>
    %230 = arith.subf %226, %229 : vector<4x8x8xf32>
    %231 = math.exp %230 : vector<4x8x8xf32>
    %cst_69 = arith.constant dense<0.000000e+00> : vector<4x8xf32>
    %232 = vector.multi_reduction <add>, %231, %cst_69 [2] : vector<4x8x8xf32> to vector<4x8xf32>
    %233 = vector.shape_cast %232 : vector<4x8xf32> to vector<4x8x1xf32>
    %234 = tpu.reciprocal %233 {approx = true} : vector<4x8x1xf32> -> vector<4x8x1xf32>
    %235 = vector.broadcast %234 : vector<4x8x1xf32> to vector<4x8x8xf32>
    %236 = arith.mulf %231, %235 : vector<4x8x8xf32>
    %237 = arith.truncf %236 : vector<4x8x8xf32> to vector<4x8x8xbf16>
    "tpu.trace_start"() <{level = 10 : i32, message = "bqk,bkd->bqd"}> : () -> ()
    %cst_70 = arith.constant dense<0.000000e+00> : vector<4x8x8xf32>
    %238 = tpu.matmul %237, %224, %cst_70 {dimension_numbers = #tpu.dot_dimension_numbers<[2], [1], [1], [2], [0, 0, 0, 1, 1, 2], [0], [0]>} : vector<4x8x8xbf16>, vector<4x8x8xbf16>, vector<4x8x8xf32> -> vector<4x8x8xf32>
    "tpu.trace_stop"() : () -> ()
    %239 = vector.extract_strided_slice %187 {offsets = [0, 0, 24], sizes = [4, 8, 8], strides = [1, 1, 1]} : vector<4x8x96xbf16> to vector<4x8x8xbf16>
    %240 = vector.extract_strided_slice %187 {offsets = [0, 0, 56], sizes = [4, 8, 8], strides = [1, 1, 1]} : vector<4x8x96xbf16> to vector<4x8x8xbf16>
    %241 = vector.extract_strided_slice %187 {offsets = [0, 0, 88], sizes = [4, 8, 8], strides = [1, 1, 1]} : vector<4x8x96xbf16> to vector<4x8x8xbf16>
    "tpu.trace_start"() <{level = 10 : i32, message = "bqd,bkd->bqk"}> : () -> ()
    %cst_71 = arith.constant dense<0.000000e+00> : vector<4x8x8xf32>
    %242 = tpu.matmul %239, %240, %cst_71 {dimension_numbers = #tpu.dot_dimension_numbers<[2], [2], [1], [1], [0, 0, 0, 1, 1, 1], [0], [0]>} : vector<4x8x8xbf16>, vector<4x8x8xbf16>, vector<4x8x8xf32> -> vector<4x8x8xf32>
    "tpu.trace_stop"() : () -> ()
    %243 = arith.addf %242, %4 : vector<4x8x8xf32>
    %cst_72 = arith.constant dense<0xFF800000> : vector<4x8xf32>
    %244 = vector.multi_reduction <maximumf>, %243, %cst_72 [2] : vector<4x8x8xf32> to vector<4x8xf32>
    %245 = vector.shape_cast %244 : vector<4x8xf32> to vector<4x8x1xf32>
    %246 = vector.broadcast %245 : vector<4x8x1xf32> to vector<4x8x8xf32>
    %247 = arith.subf %243, %246 : vector<4x8x8xf32>
    %248 = math.exp %247 : vector<4x8x8xf32>
    %cst_73 = arith.constant dense<0.000000e+00> : vector<4x8xf32>
    %249 = vector.multi_reduction <add>, %248, %cst_73 [2] : vector<4x8x8xf32> to vector<4x8xf32>
    %250 = vector.shape_cast %249 : vector<4x8xf32> to vector<4x8x1xf32>
    %251 = tpu.reciprocal %250 {approx = true} : vector<4x8x1xf32> -> vector<4x8x1xf32>
    %252 = vector.broadcast %251 : vector<4x8x1xf32> to vector<4x8x8xf32>
    %253 = arith.mulf %248, %252 : vector<4x8x8xf32>
    %254 = arith.truncf %253 : vector<4x8x8xf32> to vector<4x8x8xbf16>
    "tpu.trace_start"() <{level = 10 : i32, message = "bqk,bkd->bqd"}> : () -> ()
    %cst_74 = arith.constant dense<0.000000e+00> : vector<4x8x8xf32>
    %255 = tpu.matmul %254, %241, %cst_74 {dimension_numbers = #tpu.dot_dimension_numbers<[2], [1], [1], [2], [0, 0, 0, 1, 1, 2], [0], [0]>} : vector<4x8x8xbf16>, vector<4x8x8xbf16>, vector<4x8x8xf32> -> vector<4x8x8xf32>
    "tpu.trace_stop"() : () -> ()
    %256 = tpu.concatenate %204, %221, %238, %255 in 2 : vector<4x8x8xf32>, vector<4x8x8xf32>, vector<4x8x8xf32>, vector<4x8x8xf32> -> vector<4x8x32xf32>
    %257 = vector.shape_cast %256 : vector<4x8x32xf32> to vector<32x32xf32>
    %258 = arith.truncf %257 : vector<32x32xf32> to vector<32x32xbf16>
    %c1_75 = arith.constant 1 : index
    %c0_76 = arith.constant 0 : index
    %c0_77 = arith.constant 0 : index
    %259 = vector.load %arg3[%c1_75, %c0_76, %c0_77] : memref<2x32x32xbf16, #tpu.memory_space<vmem>>, vector<1x32x32xbf16>
    %260 = vector.shape_cast %259 : vector<1x32x32xbf16> to vector<32x32xbf16>
    %cst_78 = arith.constant dense<0.000000e+00> : vector<32x32xf32>
    %261 = tpu.matmul %258, %260, %cst_78 {dimension_numbers = #tpu.dot_dimension_numbers<[1], [0], [0], [1], [0, 0, 1, 1], [], []>} : vector<32x32xbf16>, vector<32x32xbf16>, vector<32x32xf32> -> vector<32x32xf32>
    %262 = vector.broadcast %174 : vector<1x32xf32> to vector<32x32xf32>
    %263 = arith.addf %261, %262 : vector<32x32xf32>
    %264 = arith.addf %169, %263 : vector<32x32xf32>
    %cst_79 = arith.constant dense<0.000000e+00> : vector<32xf32>
    %265 = vector.multi_reduction <add>, %264, %cst_79 [1] : vector<32x32xf32> to vector<32xf32>
    %266 = vector.shape_cast %265 : vector<32xf32> to vector<32x1xf32>
    %cst_80 = arith.constant 3.200000e+01 : f32
    %267 = vector.broadcast %cst_80 : f32 to vector<32x1xf32>
    %268 = arith.divf %266, %267 : vector<32x1xf32>
    %269 = vector.broadcast %268 : vector<32x1xf32> to vector<32x32xf32>
    %270 = arith.subf %264, %269 : vector<32x32xf32>
    %271 = arith.mulf %270, %270 : vector<32x32xf32>
    %cst_81 = arith.constant dense<0.000000e+00> : vector<32xf32>
    %272 = vector.multi_reduction <add>, %271, %cst_81 [1] : vector<32x32xf32> to vector<32xf32>
    %273 = vector.shape_cast %272 : vector<32xf32> to vector<32x1xf32>
    %cst_82 = arith.constant 3.200000e+01 : f32
    %274 = vector.broadcast %cst_82 : f32 to vector<32x1xf32>
    %275 = arith.divf %273, %274 : vector<32x1xf32>
    %276 = vector.broadcast %268 : vector<32x1xf32> to vector<32x32xf32>
    %277 = arith.subf %264, %276 : vector<32x32xf32>
    %cst_83 = arith.constant 9.99999996E-13 : f32
    %278 = vector.broadcast %cst_83 : f32 to vector<32x1xf32>
    %279 = arith.addf %275, %278 : vector<32x1xf32>
    %280 = math.rsqrt %279 : vector<32x1xf32>
    %281 = vector.broadcast %280 : vector<32x1xf32> to vector<32x32xf32>
    %282 = arith.mulf %277, %281 : vector<32x32xf32>
    %283 = vector.broadcast %175 : vector<1x32xf32> to vector<32x32xf32>
    %284 = arith.mulf %282, %283 : vector<32x32xf32>
    %285 = vector.broadcast %176 : vector<1x32xf32> to vector<32x32xf32>
    %286 = arith.addf %284, %285 : vector<32x32xf32>
    %287 = arith.truncf %286 : vector<32x32xf32> to vector<32x32xbf16>
    %c1_84 = arith.constant 1 : index
    %c0_85 = arith.constant 0 : index
    %c0_86 = arith.constant 0 : index
    %288 = vector.load %arg4[%c1_84, %c0_85, %c0_86] : memref<2x32x64xbf16, #tpu.memory_space<vmem>>, vector<1x32x64xbf16>
    %289 = vector.shape_cast %288 : vector<1x32x64xbf16> to vector<32x64xbf16>
    %cst_87 = arith.constant dense<0.000000e+00> : vector<32x64xf32>
    %290 = tpu.matmul %287, %289, %cst_87 {dimension_numbers = #tpu.dot_dimension_numbers<[1], [0], [0], [1], [0, 0, 1, 1], [], []>} : vector<32x32xbf16>, vector<32x64xbf16>, vector<32x64xf32> -> vector<32x64xf32>
    %291 = vector.broadcast %173 : vector<1x64xf32> to vector<32x64xf32>
    %292 = arith.addf %290, %291 : vector<32x64xf32>
    %293 = arith.mulf %292, %292 : vector<32x64xf32>
    %294 = arith.mulf %292, %293 : vector<32x64xf32>
    %cst_88 = arith.constant 4.471500e-02 : f32
    %295 = vector.broadcast %cst_88 : f32 to vector<32x64xf32>
    %296 = arith.mulf %295, %294 : vector<32x64xf32>
    %297 = arith.addf %292, %296 : vector<32x64xf32>
    %cst_89 = arith.constant 0.797884583 : f32
    %298 = vector.broadcast %cst_89 : f32 to vector<32x64xf32>
    %299 = arith.mulf %298, %297 : vector<32x64xf32>
    %300 = math.tanh %299 : vector<32x64xf32>
    %cst_90 = arith.constant 1.000000e+00 : f32
    %301 = vector.broadcast %cst_90 : f32 to vector<32x64xf32>
    %302 = arith.addf %301, %300 : vector<32x64xf32>
    %cst_91 = arith.constant 5.000000e-01 : f32
    %303 = vector.broadcast %cst_91 : f32 to vector<32x64xf32>
    %304 = arith.mulf %303, %302 : vector<32x64xf32>
    %305 = arith.mulf %292, %304 : vector<32x64xf32>
    %306 = arith.truncf %305 : vector<32x64xf32> to vector<32x64xbf16>
    %c1_92 = arith.constant 1 : index
    %c0_93 = arith.constant 0 : index
    %c0_94 = arith.constant 0 : index
    %307 = vector.load %arg5[%c1_92, %c0_93, %c0_94] : memref<2x64x32xbf16, #tpu.memory_space<vmem>>, vector<1x64x32xbf16>
    %308 = vector.shape_cast %307 : vector<1x64x32xbf16> to vector<64x32xbf16>
    %cst_95 = arith.constant dense<0.000000e+00> : vector<32x32xf32>
    %309 = tpu.matmul %306, %308, %cst_95 {dimension_numbers = #tpu.dot_dimension_numbers<[1], [0], [0], [1], [0, 0, 1, 1], [], []>} : vector<32x64xbf16>, vector<64x32xbf16>, vector<32x32xf32> -> vector<32x32xf32>
    %310 = vector.broadcast %177 : vector<1x32xf32> to vector<32x32xf32>
    %311 = arith.addf %309, %310 : vector<32x32xf32>
    %312 = arith.addf %286, %311 : vector<32x32xf32>
    %cst_96 = arith.constant dense<0.000000e+00> : vector<32xf32>
    %313 = vector.multi_reduction <add>, %312, %cst_96 [1] : vector<32x32xf32> to vector<32xf32>
    %314 = vector.shape_cast %313 : vector<32xf32> to vector<32x1xf32>
    %cst_97 = arith.constant 3.200000e+01 : f32
    %315 = vector.broadcast %cst_97 : f32 to vector<32x1xf32>
    %316 = arith.divf %314, %315 : vector<32x1xf32>
    %317 = vector.broadcast %316 : vector<32x1xf32> to vector<32x32xf32>
    %318 = arith.subf %312, %317 : vector<32x32xf32>
    %319 = arith.mulf %318, %318 : vector<32x32xf32>
    %cst_98 = arith.constant dense<0.000000e+00> : vector<32xf32>
    %320 = vector.multi_reduction <add>, %319, %cst_98 [1] : vector<32x32xf32> to vector<32xf32>
    %321 = vector.shape_cast %320 : vector<32xf32> to vector<32x1xf32>
    %cst_99 = arith.constant 3.200000e+01 : f32
    %322 = vector.broadcast %cst_99 : f32 to vector<32x1xf32>
    %323 = arith.divf %321, %322 : vector<32x1xf32>
    %324 = vector.broadcast %316 : vector<32x1xf32> to vector<32x32xf32>
    %325 = arith.subf %312, %324 : vector<32x32xf32>
    %cst_100 = arith.constant 9.99999996E-13 : f32
    %326 = vector.broadcast %cst_100 : f32 to vector<32x1xf32>
    %327 = arith.addf %323, %326 : vector<32x1xf32>
    %328 = math.rsqrt %327 : vector<32x1xf32>
    %329 = vector.broadcast %328 : vector<32x1xf32> to vector<32x32xf32>
    %330 = arith.mulf %325, %329 : vector<32x32xf32>
    %331 = vector.broadcast %178 : vector<1x32xf32> to vector<32x32xf32>
    %332 = arith.mulf %330, %331 : vector<32x32xf32>
    %333 = vector.broadcast %179 : vector<1x32xf32> to vector<32x32xf32>
    %334 = arith.addf %332, %333 : vector<32x32xf32>
    %335 = vector.shape_cast %334 : vector<32x32xf32> to vector<4x8x32xf32>
    %cst_101 = arith.constant dense<0.000000e+00> : vector<4x32xf32>
    %336 = vector.multi_reduction <add>, %335, %cst_101 [1] : vector<4x8x32xf32> to vector<4x32xf32>
    %cst_102 = arith.constant 8.000000e+00 : f32
    %337 = vector.broadcast %cst_102 : f32 to vector<4x32xf32>
    %338 = arith.divf %336, %337 : vector<4x32xf32>
    %c0_103 = arith.constant 0 : index
    %c0_104 = arith.constant 0 : index
    %339 = vector.load %arg7[%c0_103, %c0_104] : memref<4x32xf32, #tpu.memory_space<vmem>>, vector<4x32xf32>
    tpu.vector_store %arg7[%c0_103, %c0_104], %338 {strides = array<i32>} : memref<4x32xf32, #tpu.memory_space<vmem>>, vector<4x32xf32>,
    return
  }
}

</mosaic_0001>

<llo_original>
// kernel: bi_encoder_forward.1
$region0: #{bi_encoder_forward.1}
  #allocation0 [shape = 'u32[]', space=smem, size = 0x4, offset = 0x4, fixed_abs, tag = 'smem constant byte address 0x4 - core index']
  #allocation1 [shape = 'u32[144,128]{1,0:T(1,128)}', space=vmem, size = 0x12000, scoped, tag = 'internal scratch']
  %s0 = inlined_call_operand.vmem [shape: f32[4,8,32], index: 0, kind: input, shape index: {}]
  %s1 = inlined_call_operand.vmem [shape: f32[4,1,8], index: 1, kind: input, shape index: {}]
  %s2 = inlined_call_operand.vmem [shape: bf16[2,32,96], index: 2, kind: input, shape index: {}]
  %s3 = inlined_call_operand.vmem [shape: bf16[2,32,32], index: 3, kind: input, shape index: {}]
  %s4 = inlined_call_operand.vmem [shape: bf16[2,32,64], index: 4, kind: input, shape index: {}]
  %s5 = inlined_call_operand.vmem [shape: bf16[2,64,32], index: 5, kind: input, shape index: {}]
  %s6 = inlined_call_operand.vmem [shape: f32[2,8,128], index: 6, kind: input, shape index: {}]
  %s7 = inlined_call_operand.vmem [shape: f32[4,32], index: 7, kind: output, shape index: {}]
  %s8 = sld [smem:[#allocation0]]
  $region38: #{bi_encoder_forward.1} parent=0
    _
  %s10 = ssub.s32 1, %s8
  %s11 = scalar_select 0, %s10, %s8
  // Predicated region
  $region2: #{bi_encoder_forward.1} parent=0 // pred_check
    _
  $region3: #{bi_encoder_forward.1} parent=0 // pred_check_branch
    %13 = sbr.rel (0) target = $region5
  $region4: #{bi_encoder_forward.1} parent=0 // pred_region
    _
  $region5: #{bi_encoder_forward.1} parent=0 // pred_fallthru
    _
  // Predicated region
  $region6: #{bi_encoder_forward.1} parent=0 // pred_check
    _
  $region7: #{bi_encoder_forward.1} parent=0 // pred_check_branch
    %15 = sbr.rel (0) target = $region9
  $region8: #{bi_encoder_forward.1} parent=0 // pred_region
    _
  $region9: #{bi_encoder_forward.1} parent=0 // pred_fallthru
    _
  // Predicated region
  $region10: #{bi_encoder_forward.1} parent=0 // pred_check
    _
  $region11: #{bi_encoder_forward.1} parent=0 // pred_check_branch
    %17 = sbr.rel (0) target = $region13
  $region12: #{bi_encoder_forward.1} parent=0 // pred_region
    _
  $region13: #{bi_encoder_forward.1} parent=0 // pred_fallthru
    _
  // Predicated region
  $region14: #{bi_encoder_forward.1} parent=0 // pred_check
    _
  $region15: #{bi_encoder_forward.1} parent=0 // pred_check_branch
    %19 = sbr.rel (0) target = $region17
  $region16: #{bi_encoder_forward.1} parent=0 // pred_region
    _
  $region17: #{bi_encoder_forward.1} parent=0 // pred_fallthru
    _
  // Predicated region
  $region18: #{bi_encoder_forward.1} parent=0 // pred_check
    _
  $region19: #{bi_encoder_forward.1} parent=0 // pred_check_branch
    %21 = sbr.rel (0) target = $region21
  $region20: #{bi_encoder_forward.1} parent=0 // pred_region
    _
  $region21: #{bi_encoder_forward.1} parent=0 // pred_fallthru
    _
  // Predicated region
  $region22: #{bi_encoder_forward.1} parent=0 // pred_check
    _
  $region23: #{bi_encoder_forward.1} parent=0 // pred_check_branch
    %23 = sbr.rel (0) target = $region25
  $region24: #{bi_encoder_forward.1} parent=0 // pred_region
    _
  $region25: #{bi_encoder_forward.1} parent=0 // pred_fallthru
    _
  // Predicated region
  $region26: #{bi_encoder_forward.1} parent=0 // pred_check
    _
  $region27: #{bi_encoder_forward.1} parent=0 // pred_check_branch
    %25 = sbr.rel (0) target = $region29
  $region28: #{bi_encoder_forward.1} parent=0 // pred_region
    _
  $region29: #{bi_encoder_forward.1} parent=0 // pred_fallthru
    _
  %v27 = vld [vmem:[%s0] sm:$0xff]
  %v28 = vld [vmem:[%s0 + $0x8] sm:$0xff]
  %v29 = vld [vmem:[%s0 + $0x10] sm:$0xff]
  %v30 = vld [vmem:[%s0 + $0x18] sm:$0xff]
  %v31 = vld [vmem:[%s1] sm:$0x1]
  %v32 = vld [vmem:[%s1 + $0x1] sm:$0x1]
  %v33 = vld [vmem:[%s1 + $0x2] sm:$0x1]
  %v34 = vld [vmem:[%s1 + $0x3] sm:$0x1]
  %v39 = vlaneseq
  %v40 = vshrl.u32 %v39, 7
  %v41 = vsub.s32 0, %v40
  %v42 = vrot.slane %v31, %v41
  %v43 = vlaneseq
  %v44 = vshrl.u32 %v43, 7
  %v45 = vsub.s32 0, %v44
  %v46 = vrot.slane %v32, %v45
  %v47 = vlaneseq
  %v48 = vshrl.u32 %v47, 7
  %v49 = vsub.s32 0, %v48
  %v50 = vrot.slane %v33, %v49
  %v51 = vlaneseq
  %v52 = vshrl.u32 %v51, 7
  %v53 = vsub.s32 0, %v52
  %v54 = vrot.slane %v34, %v53
  %v59 = vld [vmem:[%s6] sm:$0xff]
  %v60 = vpack.c.bf16 %v28, %v27
  %v61 = vpack.c.bf16 %v30, %v29
  %v62 = vld [vmem:[%s2] sm:$0xf]
  %v63 = vld [vmem:[%s2 + $0x4] sm:$0xf]
  %v64 = vld [vmem:[%s2 + $0x8] sm:$0xf]
  %v65 = vld [vmem:[%s2 + $0xc] sm:$0xf]
  %v66 = vlaneseq
  %v67 = vshrl.u32 %v66, 7
  %v68 = vsub.s32 0, %v67
  %v69 = vrot.slane %v59, %v68
  %v74 = vunpack.c.l.b16 %v62
  %v75 = vunpack.c.l.b16 %v63
  %v76 = vunpack.c.l.b16 %v64
  %v77 = vunpack.c.l.b16 %v65
  %v78 = vpack.c.b16 %v75, %v74
  %v79 = vpack.c.b16 %v77, %v76
  %vm82 = vcmask 261120
  %v84 = vsel %vm82, %v60, 0
  %v87 = vsel %vm82, %v61, 0
  %89 = vmatprep.subr.bf16.mxu0 0
  %90 = vmatpush1.bf16.msra.mxu0 0
  %91 = vmatprep.subr.bf16.mxu0 0
  %92 = vmatpush1.bf16.msra.mxu0 0
  %93 = vmatprep.subr.bf16.mxu0 0
  %94 = vmatpush1.bf16.msra.mxu0 0
  %95 = vmatprep.subr.bf16.mxu0 0
  %96 = vmatpush1.bf16.msra.mxu0 0
  %97 = vmatprep.subr.bf16.mxu0 0
  %98 = vmatpush1.bf16.msra.mxu0 0
  %99 = vmatprep.subr.bf16.mxu0 0
  %100 = vmatpush1.bf16.msra.mxu0 0
  %101 = vmatprep.subr.bf16.mxu0 0
  %102 = vmatpush1.bf16.msra.mxu0 %v79
  %103 = vmatprep.subr.bf16.mxu0 0
  %104 = vmatpush1.bf16.msra.mxu0 %v78
  %105 = vmatprep.subr.bf16.mxu0 0
  %106 = vmatpush2.bf16.msra.mxu0 0
  %107 = vmatprep.subr.bf16.mxu0 0
  %108 = vmatpush2.bf16.msra.mxu0 0
  %109 = vmatprep.subr.bf16.mxu0 0
  %110 = vmatpush2.bf16.msra.mxu0 0
  %111 = vmatprep.subr.bf16.mxu0 0
  %112 = vmatpush2.bf16.msra.mxu0 0
  %113 = vmatprep.subr.bf16.mxu0 0
  %114 = vmatpush2.bf16.msra.mxu0 0
  %115 = vmatprep.subr.bf16.mxu0 0
  %116 = vmatpush2.bf16.msra.mxu0 0
  %117 = vmatprep.subr.bf16.mxu0 0
  %118 = vmatpush2.bf16.msra.mxu0 0
  %119 = vmatprep.subr.bf16.mxu0 0
  %120 = vmatpush2.bf16.msra.mxu0 0
  %121 = vmatprep.mubr.bf16.mxu0 0
  %122 = vmatmul.mubr.bf16.gmra.mxu0 %v84
  %v123 = vpop.f32.mrf.mxu0
  %v124 = vadd.f32 %v69, %v123
  %v125 = vpop.f32.mrf.mxu0
  %v126 = vpop.f32.mrf.mxu0
  %v127 = vadd.f32 %v69, %v126
  %v128 = vpop.f32.mrf.mxu0
  %129 = vmatprep.mubr.bf16.mxu0 0
  %130 = vmatmul.mubr.bf16.gmra.mxu0 %v87
  %v131 = vpop.f32.mrf.mxu0
  %v132 = vadd.f32 %v69, %v131
  %v133 = vpop.f32.mrf.mxu0
  %v134 = vpop.f32.mrf.mxu0
  %v135 = vadd.f32 %v69, %v134
  %v136 = vpop.f32.mrf.mxu0
  %137 = vdwg.mxu0
  %v138 = vpack.c.bf16 %v124, %v124
  %v139 = vpack.c.bf16 %v127, %v127
  %v140 = vpack.c.bf16 %v132, %v132
  %v141 = vpack.c.bf16 %v135, %v135
  %143 = vrot.lane.b32.xlu0 %v138, 96
  %v144 = vpop.permute.xlu0 %143
  %vm145 = vcmask 64512
  %v147 = vsel %vm145, %v138, 0
  %v150 = vsel %vm145, %v144, 0
  %152 = vmatprep.subr.bf16.mxu0 0
  %153 = vmatpush1.bf16.xpose.msra.mxu0 0
  %154 = vmatprep.subr.bf16.mxu0 0
  %155 = vmatpush1.bf16.xpose.msra.mxu0 0
  %156 = vmatprep.subr.bf16.mxu0 0
  %157 = vmatpush1.bf16.xpose.msra.mxu0 0
  %158 = vmatprep.subr.bf16.mxu0 0
  %159 = vmatpush1.bf16.xpose.msra.mxu0 0
  %160 = vmatprep.subr.bf16.mxu0 0
  %161 = vmatpush1.bf16.xpose.msra.mxu0 0
  %162 = vmatprep.subr.bf16.mxu0 0
  %163 = vmatpush1.bf16.xpose.msra.mxu0 0
  %164 = vmatprep.subr.bf16.mxu0 0
  %165 = vmatpush1.bf16.xpose.msra.mxu0 0
  %166 = vmatprep.subr.bf16.mxu0 0
  %167 = vmatpush1.bf16.xpose.msra.mxu0 %v150
  %168 = vmatprep.subr.bf16.mxu0 0
  %169 = vmatpush2.bf16.xpose.msra.mxu0 0
  %170 = vmatprep.subr.bf16.mxu0 0
  %171 = vmatpush2.bf16.xpose.msra.mxu0 0
  %172 = vmatprep.subr.bf16.mxu0 0
  %173 = vmatpush2.bf16.xpose.msra.mxu0 0
  %174 = vmatprep.subr.bf16.mxu0 0
  %175 = vmatpush2.bf16.xpose.msra.mxu0 0
  %176 = vmatprep.subr.bf16.mxu0 0
  %177 = vmatpush2.bf16.xpose.msra.mxu0 0
  %178 = vmatprep.subr.bf16.mxu0 0
  %179 = vmatpush2.bf16.xpose.msra.mxu0 0
  %180 = vmatprep.subr.bf16.mxu0 0
  %181 = vmatpush2.bf16.xpose.msra.mxu0 0
  %182 = vmatprep.subr.bf16.mxu0 0
  %183 = vmatpush2.bf16.xpose.msra.mxu0 0
  %184 = vmatprep.mubr.bf16.mxu0 0
  %185 = vmatmul.mubr.bf16.gmra.mxu0 %v147
  %v186 = vpop.f32.mrf.mxu0
  %v187 = vadd.f32 %v42, %v186
  %v188 = vpop.f32.mrf.mxu0
  %v189 = vpop.f32.mrf.mxu0
  %v190 = vpop.f32.mrf.mxu0
  %191 = vdwg.mxu0
  %193 = vrot.lane.b32.xlu0 %v139, 96
  %v194 = vpop.permute.xlu0 %193
  %v196 = vsel %vm145, %v139, 0
  %v199 = vsel %vm145, %v194, 0
  %201 = vmatprep.subr.bf16.mxu0 0
  %202 = vmatpush1.bf16.xpose.msra.mxu0 0
  %203 = vmatprep.subr.bf16.mxu0 0
  %204 = vmatpush1.bf16.xpose.msra.mxu0 0
  %205 = vmatprep.subr.bf16.mxu0 0
  %206 = vmatpush1.bf16.xpose.msra.mxu0 0
  %207 = vmatprep.subr.bf16.mxu0 0
  %208 = vmatpush1.bf16.xpose.msra.mxu0 0
  %209 = vmatprep.subr.bf16.mxu0 0
  %210 = vmatpush1.bf16.xpose.msra.mxu0 0
  %211 = vmatprep.subr.bf16.mxu0 0
  %212 = vmatpush1.bf16.xpose.msra.mxu0 0
  %213 = vmatprep.subr.bf16.mxu0 0
  %214 = vmatpush1.bf16.xpose.msra.mxu0 0
  %215 = vmatprep.subr.bf16.mxu0 0
  %216 = vmatpush1.bf16.xpose.msra.mxu0 %v199
  %217 = vmatprep.subr.bf16.mxu0 0
  %218 = vmatpush2.bf16.xpose.msra.mxu0 0
  %219 = vmatprep.subr.bf16.mxu0 0
  %220 = vmatpush2.bf16.xpose.msra.mxu0 0
  %221 = vmatprep.subr.bf16.mxu0 0
  %222 = vmatpush2.bf16.xpose.msra.mxu0 0
  %223 = vmatprep.subr.bf16.mxu0 0
  %224 = vmatpush2.bf16.xpose.msra.mxu0 0
  %225 = vmatprep.subr.bf16.mxu0 0
  %226 = vmatpush2.bf16.xpose.msra.mxu0 0
  %227 = vmatprep.subr.bf16.mxu0 0
  %228 = vmatpush2.bf16.xpose.msra.mxu0 0
  %229 = vmatprep.subr.bf16.mxu0 0
  %230 = vmatpush2.bf16.xpose.msra.mxu0 0
  %231 = vmatprep.subr.bf16.mxu0 0
  %232 = vmatpush2.bf16.xpose.msra.mxu0 0
  %233 = vmatprep.mubr.bf16.mxu0 0
  %234 = vmatmul.mubr.bf16.gmra.mxu0 %v196
  %v235 = vpop.f32.mrf.mxu0
  %v236 = vadd.f32 %v46, %v235
  %v237 = vpop.f32.mrf.mxu0
  %v238 = vpop.f32.mrf.mxu0
  %v239 = vpop.f32.mrf.mxu0
  %240 = vdwg.mxu0
  %242 = vrot.lane.b32.xlu0 %v140, 96
  %v243 = vpop.permute.xlu0 %242
  %v245 = vsel %vm145, %v140, 0
  %v248 = vsel %vm145, %v243, 0
  %250 = vmatprep.subr.bf16.mxu0 0
  %251 = vmatpush1.bf16.xpose.msra.mxu0 0
  %252 = vmatprep.subr.bf16.mxu0 0
  %253 = vmatpush1.bf16.xpose.msra.mxu0 0
  %254 = vmatprep.subr.bf16.mxu0 0
  %255 = vmatpush1.bf16.xpose.msra.mxu0 0
  %256 = vmatprep.subr.bf16.mxu0 0
  %257 = vmatpush1.bf16.xpose.msra.mxu0 0
  %258 = vmatprep.subr.bf16.mxu0 0
  %259 = vmatpush1.bf16.xpose.msra.mxu0 0
  %260 = vmatprep.subr.bf16.mxu0 0
  %261 = vmatpush1.bf16.xpose.msra.mxu0 0
  %262 = vmatprep.subr.bf16.mxu0 0
  %263 = vmatpush1.bf16.xpose.msra.mxu0 0
  %264 = vmatprep.subr.bf16.mxu0 0
  %265 = vmatpush1.bf16.xpose.msra.mxu0 %v248
  %266 = vmatprep.subr.bf16.mxu0 0
  %267 = vmatpush2.bf16.xpose.msra.mxu0 0
  %268 = vmatprep.subr.bf16.mxu0 0
  %269 = vmatpush2.bf16.xpose.msra.mxu0 0
  %270 = vmatprep.subr.bf16.mxu0 0
  %271 = vmatpush2.bf16.xpose.msra.mxu0 0
  %272 = vmatprep.subr.bf16.mxu0 0
  %273 = vmatpush2.bf16.xpose.msra.mxu0 0
  %274 = vmatprep.subr.bf16.mxu0 0
  %275 = vmatpush2.bf16.xpose.msra.mxu0 0
  %276 = vmatprep.subr.bf16.mxu0 0
  %277 = vmatpush2.bf16.xpose.msra.mxu0 0
  %278 = vmatprep.subr.bf16.mxu0 0
  %279 = vmatpush2.bf16.xpose.msra.mxu0 0
  %280 = vmatprep.subr.bf16.mxu0 0
  %281 = vmatpush2.bf16.xpose.msra.mxu0 0
  %282 = vmatprep.mubr.bf16.mxu0 0
  %283 = vmatmul.mubr.bf16.gmra.mxu0 %v245
  %v284 = vpop.f32.mrf.mxu0
  %v285 = vadd.f32 %v50, %v284
  %v286 = vpop.f32.mrf.mxu0
  %v287 = vpop.f32.mrf.mxu0
  %v288 = vpop.f32.mrf.mxu0
  %289 = vdwg.mxu0
  %291 = vrot.lane.b32.xlu0 %v141, 96
  %v292 = vpop.permute.xlu0 %291
  %v294 = vsel %vm145, %v141, 0
  %v297 = vsel %vm145, %v292, 0
  %299 = vmatprep.subr.bf16.mxu0 0
  %300 = vmatpush1.bf16.xpose.msra.mxu0 0
  %301 = vmatprep.subr.bf16.mxu0 0
  %302 = vmatpush1.bf16.xpose.msra.mxu0 0
  %303 = vmatprep.subr.bf16.mxu0 0
  %304 = vmatpush1.bf16.xpose.msra.mxu0 0
  %305 = vmatprep.subr.bf16.mxu0 0
  %306 = vmatpush1.bf16.xpose.msra.mxu0 0
  %307 = vmatprep.subr.bf16.mxu0 0
  %308 = vmatpush1.bf16.xpose.msra.mxu0 0
  %309 = vmatprep.subr.bf16.mxu0 0
  %310 = vmatpush1.bf16.xpose.msra.mxu0 0
  %311 = vmatprep.subr.bf16.mxu0 0
  %312 = vmatpush1.bf16.xpose.msra.mxu0 0
  %313 = vmatprep.subr.bf16.mxu0 0
  %314 = vmatpush1.bf16.xpose.msra.mxu0 %v297
  %315 = vmatprep.subr.bf16.mxu0 0
  %316 = vmatpush2.bf16.xpose.msra.mxu0 0
  %317 = vmatprep.subr.bf16.mxu0 0
  %318 = vmatpush2.bf16.xpose.msra.mxu0 0
  %319 = vmatprep.subr.bf16.mxu0 0
  %320 = vmatpush2.bf16.xpose.msra.mxu0 0
  %321 = vmatprep.subr.bf16.mxu0 0
  %322 = vmatpush2.bf16.xpose.msra.mxu0 0
  %323 = vmatprep.subr.bf16.mxu0 0
  %324 = vmatpush2.bf16.xpose.msra.mxu0 0
  %325 = vmatprep.subr.bf16.mxu0 0
  %326 = vmatpush2.bf16.xpose.msra.mxu0 0
  %327 = vmatprep.subr.bf16.mxu0 0
  %328 = vmatpush2.bf16.xpose.msra.mxu0 0
  %329 = vmatprep.subr.bf16.mxu0 0
  %330 = vmatpush2.bf16.xpose.msra.mxu0 0
  %331 = vmatprep.mubr.bf16.mxu0 0
  %332 = vmatmul.mubr.bf16.gmra.mxu0 %v294
  %v333 = vpop.f32.mrf.mxu0
  %v334 = vadd.f32 %v54, %v333
  %v335 = vpop.f32.mrf.mxu0
  %v336 = vpop.f32.mrf.mxu0
  %v337 = vpop.f32.mrf.mxu0
  %338 = vdwg.mxu0
  %v339 = vsel %vm145, %v187, -inf
  %340 = vmax.xlane.f32.xlu0 %v339
  %v341 = vpop.xlane.xlu0 %340
  %v342 = vsel %vm145, %v236, -inf
  %343 = vmax.xlane.f32.xlu0 %v342
  %v344 = vpop.xlane.xlu0 %343
  %v345 = vsel %vm145, %v285, -inf
  %346 = vmax.xlane.f32.xlu0 %v345
  %v347 = vpop.xlane.xlu0 %346
  %v348 = vsel %vm145, %v334, -inf
  %349 = vmax.xlane.f32.xlu0 %v348
  %v350 = vpop.xlane.xlu0 %349
  %v351 = vsub.f32 %v187, %v341
  %v352 = vsub.f32 %v236, %v344
  %v353 = vsub.f32 %v285, %v347
  %v354 = vsub.f32 %v334, %v350
  %v355 = vmul.f32 %v351, 1.442695
  %v356 = vpow.pop %v355
  %v357 = vmul.f32 %v352, 1.442695
  %v358 = vpow.pop %v357
  %v359 = vmul.f32 %v353, 1.442695
  %v360 = vpow.pop %v359
  %v361 = vmul.f32 %v354, 1.442695
  %v362 = vpow.pop %v361
  %v363 = vsel %vm145, %v356, 0.0
  %364 = vadd.xlane.f32.xlu0 %v363
  %v365 = vpop.xlane.xlu0 %364
  %v366 = vsel %vm145, %v358, 0.0
  %367 = vadd.xlane.f32.xlu0 %v366
  %v368 = vpop.xlane.xlu0 %367
  %v369 = vsel %vm145, %v360, 0.0
  %370 = vadd.xlane.f32.xlu0 %v369
  %v371 = vpop.xlane.xlu0 %370
  %v372 = vsel %vm145, %v362, 0.0
  %373 = vadd.xlane.f32.xlu0 %v372
  %v374 = vpop.xlane.xlu0 %373
  %v375 = vrcp.pop %v365
  %v376 = vrcp.pop %v368
  %v377 = vrcp.pop %v371
  %v378 = vrcp.pop %v374
  %v379 = vmul.f32 %v356, %v375
  %v380 = vmul.f32 %v358, %v376
  %v381 = vmul.f32 %v360, %v377
  %v382 = vmul.f32 %v362, %v378
  %v383 = vpack.c.bf16 %v379, %v379
  %v384 = vpack.c.bf16 %v380, %v380
  %v385 = vpack.c.bf16 %v381, %v381
  %v386 = vpack.c.bf16 %v382, %v382
  %387 = vrot.lane.b32.xlu0 %v138, 64
  %v388 = vpop.permute.xlu0 %387
  %v390 = vsel %vm145, %v383, 0
  %vm392 = vcmask 1043456
  %v394 = vsel %vm392, %v388, 0
  %396 = vmatprep.subr.bf16.mxu0 0
  %397 = vmatpush1.bf16.msra.mxu0 0
  %398 = vmatprep.subr.bf16.mxu0 0
  %399 = vmatpush1.bf16.msra.mxu0 0
  %400 = vmatprep.subr.bf16.mxu0 0
  %401 = vmatpush1.bf16.msra.mxu0 0
  %402 = vmatprep.subr.bf16.mxu0 0
  %403 = vmatpush1.bf16.msra.mxu0 0
  %404 = vmatprep.subr.bf16.mxu0 0
  %405 = vmatpush1.bf16.msra.mxu0 0
  %406 = vmatprep.subr.bf16.mxu0 0
  %407 = vmatpush1.bf16.msra.mxu0 0
  %408 = vmatprep.subr.bf16.mxu0 0
  %409 = vmatpush1.bf16.msra.mxu0 0
  %410 = vmatprep.subr.bf16.mxu0 0
  %411 = vmatpush1.bf16.msra.mxu0 %v394
  %412 = vmatprep.subr.bf16.mxu0 0
  %413 = vmatpush2.bf16.msra.mxu0 0
  %414 = vmatprep.subr.bf16.mxu0 0
  %415 = vmatpush2.bf16.msra.mxu0 0
  %416 = vmatprep.subr.bf16.mxu0 0
  %417 = vmatpush2.bf16.msra.mxu0 0
  %418 = vmatprep.subr.bf16.mxu0 0
  %419 = vmatpush2.bf16.msra.mxu0 0
  %420 = vmatprep.subr.bf16.mxu0 0
  %421 = vmatpush2.bf16.msra.mxu0 0
  %422 = vmatprep.subr.bf16.mxu0 0
  %423 = vmatpush2.bf16.msra.mxu0 0
  %424 = vmatprep.subr.bf16.mxu0 0
  %425 = vmatpush2.bf16.msra.mxu0 0
  %426 = vmatprep.subr.bf16.mxu0 0
  %427 = vmatpush2.bf16.msra.mxu0 0
  %428 = vmatprep.mubr.bf16.mxu0 0
  %429 = vmatmul.mubr.bf16.gmra.mxu0 %v390
  %v430 = vpop.f32.mrf.mxu0
  %v431 = vadd.f32 0.0, %v430
  %v432 = vpop.f32.mrf.mxu0
  %v433 = vpop.f32.mrf.mxu0
  %v434 = vpop.f32.mrf.mxu0
  %435 = vdwg.mxu0
  %436 = vrot.lane.b32.xlu0 %v139, 64
  %v437 = vpop.permute.xlu0 %436
  %v439 = vsel %vm145, %v384, 0
  %v442 = vsel %vm392, %v437, 0
  %444 = vmatprep.subr.bf16.mxu0 0
  %445 = vmatpush1.bf16.msra.mxu0 0
  %446 = vmatprep.subr.bf16.mxu0 0
  %447 = vmatpush1.bf16.msra.mxu0 0
  %448 = vmatprep.subr.bf16.mxu0 0
  %449 = vmatpush1.bf16.msra.mxu0 0
  %450 = vmatprep.subr.bf16.mxu0 0
  %451 = vmatpush1.bf16.msra.mxu0 0
  %452 = vmatprep.subr.bf16.mxu0 0
  %453 = vmatpush1.bf16.msra.mxu0 0
  %454 = vmatprep.subr.bf16.mxu0 0
  %455 = vmatpush1.bf16.msra.mxu0 0
  %456 = vmatprep.subr.bf16.mxu0 0
  %457 = vmatpush1.bf16.msra.mxu0 0
  %458 = vmatprep.subr.bf16.mxu0 0
  %459 = vmatpush1.bf16.msra.mxu0 %v442
  %460 = vmatprep.subr.bf16.mxu0 0
  %461 = vmatpush2.bf16.msra.mxu0 0
  %462 = vmatprep.subr.bf16.mxu0 0
  %463 = vmatpush2.bf16.msra.mxu0 0
  %464 = vmatprep.subr.bf16.mxu0 0
  %465 = vmatpush2.bf16.msra.mxu0 0
  %466 = vmatprep.subr.bf16.mxu0 0
  %467 = vmatpush2.bf16.msra.mxu0 0
  %468 = vmatprep.subr.bf16.mxu0 0
  %469 = vmatpush2.bf16.msra.mxu0 0
  %470 = vmatprep.subr.bf16.mxu0 0
  %471 = vmatpush2.bf16.msra.mxu0 0
  %472 = vmatprep.subr.bf16.mxu0 0
  %473 = vmatpush2.bf16.msra.mxu0 0
  %474 = vmatprep.subr.bf16.mxu0 0
  %475 = vmatpush2.bf16.msra.mxu0 0
  %476 = vmatprep.mubr.bf16.mxu0 0
  %477 = vmatmul.mubr.bf16.gmra.mxu0 %v439
  %v478 = vpop.f32.mrf.mxu0
  %v479 = vadd.f32 0.0, %v478
  %v480 = vpop.f32.mrf.mxu0
  %v481 = vpop.f32.mrf.mxu0
  %v482 = vpop.f32.mrf.mxu0
  %483 = vdwg.mxu0
  %484 = vrot.lane.b32.xlu0 %v140, 64
  %v485 = vpop.permute.xlu0 %484
  %v487 = vsel %vm145, %v385, 0
  %v490 = vsel %vm392, %v485, 0
  %492 = vmatprep.subr.bf16.mxu0 0
  %493 = vmatpush1.bf16.msra.mxu0 0
  %494 = vmatprep.subr.bf16.mxu0 0
  %495 = vmatpush1.bf16.msra.mxu0 0
  %496 = vmatprep.subr.bf16.mxu0 0
  %497 = vmatpush1.bf16.msra.mxu0 0
  %498 = vmatprep.subr.bf16.mxu0 0
  %499 = vmatpush1.bf16.msra.mxu0 0
  %500 = vmatprep.subr.bf16.mxu0 0
  %501 = vmatpush1.bf16.msra.mxu0 0
  %502 = vmatprep.subr.bf16.mxu0 0
  %503 = vmatpush1.bf16.msra.mxu0 0
  %504 = vmatprep.subr.bf16.mxu0 0
  %505 = vmatpush1.bf16.msra.mxu0 0
  %506 = vmatprep.subr.bf16.mxu0 0
  %507 = vmatpush1.bf16.msra.mxu0 %v490
  %508 = vmatprep.subr.bf16.mxu0 0
  %509 = vmatpush2.bf16.msra.mxu0 0
  %510 = vmatprep.subr.bf16.mxu0 0
  %511 = vmatpush2.bf16.msra.mxu0 0
  %512 = vmatprep.subr.bf16.mxu0 0
  %513 = vmatpush2.bf16.msra.mxu0 0
  %514 = vmatprep.subr.bf16.mxu0 0
  %515 = vmatpush2.bf16.msra.mxu0 0
  %516 = vmatprep.subr.bf16.mxu0 0
  %517 = vmatpush2.bf16.msra.mxu0 0
  %518 = vmatprep.subr.bf16.mxu0 0
  %519 = vmatpush2.bf16.msra.mxu0 0
  %520 = vmatprep.subr.bf16.mxu0 0
  %521 = vmatpush2.bf16.msra.mxu0 0
  %522 = vmatprep.subr.bf16.mxu0 0
  %523 = vmatpush2.bf16.msra.mxu0 0
  %524 = vmatprep.mubr.bf16.mxu0 0
  %525 = vmatmul.mubr.bf16.gmra.mxu0 %v487
  %v526 = vpop.f32.mrf.mxu0
  %v527 = vadd.f32 0.0, %v526
  %v528 = vpop.f32.mrf.mxu0
  %v529 = vpop.f32.mrf.mxu0
  %v530 = vpop.f32.mrf.mxu0
  %531 = vdwg.mxu0
  %532 = vrot.lane.b32.xlu0 %v141, 64
  %v533 = vpop.permute.xlu0 %532
  %v535 = vsel %vm145, %v386, 0
  %v538 = vsel %vm392, %v533, 0
  %540 = vmatprep.subr.bf16.mxu0 0
  %541 = vmatpush1.bf16.msra.mxu0 0
  %542 = vmatprep.subr.bf16.mxu0 0
  %543 = vmatpush1.bf16.msra.mxu0 0
  %544 = vmatprep.subr.bf16.mxu0 0
  %545 = vmatpush1.bf16.msra.mxu0 0
  %546 = vmatprep.subr.bf16.mxu0 0
  %547 = vmatpush1.bf16.msra.mxu0 0
  %548 = vmatprep.subr.bf16.mxu0 0
  %549 = vmatpush1.bf16.msra.mxu0 0
  %550 = vmatprep.subr.bf16.mxu0 0
  %551 = vmatpush1.bf16.msra.mxu0 0
  %552 = vmatprep.subr.bf16.mxu0 0
  %553 = vmatpush1.bf16.msra.mxu0 0
  %554 = vmatprep.subr.bf16.mxu0 0
  %555 = vmatpush1.bf16.msra.mxu0 %v538
  %556 = vmatprep.subr.bf16.mxu0 0
  %557 = vmatpush2.bf16.msra.mxu0 0
  %558 = vmatprep.subr.bf16.mxu0 0
  %559 = vmatpush2.bf16.msra.mxu0 0
  %560 = vmatprep.subr.bf16.mxu0 0
  %561 = vmatpush2.bf16.msra.mxu0 0
  %562 = vmatprep.subr.bf16.mxu0 0
  %563 = vmatpush2.bf16.msra.mxu0 0
  %564 = vmatprep.subr.bf16.mxu0 0
  %565 = vmatpush2.bf16.msra.mxu0 0
  %566 = vmatprep.subr.bf16.mxu0 0
  %567 = vmatpush2.bf16.msra.mxu0 0
  %568 = vmatprep.subr.bf16.mxu0 0
  %569 = vmatpush2.bf16.msra.mxu0 0
  %570 = vmatprep.subr.bf16.mxu0 0
  %571 = vmatpush2.bf16.msra.mxu0 0
  %572 = vmatprep.mubr.bf16.mxu0 0
  %573 = vmatmul.mubr.bf16.gmra.mxu0 %v535
  %v574 = vpop.f32.mrf.mxu0
  %v575 = vadd.f32 0.0, %v574
  %v576 = vpop.f32.mrf.mxu0
  %v577 = vpop.f32.mrf.mxu0
  %v578 = vpop.f32.mrf.mxu0
  %579 = vdwg.mxu0
  %580 = vrot.lane.b32.xlu0 %v138, 120
  %v581 = vpop.permute.xlu0 %580
  %582 = vrot.lane.b32.xlu0 %v138, 88
  %v583 = vpop.permute.xlu0 %582
  %v585 = vsel %vm145, %v581, 0
  %v588 = vsel %vm145, %v583, 0
  %590 = vmatprep.subr.bf16.mxu0 0
  %591 = vmatpush1.bf16.xpose.msra.mxu0 0
  %592 = vmatprep.subr.bf16.mxu0 0
  %593 = vmatpush1.bf16.xpose.msra.mxu0 0
  %594 = vmatprep.subr.bf16.mxu0 0
  %595 = vmatpush1.bf16.xpose.msra.mxu0 0
  %596 = vmatprep.subr.bf16.mxu0 0
  %597 = vmatpush1.bf16.xpose.msra.mxu0 0
  %598 = vmatprep.subr.bf16.mxu0 0
  %599 = vmatpush1.bf16.xpose.msra.mxu0 0
  %600 = vmatprep.subr.bf16.mxu0 0
  %601 = vmatpush1.bf16.xpose.msra.mxu0 0
  %602 = vmatprep.subr.bf16.mxu0 0
  %603 = vmatpush1.bf16.xpose.msra.mxu0 0
  %604 = vmatprep.subr.bf16.mxu0 0
  %605 = vmatpush1.bf16.xpose.msra.mxu0 %v588
  %606 = vmatprep.subr.bf16.mxu0 0
  %607 = vmatpush2.bf16.xpose.msra.mxu0 0
  %608 = vmatprep.subr.bf16.mxu0 0
  %609 = vmatpush2.bf16.xpose.msra.mxu0 0
  %610 = vmatprep.subr.bf16.mxu0 0
  %611 = vmatpush2.bf16.xpose.msra.mxu0 0
  %612 = vmatprep.subr.bf16.mxu0 0
  %613 = vmatpush2.bf16.xpose.msra.mxu0 0
  %614 = vmatprep.subr.bf16.mxu0 0
  %615 = vmatpush2.bf16.xpose.msra.mxu0 0
  %616 = vmatprep.subr.bf16.mxu0 0
  %617 = vmatpush2.bf16.xpose.msra.mxu0 0
  %618 = vmatprep.subr.bf16.mxu0 0
  %619 = vmatpush2.bf16.xpose.msra.mxu0 0
  %620 = vmatprep.subr.bf16.mxu0 0
  %621 = vmatpush2.bf16.xpose.msra.mxu0 0
  %622 = vmatprep.mubr.bf16.mxu0 0
  %623 = vmatmul.mubr.bf16.gmra.mxu0 %v585
  %v624 = vpop.f32.mrf.mxu0
  %v625 = vadd.f32 %v42, %v624
  %v626 = vpop.f32.mrf.mxu0
  %v627 = vpop.f32.mrf.mxu0
  %v628 = vpop.f32.mrf.mxu0
  %629 = vdwg.mxu0
  %630 = vrot.lane.b32.xlu0 %v139, 120
  %v631 = vpop.permute.xlu0 %630
  %632 = vrot.lane.b32.xlu0 %v139, 88
  %v633 = vpop.permute.xlu0 %632
  %v635 = vsel %vm145, %v631, 0
  %v638 = vsel %vm145, %v633, 0
  %640 = vmatprep.subr.bf16.mxu0 0
  %641 = vmatpush1.bf16.xpose.msra.mxu0 0
  %642 = vmatprep.subr.bf16.mxu0 0
  %643 = vmatpush1.bf16.xpose.msra.mxu0 0
  %644 = vmatprep.subr.bf16.mxu0 0
  %645 = vmatpush1.bf16.xpose.msra.mxu0 0
  %646 = vmatprep.subr.bf16.mxu0 0
  %647 = vmatpush1.bf16.xpose.msra.mxu0 0
  %648 = vmatprep.subr.bf16.mxu0 0
  %649 = vmatpush1.bf16.xpose.msra.mxu0 0
  %650 = vmatprep.subr.bf16.mxu0 0
  %651 = vmatpush1.bf16.xpose.msra.mxu0 0
  %652 = vmatprep.subr.bf16.mxu0 0
  %653 = vmatpush1.bf16.xpose.msra.mxu0 0
  %654 = vmatprep.subr.bf16.mxu0 0
  %655 = vmatpush1.bf16.xpose.msra.mxu0 %v638
  %656 = vmatprep.subr.bf16.mxu0 0
  %657 = vmatpush2.bf16.xpose.msra.mxu0 0
  %658 = vmatprep.subr.bf16.mxu0 0
  %659 = vmatpush2.bf16.xpose.msra.mxu0 0
  %660 = vmatprep.subr.bf16.mxu0 0
  %661 = vmatpush2.bf16.xpose.msra.mxu0 0
  %662 = vmatprep.subr.bf16.mxu0 0
  %663 = vmatpush2.bf16.xpose.msra.mxu0 0
  %664 = vmatprep.subr.bf16.mxu0 0
  %665 = vmatpush2.bf16.xpose.msra.mxu0 0
  %666 = vmatprep.subr.bf16.mxu0 0
  %667 = vmatpush2.bf16.xpose.msra.mxu0 0
  %668 = vmatprep.subr.bf16.mxu0 0
  %669 = vmatpush2.bf16.xpose.msra.mxu0 0
  %670 = vmatprep.subr.bf16.mxu0 0
  %671 = vmatpush2.bf16.xpose.msra.mxu0 0
  %672 = vmatprep.mubr.bf16.mxu0 0
  %673 = vmatmul.mubr.bf16.gmra.mxu0 %v635
  %v674 = vpop.f32.mrf.mxu0
  %v675 = vadd.f32 %v46, %v674
  %v676 = vpop.f32.mrf.mxu0
  %v677 = vpop.f32.mrf.mxu0
  %v678 = vpop.f32.mrf.mxu0
  %679 = vdwg.mxu0
  %680 = vrot.lane.b32.xlu0 %v140, 120
  %v681 = vpop.permute.xlu0 %680
  %682 = vrot.lane.b32.xlu0 %v140, 88
  %v683 = vpop.permute.xlu0 %682
  %v685 = vsel %vm145, %v681, 0
  %v688 = vsel %vm145, %v683, 0
  %690 = vmatprep.subr.bf16.mxu0 0
  %691 = vmatpush1.bf16.xpose.msra.mxu0 0
  %692 = vmatprep.subr.bf16.mxu0 0
  %693 = vmatpush1.bf16.xpose.msra.mxu0 0
  %694 = vmatprep.subr.bf16.mxu0 0
  %695 = vmatpush1.bf16.xpose.msra.mxu0 0
  %696 = vmatprep.subr.bf16.mxu0 0
  %697 = vmatpush1.bf16.xpose.msra.mxu0 0
  %698 = vmatprep.subr.bf16.mxu0 0
  %699 = vmatpush1.bf16.xpose.msra.mxu0 0
  %700 = vmatprep.subr.bf16.mxu0 0
  %701 = vmatpush1.bf16.xpose.msra.mxu0 0
  %702 = vmatprep.subr.bf16.mxu0 0
  %703 = vmatpush1.bf16.xpose.msra.mxu0 0
  %704 = vmatprep.subr.bf16.mxu0 0
  %705 = vmatpush1.bf16.xpose.msra.mxu0 %v688
  %706 = vmatprep.subr.bf16.mxu0 0
  %707 = vmatpush2.bf16.xpose.msra.mxu0 0
  %708 = vmatprep.subr.bf16.mxu0 0
  %709 = vmatpush2.bf16.xpose.msra.mxu0 0
  %710 = vmatprep.subr.bf16.mxu0 0
  %711 = vmatpush2.bf16.xpose.msra.mxu0 0
  %712 = vmatprep.subr.bf16.mxu0 0
  %713 = vmatpush2.bf16.xpose.msra.mxu0 0
  %714 = vmatprep.subr.bf16.mxu0 0
  %715 = vmatpush2.bf16.xpose.msra.mxu0 0
  %716 = vmatprep.subr.bf16.mxu0 0
  %717 = vmatpush2.bf16.xpose.msra.mxu0 0
  %718 = vmatprep.subr.bf16.mxu0 0
  %719 = vmatpush2.bf16.xpose.msra.mxu0 0
  %720 = vmatprep.subr.bf16.mxu0 0
  %721 = vmatpush2.bf16.xpose.msra.mxu0 0
  %722 = vmatprep.mubr.bf16.mxu0 0
  %723 = vmatmul.mubr.bf16.gmra.mxu0 %v685
  %v724 = vpop.f32.mrf.mxu0
  %v725 = vadd.f32 %v50, %v724
  %v726 = vpop.f32.mrf.mxu0
  %v727 = vpop.f32.mrf.mxu0
  %v728 = vpop.f32.mrf.mxu0
  %729 = vdwg.mxu0
  %730 = vrot.lane.b32.xlu0 %v141, 120
  %v731 = vpop.permute.xlu0 %730
  %732 = vrot.lane.b32.xlu0 %v141, 88
  %v733 = vpop.permute.xlu0 %732
  %v735 = vsel %vm145, %v731, 0
  %v738 = vsel %vm145, %v733, 0
  %740 = vmatprep.subr.bf16.mxu0 0
  %741 = vmatpush1.bf16.xpose.msra.mxu0 0
  %742 = vmatprep.subr.bf16.mxu0 0
  %743 = vmatpush1.bf16.xpose.msra.mxu0 0
  %744 = vmatprep.subr.bf16.mxu0 0
  %745 = vmatpush1.bf16.xpose.msra.mxu0 0
  %746 = vmatprep.subr.bf16.mxu0 0
  %747 = vmatpush1.bf16.xpose.msra.mxu0 0
  %748 = vmatprep.subr.bf16.mxu0 0
  %749 = vmatpush1.bf16.xpose.msra.mxu0 0
  %750 = vmatprep.subr.bf16.mxu0 0
  %751 = vmatpush1.bf16.xpose.msra.mxu0 0
  %752 = vmatprep.subr.bf16.mxu0 0
  %753 = vmatpush1.bf16.xpose.msra.mxu0 0
  %754 = vmatprep.subr.bf16.mxu0 0
  %755 = vmatpush1.bf16.xpose.msra.mxu0 %v738
  %756 = vmatprep.subr.bf16.mxu0 0
  %757 = vmatpush2.bf16.xpose.msra.mxu0 0
  %758 = vmatprep.subr.bf16.mxu0 0
  %759 = vmatpush2.bf16.xpose.msra.mxu0 0
  %760 = vmatprep.subr.bf16.mxu0 0
  %761 = vmatpush2.bf16.xpose.msra.mxu0 0
  %762 = vmatprep.subr.bf16.mxu0 0
  %763 = vmatpush2.bf16.xpose.msra.mxu0 0
  %764 = vmatprep.subr.bf16.mxu0 0
  %765 = vmatpush2.bf16.xpose.msra.mxu0 0
  %766 = vmatprep.subr.bf16.mxu0 0
  %767 = vmatpush2.bf16.xpose.msra.mxu0 0
  %768 = vmatprep.subr.bf16.mxu0 0
  %769 = vmatpush2.bf16.xpose.msra.mxu0 0
  %770 = vmatprep.subr.bf16.mxu0 0
  %771 = vmatpush2.bf16.xpose.msra.mxu0 0
  %772 = vmatprep.mubr.bf16.mxu0 0
  %773 = vmatmul.mubr.bf16.gmra.mxu0 %v735
  %v774 = vpop.f32.mrf.mxu0
  %v775 = vadd.f32 %v54, %v774
  %v776 = vpop.f32.mrf.mxu0
  %v777 = vpop.f32.mrf.mxu0
  %v778 = vpop.f32.mrf.mxu0
  %779 = vdwg.mxu0
  %v780 = vsel %vm145, %v625, -inf
  %781 = vmax.xlane.f32.xlu0 %v780
  %v782 = vpop.xlane.xlu0 %781
  %v783 = vsel %vm145, %v675, -inf
  %784 = vmax.xlane.f32.xlu0 %v783
  %v785 = vpop.xlane.xlu0 %784
  %v786 = vsel %vm145, %v725, -inf
  %787 = vmax.xlane.f32.xlu0 %v786
  %v788 = vpop.xlane.xlu0 %787
  %v789 = vsel %vm145, %v775, -inf
  %790 = vmax.xlane.f32.xlu0 %v789
  %v791 = vpop.xlane.xlu0 %790
  %v792 = vsub.f32 %v625, %v782
  %v793 = vsub.f32 %v675, %v785
  %v794 = vsub.f32 %v725, %v788
  %v795 = vsub.f32 %v775, %v791
  %v796 = vmul.f32 %v792, 1.442695
  %v797 = vpow.pop %v796
  %v798 = vmul.f32 %v793, 1.442695
  %v799 = vpow.pop %v798
  %v800 = vmul.f32 %v794, 1.442695
  %v801 = vpow.pop %v800
  %v802 = vmul.f32 %v795, 1.442695
  %v803 = vpow.pop %v802
  %v804 = vsel %vm145, %v797, 0.0
  %805 = vadd.xlane.f32.xlu0 %v804
  %v806 = vpop.xlane.xlu0 %805
  %v807 = vsel %vm145, %v799, 0.0
  %808 = vadd.xlane.f32.xlu0 %v807
  %v809 = vpop.xlane.xlu0 %808
  %v810 = vsel %vm145, %v801, 0.0
  %811 = vadd.xlane.f32.xlu0 %v810
  %v812 = vpop.xlane.xlu0 %811
  %v813 = vsel %vm145, %v803, 0.0
  %814 = vadd.xlane.f32.xlu0 %v813
  %v815 = vpop.xlane.xlu0 %814
  %v816 = vrcp.pop %v806
  %v817 = vrcp.pop %v809
  %v818 = vrcp.pop %v812
  %v819 = vrcp.pop %v815
  %v820 = vmul.f32 %v797, %v816
  %v821 = vmul.f32 %v799, %v817
  %v822 = vmul.f32 %v801, %v818
  %v823 = vmul.f32 %v803, %v819
  %v824 = vpack.c.bf16 %v820, %v820
  %v825 = vpack.c.bf16 %v821, %v821
  %v826 = vpack.c.bf16 %v822, %v822
  %v827 = vpack.c.bf16 %v823, %v823
  %828 = vrot.lane.b32.xlu0 %v138, 56
  %v829 = vpop.permute.xlu0 %828
  %v831 = vsel %vm145, %v824, 0
  %v834 = vsel %vm392, %v829, 0
  %836 = vmatprep.subr.bf16.mxu0 0
  %837 = vmatpush1.bf16.msra.mxu0 0
  %838 = vmatprep.subr.bf16.mxu0 0
  %839 = vmatpush1.bf16.msra.mxu0 0
  %840 = vmatprep.subr.bf16.mxu0 0
  %841 = vmatpush1.bf16.msra.mxu0 0
  %842 = vmatprep.subr.bf16.mxu0 0
  %843 = vmatpush1.bf16.msra.mxu0 0
  %844 = vmatprep.subr.bf16.mxu0 0
  %845 = vmatpush1.bf16.msra.mxu0 0
  %846 = vmatprep.subr.bf16.mxu0 0
  %847 = vmatpush1.bf16.msra.mxu0 0
  %848 = vmatprep.subr.bf16.mxu0 0
  %849 = vmatpush1.bf16.msra.mxu0 0
  %850 = vmatprep.subr.bf16.mxu0 0
  %851 = vmatpush1.bf16.msra.mxu0 %v834
  %852 = vmatprep.subr.bf16.mxu0 0
  %853 = vmatpush2.bf16.msra.mxu0 0
  %854 = vmatprep.subr.bf16.mxu0 0
  %855 = vmatpush2.bf16.msra.mxu0 0
  %856 = vmatprep.subr.bf16.mxu0 0
  %857 = vmatpush2.bf16.msra.mxu0 0
  %858 = vmatprep.subr.bf16.mxu0 0
  %859 = vmatpush2.bf16.msra.mxu0 0
  %860 = vmatprep.subr.bf16.mxu0 0
  %861 = vmatpush2.bf16.msra.mxu0 0
  %862 = vmatprep.subr.bf16.mxu0 0
  %863 = vmatpush2.bf16.msra.mxu0 0
  %864 = vmatprep.subr.bf16.mxu0 0
  %865 = vmatpush2.bf16.msra.mxu0 0
  %866 = vmatprep.subr.bf16.mxu0 0
  %867 = vmatpush2.bf16.msra.mxu0 0
  %868 = vmatprep.mubr.bf16.mxu0 0
  %869 = vmatmul.mubr.bf16.gmra.mxu0 %v831
  %v870 = vpop.f32.mrf.mxu0
  %v871 = vadd.f32 0.0, %v870
  %v872 = vpop.f32.mrf.mxu0
  %v873 = vpop.f32.mrf.mxu0
  %v874 = vpop.f32.mrf.mxu0
  %875 = vdwg.mxu0
  %876 = vrot.lane.b32.xlu0 %v139, 56
  %v877 = vpop.permute.xlu0 %876
  %v879 = vsel %vm145, %v825, 0
  %v882 = vsel %vm392, %v877, 0
  %884 = vmatprep.subr.bf16.mxu0 0
  %885 = vmatpush1.bf16.msra.mxu0 0
  %886 = vmatprep.subr.bf16.mxu0 0
  %887 = vmatpush1.bf16.msra.mxu0 0
  %888 = vmatprep.subr.bf16.mxu0 0
  %889 = vmatpush1.bf16.msra.mxu0 0
  %890 = vmatprep.subr.bf16.mxu0 0
  %891 = vmatpush1.bf16.msra.mxu0 0
  %892 = vmatprep.subr.bf16.mxu0 0
  %893 = vmatpush1.bf16.msra.mxu0 0
  %894 = vmatprep.subr.bf16.mxu0 0
  %895 = vmatpush1.bf16.msra.mxu0 0
  %896 = vmatprep.subr.bf16.mxu0 0
  %897 = vmatpush1.bf16.msra.mxu0 0
  %898 = vmatprep.subr.bf16.mxu0 0
  %899 = vmatpush1.bf16.msra.mxu0 %v882
  %900 = vmatprep.subr.bf16.mxu0 0
  %901 = vmatpush2.bf16.msra.mxu0 0
  %902 = vmatprep.subr.bf16.mxu0 0
  %903 = vmatpush2.bf16.msra.mxu0 0
  %904 = vmatprep.subr.bf16.mxu0 0
  %905 = vmatpush2.bf16.msra.mxu0 0
  %906 = vmatprep.subr.bf16.mxu0 0
  %907 = vmatpush2.bf16.msra.mxu0 0
  %908 = vmatprep.subr.bf16.mxu0 0
  %909 = vmatpush2.bf16.msra.mxu0 0
  %910 = vmatprep.subr.bf16.mxu0 0
  %911 = vmatpush2.bf16.msra.mxu0 0
  %912 = vmatprep.subr.bf16.mxu0 0
  %913 = vmatpush2.bf16.msra.mxu0 0
  %914 = vmatprep.subr.bf16.mxu0 0
  %915 = vmatpush2.bf16.msra.mxu0 0
  %916 = vmatprep.mubr.bf16.mxu0 0
  %917 = vmatmul.mubr.bf16.gmra.mxu0 %v879
  %v918 = vpop.f32.mrf.mxu0
  %v919 = vadd.f32 0.0, %v918
  %v920 = vpop.f32.mrf.mxu0
  %v921 = vpop.f32.mrf.mxu0
  %v922 = vpop.f32.mrf.mxu0
  %923 = vdwg.mxu0
  %924 = vrot.lane.b32.xlu0 %v140, 56
  %v925 = vpop.permute.xlu0 %924
  %v927 = vsel %vm145, %v826, 0
  %v930 = vsel %vm392, %v925, 0
  %932 = vmatprep.subr.bf16.mxu0 0
  %933 = vmatpush1.bf16.msra.mxu0 0
  %934 = vmatprep.subr.bf16.mxu0 0
  %935 = vmatpush1.bf16.msra.mxu0 0
  %936 = vmatprep.subr.bf16.mxu0 0
  %937 = vmatpush1.bf16.msra.mxu0 0
  %938 = vmatprep.subr.bf16.mxu0 0
  %939 = vmatpush1.bf16.msra.mxu0 0
  %940 = vmatprep.subr.bf16.mxu0 0
  %941 = vmatpush1.bf16.msra.mxu0 0
  %942 = vmatprep.subr.bf16.mxu0 0
  %943 = vmatpush1.bf16.msra.mxu0 0
  %944 = vmatprep.subr.bf16.mxu0 0
  %945 = vmatpush1.bf16.msra.mxu0 0
  %946 = vmatprep.subr.bf16.mxu0 0
  %947 = vmatpush1.bf16.msra.mxu0 %v930
  %948 = vmatprep.subr.bf16.mxu0 0
  %949 = vmatpush2.bf16.msra.mxu0 0
  %950 = vmatprep.subr.bf16.mxu0 0
  %951 = vmatpush2.bf16.msra.mxu0 0
  %952 = vmatprep.subr.bf16.mxu0 0
  %953 = vmatpush2.bf16.msra.mxu0 0
  %954 = vmatprep.subr.bf16.mxu0 0
  %955 = vmatpush2.bf16.msra.mxu0 0
  %956 = vmatprep.subr.bf16.mxu0 0
  %957 = vmatpush2.bf16.msra.mxu0 0
  %958 = vmatprep.subr.bf16.mxu0 0
  %959 = vmatpush2.bf16.msra.mxu0 0
  %960 = vmatprep.subr.bf16.mxu0 0
  %961 = vmatpush2.bf16.msra.mxu0 0
  %962 = vmatprep.subr.bf16.mxu0 0
  %963 = vmatpush2.bf16.msra.mxu0 0
  %964 = vmatprep.mubr.bf16.mxu0 0
  %965 = vmatmul.mubr.bf16.gmra.mxu0 %v927
  %v966 = vpop.f32.mrf.mxu0
  %v967 = vadd.f32 0.0, %v966
  %v968 = vpop.f32.mrf.mxu0
  %v969 = vpop.f32.mrf.mxu0
  %v970 = vpop.f32.mrf.mxu0
  %971 = vdwg.mxu0
  %972 = vrot.lane.b32.xlu0 %v141, 56
  %v973 = vpop.permute.xlu0 %972
  %v975 = vsel %vm145, %v827, 0
  %v978 = vsel %vm392, %v973, 0
  %980 = vmatprep.subr.bf16.mxu0 0
  %981 = vmatpush1.bf16.msra.mxu0 0
  %982 = vmatprep.subr.bf16.mxu0 0
  %983 = vmatpush1.bf16.msra.mxu0 0
  %984 = vmatprep.subr.bf16.mxu0 0
  %985 = vmatpush1.bf16.msra.mxu0 0
  %986 = vmatprep.subr.bf16.mxu0 0
  %987 = vmatpush1.bf16.msra.mxu0 0
  %988 = vmatprep.subr.bf16.mxu0 0
  %989 = vmatpush1.bf16.msra.mxu0 0
  %990 = vmatprep.subr.bf16.mxu0 0
  %991 = vmatpush1.bf16.msra.mxu0 0
  %992 = vmatprep.subr.bf16.mxu0 0
  %993 = vmatpush1.bf16.msra.mxu0 0
  %994 = vmatprep.subr.bf16.mxu0 0
  %995 = vmatpush1.bf16.msra.mxu0 %v978
  %996 = vmatprep.subr.bf16.mxu0 0
  %997 = vmatpush2.bf16.msra.mxu0 0
  %998 = vmatprep.subr.bf16.mxu0 0
  %999 = vmatpush2.bf16.msra.mxu0 0
  %1000 = vmatprep.subr.bf16.mxu0 0
  %1001 = vmatpush2.bf16.msra.mxu0 0
  %1002 = vmatprep.subr.bf16.mxu0 0
  %1003 = vmatpush2.bf16.msra.mxu0 0
  %1004 = vmatprep.subr.bf16.mxu0 0
  %1005 = vmatpush2.bf16.msra.mxu0 0
  %1006 = vmatprep.subr.bf16.mxu0 0
  %1007 = vmatpush2.bf16.msra.mxu0 0
  %1008 = vmatprep.subr.bf16.mxu0 0
  %1009 = vmatpush2.bf16.msra.mxu0 0
  %1010 = vmatprep.subr.bf16.mxu0 0
  %1011 = vmatpush2.bf16.msra.mxu0 0
  %1012 = vmatprep.mubr.bf16.mxu0 0
  %1013 = vmatmul.mubr.bf16.gmra.mxu0 %v975
  %v1014 = vpop.f32.mrf.mxu0
  %v1015 = vadd.f32 0.0, %v1014
  %v1016 = vpop.f32.mrf.mxu0
  %v1017 = vpop.f32.mrf.mxu0
  %v1018 = vpop.f32.mrf.mxu0
  %1019 = vdwg.mxu0
  %1020 = vrot.lane.b32.xlu0 %v138, 112
  %v1021 = vpop.permute.xlu0 %1020
  %1022 = vrot.lane.b32.xlu0 %v138, 80
  %v1023 = vpop.permute.xlu0 %1022
  %v1025 = vsel %vm145, %v1021, 0
  %v1028 = vsel %vm145, %v1023, 0
  %1030 = vmatprep.subr.bf16.mxu0 0
  %1031 = vmatpush1.bf16.xpose.msra.mxu0 0
  %1032 = vmatprep.subr.bf16.mxu0 0
  %1033 = vmatpush1.bf16.xpose.msra.mxu0 0
  %1034 = vmatprep.subr.bf16.mxu0 0
  %1035 = vmatpush1.bf16.xpose.msra.mxu0 0
  %1036 = vmatprep.subr.bf16.mxu0 0
  %1037 = vmatpush1.bf16.xpose.msra.mxu0 0
  %1038 = vmatprep.subr.bf16.mxu0 0
  %1039 = vmatpush1.bf16.xpose.msra.mxu0 0
  %1040 = vmatprep.subr.bf16.mxu0 0
  %1041 = vmatpush1.bf16.xpose.msra.mxu0 0
  %1042 = vmatprep.subr.bf16.mxu0 0
  %1043 = vmatpush1.bf16.xpose.msra.mxu0 0
  %1044 = vmatprep.subr.bf16.mxu0 0
  %1045 = vmatpush1.bf16.xpose.msra.mxu0 %v1028
  %1046 = vmatprep.subr.bf16.mxu0 0
  %1047 = vmatpush2.bf16.xpose.msra.mxu0 0
  %1048 = vmatprep.subr.bf16.mxu0 0
  %1049 = vmatpush2.bf16.xpose.msra.mxu0 0
  %1050 = vmatprep.subr.bf16.mxu0 0
  %1051 = vmatpush2.bf16.xpose.msra.mxu0 0
  %1052 = vmatprep.subr.bf16.mxu0 0
  %1053 = vmatpush2.bf16.xpose.msra.mxu0 0
  %1054 = vmatprep.subr.bf16.mxu0 0
  %1055 = vmatpush2.bf16.xpose.msra.mxu0 0
  %1056 = vmatprep.subr.bf16.mxu0 0
  %1057 = vmatpush2.bf16.xpose.msra.mxu0 0
  %1058 = vmatprep.subr.bf16.mxu0 0
  %1059 = vmatpush2.bf16.xpose.msra.mxu0 0
  %1060 = vmatprep.subr.bf16.mxu0 0
  %1061 = vmatpush2.bf16.xpose.msra.mxu0 0
  %1062 = vmatprep.mubr.bf16.mxu0 0
  %1063 = vmatmul.mubr.bf16.gmra.mxu0 %v1025
  %v1064 = vpop.f32.mrf.mxu0
  %v1065 = vadd.f32 %v42, %v1064
  %v1066 = vpop.f32.mrf.mxu0
  %v1067 = vpop.f32.mrf.mxu0
  %v1068 = vpop.f32.mrf.mxu0
  %1069 = vdwg.mxu0
  %1070 = vrot.lane.b32.xlu0 %v139, 112
  %v1071 = vpop.permute.xlu0 %1070
  %1072 = vrot.lane.b32.xlu0 %v139, 80
  %v1073 = vpop.permute.xlu0 %1072
  %v1075 = vsel %vm145, %v1071, 0
  %v1078 = vsel %vm145, %v1073, 0
  %1080 = vmatprep.subr.bf16.mxu0 0
  %1081 = vmatpush1.bf16.xpose.msra.mxu0 0
  %1082 = vmatprep.subr.bf16.mxu0 0
  %1083 = vmatpush1.bf16.xpose.msra.mxu0 0
  %1084 = vmatprep.subr.bf16.mxu0 0
  %1085 = vmatpush1.bf16.xpose.msra.mxu0 0
  %1086 = vmatprep.subr.bf16.mxu0 0
  %1087 = vmatpush1.bf16.xpose.msra.mxu0 0
  %1088 = vmatprep.subr.bf16.mxu0 0
  %1089 = vmatpush1.bf16.xpose.msra.mxu0 0
  %1090 = vmatprep.subr.bf16.mxu0 0
  %1091 = vmatpush1.bf16.xpose.msra.mxu0 0
  %1092 = vmatprep.subr.bf16.mxu0 0
  %1093 = vmatpush1.bf16.xpose.msra.mxu0 0
  %1094 = vmatprep.subr.bf16.mxu0 0
  %1095 = vmatpush1.bf16.xpose.msra.mxu0 %v1078
  %1096 = vmatprep.subr.bf16.mxu0 0
  %1097 = vmatpush2.bf16.xpose.msra.mxu0 0
  %1098 = vmatprep.subr.bf16.mxu0 0
  %1099 = vmatpush2.bf16.xpose.msra.mxu0 0
  %1100 = vmatprep.subr.bf16.mxu0 0
  %1101 = vmatpush2.bf16.xpose.msra.mxu0 0
  %1102 = vmatprep.subr.bf16.mxu0 0
  %1103 = vmatpush2.bf16.xpose.msra.mxu0 0
  %1104 = vmatprep.subr.bf16.mxu0 0
  %1105 = vmatpush2.bf16.xpose.msra.mxu0 0
  %1106 = vmatprep.subr.bf16.mxu0 0
  %1107 = vmatpush2.bf16.xpose.msra.mxu0 0
  %1108 = vmatprep.subr.bf16.mxu0 0
  %1109 = vmatpush2.bf16.xpose.msra.mxu0 0
  %1110 = vmatprep.subr.bf16.mxu0 0
  %1111 = vmatpush2.bf16.xpose.msra.mxu0 0
  %1112 = vmatprep.mubr.bf16.mxu0 0
  %1113 = vmatmul.mubr.bf16.gmra.mxu0 %v1075
  %v1114 = vpop.f32.mrf.mxu0
  %v1115 = vadd.f32 %v46, %v1114
  %v1116 = vpop.f32.mrf.mxu0
  %v1117 = vpop.f32.mrf.mxu0
  %v1118 = vpop.f32.mrf.mxu0
  %1119 = vdwg.mxu0
  %1120 = vrot.lane.b32.xlu0 %v140, 112
  %v1121 = vpop.permute.xlu0 %1120
  %1122 = vrot.lane.b32.xlu0 %v140, 80
  %v1123 = vpop.permute.xlu0 %1122
  %v1125 = vsel %vm145, %v1121, 0
  %v1128 = vsel %vm145, %v1123, 0
  %1130 = vmatprep.subr.bf16.mxu0 0
  %1131 = vmatpush1.bf16.xpose.msra.mxu0 0
  %1132 = vmatprep.subr.bf16.mxu0 0
  %1133 = vmatpush1.bf16.xpose.msra.mxu0 0
  %1134 = vmatprep.subr.bf16.mxu0 0
  %1135 = vmatpush1.bf16.xpose.msra.mxu0 0
  %1136 = vmatprep.subr.bf16.mxu0 0
  %1137 = vmatpush1.bf16.xpose.msra.mxu0 0
  %1138 = vmatprep.subr.bf16.mxu0 0
  %1139 = vmatpush1.bf16.xpose.msra.mxu0 0
  %1140 = vmatprep.subr.bf16.mxu0 0
  %1141 = vmatpush1.bf16.xpose.msra.mxu0 0
  %1142 = vmatprep.subr.bf16.mxu0 0
  %1143 = vmatpush1.bf16.xpose.msra.mxu0 0
  %1144 = vmatprep.subr.bf16.mxu0 0
  %1145 = vmatpush1.bf16.xpose.msra.mxu0 %v1128
  %1146 = vmatprep.subr.bf16.mxu0 0
  %1147 = vmatpush2.bf16.xpose.msra.mxu0 0
  %1148 = vmatprep.subr.bf16.mxu0 0
  %1149 = vmatpush2.bf16.xpose.msra.mxu0 0
  %1150 = vmatprep.subr.bf16.mxu0 0
  %1151 = vmatpush2.bf16.xpose.msra.mxu0 0
  %1152 = vmatprep.subr.bf16.mxu0 0
  %1153 = vmatpush2.bf16.xpose.msra.mxu0 0
  %1154 = vmatprep.subr.bf16.mxu0 0
  %1155 = vmatpush2.bf16.xpose.msra.mxu0 0
  %1156 = vmatprep.subr.bf16.mxu0 0
  %1157 = vmatpush2.bf16.xpose.msra.mxu0 0
  %1158 = vmatprep.subr.bf16.mxu0 0
  %1159 = vmatpush2.bf16.xpose.msra.mxu0 0
  %1160 = vmatprep.subr.bf16.mxu0 0
  %1161 = vmatpush2.bf16.xpose.msra.mxu0 0
  %1162 = vmatprep.mubr.bf16.mxu0 0
  %1163 = vmatmul.mubr.bf16.gmra.mxu0 %v1125
  %v1164 = vpop.f32.mrf.mxu0
  %v1165 = vadd.f32 %v50, %v1164
  %v1166 = vpop.f32.mrf.mxu0
  %v1167 = vpop.f32.mrf.mxu0
  %v1168 = vpop.f32.mrf.mxu0
  %1169 = vdwg.mxu0
  %1170 = vrot.lane.b32.xlu0 %v141, 112
  %v1171 = vpop.permute.xlu0 %1170
  %1172 = vrot.lane.b32.xlu0 %v141, 80
  %v1173 = vpop.permute.xlu0 %1172
  %v1175 = vsel %vm145, %v1171, 0
  %v1178 = vsel %vm145, %v1173, 0
  %1180 = vmatprep.subr.bf16.mxu0 0
  %1181 = vmatpush1.bf16.xpose.msra.mxu0 0
  %1182 = vmatprep.subr.bf16.mxu0 0
  %1183 = vmatpush1.bf16.xpose.msra.mxu0 0
  %1184 = vmatprep.subr.bf16.mxu0 0
  %1185 = vmatpush1.bf16.xpose.msra.mxu0 0
  %1186 = vmatprep.subr.bf16.mxu0 0
  %1187 = vmatpush1.bf16.xpose.msra.mxu0 0
  %1188 = vmatprep.subr.bf16.mxu0 0
  %1189 = vmatpush1.bf16.xpose.msra.mxu0 0
  %1190 = vmatprep.subr.bf16.mxu0 0
  %1191 = vmatpush1.bf16.xpose.msra.mxu0 0
  %1192 = vmatprep.subr.bf16.mxu0 0
  %1193 = vmatpush1.bf16.xpose.msra.mxu0 0
  %1194 = vmatprep.subr.bf16.mxu0 0
  %1195 = vmatpush1.bf16.xpose.msra.mxu0 %v1178
  %1196 = vmatprep.subr.bf16.mxu0 0
  %1197 = vmatpush2.bf16.xpose.msra.mxu0 0
  %1198 = vmatprep.subr.bf16.mxu0 0
  %1199 = vmatpush2.bf16.xpose.msra.mxu0 0
  %1200 = vmatprep.subr.bf16.mxu0 0
  %1201 = vmatpush2.bf16.xpose.msra.mxu0 0
  %1202 = vmatprep.subr.bf16.mxu0 0
  %1203 = vmatpush2.bf16.xpose.msra.mxu0 0
  %1204 = vmatprep.subr.bf16.mxu0 0
  %1205 = vmatpush2.bf16.xpose.msra.mxu0 0
  %1206 = vmatprep.subr.bf16.mxu0 0
  %1207 = vmatpush2.bf16.xpose.msra.mxu0 0
  %1208 = vmatprep.subr.bf16.mxu0 0
  %1209 = vmatpush2.bf16.xpose.msra.mxu0 0
  %1210 = vmatprep.subr.bf16.mxu0 0
  %1211 = vmatpush2.bf16.xpose.msra.mxu0 0
  %1212 = vmatprep.mubr.bf16.mxu0 0
  %1213 = vmatmul.mubr.bf16.gmra.mxu0 %v1175
  %v1214 = vpop.f32.mrf.mxu0
  %v1215 = vadd.f32 %v54, %v1214
  %v1216 = vpop.f32.mrf.mxu0
  %v1217 = vpop.f32.mrf.mxu0
  %v1218 = vpop.f32.mrf.mxu0
  %1219 = vdwg.mxu0
  %v1220 = vsel %vm145, %v1065, -inf
  %1221 = vmax.xlane.f32.xlu0 %v1220
  %v1222 = vpop.xlane.xlu0 %1221
  %v1223 = vsel %vm145, %v1115, -inf
  %1224 = vmax.xlane.f32.xlu0 %v1223
  %v1225 = vpop.xlane.xlu0 %1224
  %v1226 = vsel %vm145, %v1165, -inf
  %1227 = vmax.xlane.f32.xlu0 %v1226
  %v1228 = vpop.xlane.xlu0 %1227
  %v1229 = vsel %vm145, %v1215, -inf
  %1230 = vmax.xlane.f32.xlu0 %v1229
  %v1231 = vpop.xlane.xlu0 %1230
  %v1232 = vsub.f32 %v1065, %v1222
  %v1233 = vsub.f32 %v1115, %v1225
  %v1234 = vsub.f32 %v1165, %v1228
  %v1235 = vsub.f32 %v1215, %v1231
  %v1236 = vmul.f32 %v1232, 1.442695
  %v1237 = vpow.pop %v1236
  %v1238 = vmul.f32 %v1233, 1.442695
  %v1239 = vpow.pop %v1238
  %v1240 = vmul.f32 %v1234, 1.442695
  %v1241 = vpow.pop %v1240
  %v1242 = vmul.f32 %v1235, 1.442695
  %v1243 = vpow.pop %v1242
  %v1244 = vsel %vm145, %v1237, 0.0
  %1245 = vadd.xlane.f32.xlu0 %v1244
  %v1246 = vpop.xlane.xlu0 %1245
  %v1247 = vsel %vm145, %v1239, 0.0
  %1248 = vadd.xlane.f32.xlu0 %v1247
  %v1249 = vpop.xlane.xlu0 %1248
  %v1250 = vsel %vm145, %v1241, 0.0
  %1251 = vadd.xlane.f32.xlu0 %v1250
  %v1252 = vpop.xlane.xlu0 %1251
  %v1253 = vsel %vm145, %v1243, 0.0
  %1254 = vadd.xlane.f32.xlu0 %v1253
  %v1255 = vpop.xlane.xlu0 %1254
  %v1256 = vrcp.pop %v1246
  %v1257 = vrcp.pop %v1249
  %v1258 = vrcp.pop %v1252
  %v1259 = vrcp.pop %v1255
  %v1260 = vmul.f32 %v1237, %v1256
  %v1261 = vmul.f32 %v1239, %v1257
  %v1262 = vmul.f32 %v1241, %v1258
  %v1263 = vmul.f32 %v1243, %v1259
  %v1264 = vpack.c.bf16 %v1260, %v1260
  %v1265 = vpack.c.bf16 %v1261, %v1261
  %v1266 = vpack.c.bf16 %v1262, %v1262
  %v1267 = vpack.c.bf16 %v1263, %v1263
  %1268 = vrot.lane.b32.xlu0 %v138, 48
  %v1269 = vpop.permute.xlu0 %1268
  %v1271 = vsel %vm145, %v1264, 0
  %v1274 = vsel %vm392, %v1269, 0
  %1276 = vmatprep.subr.bf16.mxu0 0
  %1277 = vmatpush1.bf16.msra.mxu0 0
  %1278 = vmatprep.subr.bf16.mxu0 0
  %1279 = vmatpush1.bf16.msra.mxu0 0
  %1280 = vmatprep.subr.bf16.mxu0 0
  %1281 = vmatpush1.bf16.msra.mxu0 0
  %1282 = vmatprep.subr.bf16.mxu0 0
  %1283 = vmatpush1.bf16.msra.mxu0 0
  %1284 = vmatprep.subr.bf16.mxu0 0
  %1285 = vmatpush1.bf16.msra.mxu0 0
  %1286 = vmatprep.subr.bf16.mxu0 0
  %1287 = vmatpush1.bf16.msra.mxu0 0
  %1288 = vmatprep.subr.bf16.mxu0 0
  %1289 = vmatpush1.bf16.msra.mxu0 0
  %1290 = vmatprep.subr.bf16.mxu0 0
  %1291 = vmatpush1.bf16.msra.mxu0 %v1274
  %1292 = vmatprep.subr.bf16.mxu0 0
  %1293 = vmatpush2.bf16.msra.mxu0 0
  %1294 = vmatprep.subr.bf16.mxu0 0
  %1295 = vmatpush2.bf16.msra.mxu0 0
  %1296 = vmatprep.subr.bf16.mxu0 0
  %1297 = vmatpush2.bf16.msra.mxu0 0
  %1298 = vmatprep.subr.bf16.mxu0 0
  %1299 = vmatpush2.bf16.msra.mxu0 0
  %1300 = vmatprep.subr.bf16.mxu0 0
  %1301 = vmatpush2.bf16.msra.mxu0 0
  %1302 = vmatprep.subr.bf16.mxu0 0
  %1303 = vmatpush2.bf16.msra.mxu0 0
  %1304 = vmatprep.subr.bf16.mxu0 0
  %1305 = vmatpush2.bf16.msra.mxu0 0
  %1306 = vmatprep.subr.bf16.mxu0 0
  %1307 = vmatpush2.bf16.msra.mxu0 0
  %1308 = vmatprep.mubr.bf16.mxu0 0
  %1309 = vmatmul.mubr.bf16.gmra.mxu0 %v1271
  %v1310 = vpop.f32.mrf.mxu0
  %v1311 = vadd.f32 0.0, %v1310
  %v1312 = vpop.f32.mrf.mxu0
  %v1313 = vpop.f32.mrf.mxu0
  %v1314 = vpop.f32.mrf.mxu0
  %1315 = vdwg.mxu0
  %1316 = vrot.lane.b32.xlu0 %v139, 48
  %v1317 = vpop.permute.xlu0 %1316
  %v1319 = vsel %vm145, %v1265, 0
  %v1322 = vsel %vm392, %v1317, 0
  %1324 = vmatprep.subr.bf16.mxu0 0
  %1325 = vmatpush1.bf16.msra.mxu0 0
  %1326 = vmatprep.subr.bf16.mxu0 0
  %1327 = vmatpush1.bf16.msra.mxu0 0
  %1328 = vmatprep.subr.bf16.mxu0 0
  %1329 = vmatpush1.bf16.msra.mxu0 0
  %1330 = vmatprep.subr.bf16.mxu0 0
  %1331 = vmatpush1.bf16.msra.mxu0 0
  %1332 = vmatprep.subr.bf16.mxu0 0
  %1333 = vmatpush1.bf16.msra.mxu0 0
  %1334 = vmatprep.subr.bf16.mxu0 0
  %1335 = vmatpush1.bf16.msra.mxu0 0
  %1336 = vmatprep.subr.bf16.mxu0 0
  %1337 = vmatpush1.bf16.msra.mxu0 0
  %1338 = vmatprep.subr.bf16.mxu0 0
  %1339 = vmatpush1.bf16.msra.mxu0 %v1322
  %1340 = vmatprep.subr.bf16.mxu0 0
  %1341 = vmatpush2.bf16.msra.mxu0 0
  %1342 = vmatprep.subr.bf16.mxu0 0
  %1343 = vmatpush2.bf16.msra.mxu0 0
  %1344 = vmatprep.subr.bf16.mxu0 0
  %1345 = vmatpush2.bf16.msra.mxu0 0
  %1346 = vmatprep.subr.bf16.mxu0 0
  %1347 = vmatpush2.bf16.msra.mxu0 0
  %1348 = vmatprep.subr.bf16.mxu0 0
  %1349 = vmatpush2.bf16.msra.mxu0 0
  %1350 = vmatprep.subr.bf16.mxu0 0
  %1351 = vmatpush2.bf16.msra.mxu0 0
  %1352 = vmatprep.subr.bf16.mxu0 0
  %1353 = vmatpush2.bf16.msra.mxu0 0
  %1354 = vmatprep.subr.bf16.mxu0 0
  %1355 = vmatpush2.bf16.msra.mxu0 0
  %1356 = vmatprep.mubr.bf16.mxu0 0
  %1357 = vmatmul.mubr.bf16.gmra.mxu0 %v1319
  %v1358 = vpop.f32.mrf.mxu0
  %v1359 = vadd.f32 0.0, %v1358
  %v1360 = vpop.f32.mrf.mxu0
  %v1361 = vpop.f32.mrf.mxu0
  %v1362 = vpop.f32.mrf.mxu0
  %1363 = vdwg.mxu0
  %1364 = vrot.lane.b32.xlu0 %v140, 48
  %v1365 = vpop.permute.xlu0 %1364
  %v1367 = vsel %vm145, %v1266, 0
  %v1370 = vsel %vm392, %v1365, 0
  %1372 = vmatprep.subr.bf16.mxu0 0
  %1373 = vmatpush1.bf16.msra.mxu0 0
  %1374 = vmatprep.subr.bf16.mxu0 0
  %1375 = vmatpush1.bf16.msra.mxu0 0
  %1376 = vmatprep.subr.bf16.mxu0 0
  %1377 = vmatpush1.bf16.msra.mxu0 0
  %1378 = vmatprep.subr.bf16.mxu0 0
  %1379 = vmatpush1.bf16.msra.mxu0 0
  %1380 = vmatprep.subr.bf16.mxu0 0
  %1381 = vmatpush1.bf16.msra.mxu0 0
  %1382 = vmatprep.subr.bf16.mxu0 0
  %1383 = vmatpush1.bf16.msra.mxu0 0
  %1384 = vmatprep.subr.bf16.mxu0 0
  %1385 = vmatpush1.bf16.msra.mxu0 0
  %1386 = vmatprep.subr.bf16.mxu0 0
  %1387 = vmatpush1.bf16.msra.mxu0 %v1370
  %1388 = vmatprep.subr.bf16.mxu0 0
  %1389 = vmatpush2.bf16.msra.mxu0 0
  %1390 = vmatprep.subr.bf16.mxu0 0
  %1391 = vmatpush2.bf16.msra.mxu0 0
  %1392 = vmatprep.subr.bf16.mxu0 0
  %1393 = vmatpush2.bf16.msra.mxu0 0
  %1394 = vmatprep.subr.bf16.mxu0 0
  %1395 = vmatpush2.bf16.msra.mxu0 0
  %1396 = vmatprep.subr.bf16.mxu0 0
  %1397 = vmatpush2.bf16.msra.mxu0 0
  %1398 = vmatprep.subr.bf16.mxu0 0
  %1399 = vmatpush2.bf16.msra.mxu0 0
  %1400 = vmatprep.subr.bf16.mxu0 0
  %1401 = vmatpush2.bf16.msra.mxu0 0
  %1402 = vmatprep.subr.bf16.mxu0 0
  %1403 = vmatpush2.bf16.msra.mxu0 0
  %1404 = vmatprep.mubr.bf16.mxu0 0
  %1405 = vmatmul.mubr.bf16.gmra.mxu0 %v1367
  %v1406 = vpop.f32.mrf.mxu0
  %v1407 = vadd.f32 0.0, %v1406
  %v1408 = vpop.f32.mrf.mxu0
  %v1409 = vpop.f32.mrf.mxu0
  %v1410 = vpop.f32.mrf.mxu0
  %1411 = vdwg.mxu0
  %1412 = vrot.lane.b32.xlu0 %v141, 48
  %v1413 = vpop.permute.xlu0 %1412
  %v1415 = vsel %vm145, %v1267, 0
  %v1418 = vsel %vm392, %v1413, 0
  %1420 = vmatprep.subr.bf16.mxu0 0
  %1421 = vmatpush1.bf16.msra.mxu0 0
  %1422 = vmatprep.subr.bf16.mxu0 0
  %1423 = vmatpush1.bf16.msra.mxu0 0
  %1424 = vmatprep.subr.bf16.mxu0 0
  %1425 = vmatpush1.bf16.msra.mxu0 0
  %1426 = vmatprep.subr.bf16.mxu0 0
  %1427 = vmatpush1.bf16.msra.mxu0 0
  %1428 = vmatprep.subr.bf16.mxu0 0
  %1429 = vmatpush1.bf16.msra.mxu0 0
  %1430 = vmatprep.subr.bf16.mxu0 0
  %1431 = vmatpush1.bf16.msra.mxu0 0
  %1432 = vmatprep.subr.bf16.mxu0 0
  %1433 = vmatpush1.bf16.msra.mxu0 0
  %1434 = vmatprep.subr.bf16.mxu0 0
  %1435 = vmatpush1.bf16.msra.mxu0 %v1418
  %1436 = vmatprep.subr.bf16.mxu0 0
  %1437 = vmatpush2.bf16.msra.mxu0 0
  %1438 = vmatprep.subr.bf16.mxu0 0
  %1439 = vmatpush2.bf16.msra.mxu0 0
  %1440 = vmatprep.subr.bf16.mxu0 0
  %1441 = vmatpush2.bf16.msra.mxu0 0
  %1442 = vmatprep.subr.bf16.mxu0 0
  %1443 = vmatpush2.bf16.msra.mxu0 0
  %1444 = vmatprep.subr.bf16.mxu0 0
  %1445 = vmatpush2.bf16.msra.mxu0 0
  %1446 = vmatprep.subr.bf16.mxu0 0
  %1447 = vmatpush2.bf16.msra.mxu0 0
  %1448 = vmatprep.subr.bf16.mxu0 0
  %1449 = vmatpush2.bf16.msra.mxu0 0
  %1450 = vmatprep.subr.bf16.mxu0 0
  %1451 = vmatpush2.bf16.msra.mxu0 0
  %1452 = vmatprep.mubr.bf16.mxu0 0
  %1453 = vmatmul.mubr.bf16.gmra.mxu0 %v1415
  %v1454 = vpop.f32.mrf.mxu0
  %v1455 = vadd.f32 0.0, %v1454
  %v1456 = vpop.f32.mrf.mxu0
  %v1457 = vpop.f32.mrf.mxu0
  %v1458 = vpop.f32.mrf.mxu0
  %1459 = vdwg.mxu0
  %1460 = vrot.lane.b32.xlu0 %v138, 104
  %v1461 = vpop.permute.xlu0 %1460
  %1462 = vrot.lane.b32.xlu0 %v138, 72
  %v1463 = vpop.permute.xlu0 %1462
  %v1465 = vsel %vm145, %v1461, 0
  %v1468 = vsel %vm145, %v1463, 0
  %1470 = vmatprep.subr.bf16.mxu0 0
  %1471 = vmatpush1.bf16.xpose.msra.mxu0 0
  %1472 = vmatprep.subr.bf16.mxu0 0
  %1473 = vmatpush1.bf16.xpose.msra.mxu0 0
  %1474 = vmatprep.subr.bf16.mxu0 0
  %1475 = vmatpush1.bf16.xpose.msra.mxu0 0
  %1476 = vmatprep.subr.bf16.mxu0 0
  %1477 = vmatpush1.bf16.xpose.msra.mxu0 0
  %1478 = vmatprep.subr.bf16.mxu0 0
  %1479 = vmatpush1.bf16.xpose.msra.mxu0 0
  %1480 = vmatprep.subr.bf16.mxu0 0
  %1481 = vmatpush1.bf16.xpose.msra.mxu0 0
  %1482 = vmatprep.subr.bf16.mxu0 0
  %1483 = vmatpush1.bf16.xpose.msra.mxu0 0
  %1484 = vmatprep.subr.bf16.mxu0 0
  %1485 = vmatpush1.bf16.xpose.msra.mxu0 %v1468
  %1486 = vmatprep.subr.bf16.mxu0 0
  %1487 = vmatpush2.bf16.xpose.msra.mxu0 0
  %1488 = vmatprep.subr.bf16.mxu0 0
  %1489 = vmatpush2.bf16.xpose.msra.mxu0 0
  %1490 = vmatprep.subr.bf16.mxu0 0
  %1491 = vmatpush2.bf16.xpose.msra.mxu0 0
  %1492 = vmatprep.subr.bf16.mxu0 0
  %1493 = vmatpush2.bf16.xpose.msra.mxu0 0
  %1494 = vmatprep.subr.bf16.mxu0 0
  %1495 = vmatpush2.bf16.xpose.msra.mxu0 0
  %1496 = vmatprep.subr.bf16.mxu0 0
  %1497 = vmatpush2.bf16.xpose.msra.mxu0 0
  %1498 = vmatprep.subr.bf16.mxu0 0
  %1499 = vmatpush2.bf16.xpose.msra.mxu0 0
  %1500 = vmatprep.subr.bf16.mxu0 0
  %1501 = vmatpush2.bf16.xpose.msra.mxu0 0
  %1502 = vmatprep.mubr.bf16.mxu0 0
  %1503 = vmatmul.mubr.bf16.gmra.mxu0 %v1465
  %v1504 = vpop.f32.mrf.mxu0
  %v1505 = vadd.f32 %v42, %v1504
  %v1506 = vpop.f32.mrf.mxu0
  %v1507 = vpop.f32.mrf.mxu0
  %v1508 = vpop.f32.mrf.mxu0
  %1509 = vdwg.mxu0
  %1510 = vrot.lane.b32.xlu0 %v139, 104
  %v1511 = vpop.permute.xlu0 %1510
  %1512 = vrot.lane.b32.xlu0 %v139, 72
  %v1513 = vpop.permute.xlu0 %1512
  %v1515 = vsel %vm145, %v1511, 0
  %v1518 = vsel %vm145, %v1513, 0
  %1520 = vmatprep.subr.bf16.mxu0 0
  %1521 = vmatpush1.bf16.xpose.msra.mxu0 0
  %1522 = vmatprep.subr.bf16.mxu0 0
  %1523 = vmatpush1.bf16.xpose.msra.mxu0 0
  %1524 = vmatprep.subr.bf16.mxu0 0
  %1525 = vmatpush1.bf16.xpose.msra.mxu0 0
  %1526 = vmatprep.subr.bf16.mxu0 0
  %1527 = vmatpush1.bf16.xpose.msra.mxu0 0
  %1528 = vmatprep.subr.bf16.mxu0 0
  %1529 = vmatpush1.bf16.xpose.msra.mxu0 0
  %1530 = vmatprep.subr.bf16.mxu0 0
  %1531 = vmatpush1.bf16.xpose.msra.mxu0 0
  %1532 = vmatprep.subr.bf16.mxu0 0
  %1533 = vmatpush1.bf16.xpose.msra.mxu0 0
  %1534 = vmatprep.subr.bf16.mxu0 0
  %1535 = vmatpush1.bf16.xpose.msra.mxu0 %v1518
  %1536 = vmatprep.subr.bf16.mxu0 0
  %1537 = vmatpush2.bf16.xpose.msra.mxu0 0
  %1538 = vmatprep.subr.bf16.mxu0 0
  %1539 = vmatpush2.bf16.xpose.msra.mxu0 0
  %1540 = vmatprep.subr.bf16.mxu0 0
  %1541 = vmatpush2.bf16.xpose.msra.mxu0 0
  %1542 = vmatprep.subr.bf16.mxu0 0
  %1543 = vmatpush2.bf16.xpose.msra.mxu0 0
  %1544 = vmatprep.subr.bf16.mxu0 0
  %1545 = vmatpush2.bf16.xpose.msra.mxu0 0
  %1546 = vmatprep.subr.bf16.mxu0 0
  %1547 = vmatpush2.bf16.xpose.msra.mxu0 0
  %1548 = vmatprep.subr.bf16.mxu0 0
  %1549 = vmatpush2.bf16.xpose.msra.mxu0 0
  %1550 = vmatprep.subr.bf16.mxu0 0
  %1551 = vmatpush2.bf16.xpose.msra.mxu0 0
  %1552 = vmatprep.mubr.bf16.mxu0 0
  %1553 = vmatmul.mubr.bf16.gmra.mxu0 %v1515
  %v1554 = vpop.f32.mrf.mxu0
  %v1555 = vadd.f32 %v46, %v1554
  %v1556 = vpop.f32.mrf.mxu0
  %v1557 = vpop.f32.mrf.mxu0
  %v1558 = vpop.f32.mrf.mxu0
  %1559 = vdwg.mxu0
  %1560 = vrot.lane.b32.xlu0 %v140, 104
  %v1561 = vpop.permute.xlu0 %1560
  %1562 = vrot.lane.b32.xlu0 %v140, 72
  %v1563 = vpop.permute.xlu0 %1562
  %v1565 = vsel %vm145, %v1561, 0
  %v1568 = vsel %vm145, %v1563, 0
  %1570 = vmatprep.subr.bf16.mxu0 0
  %1571 = vmatpush1.bf16.xpose.msra.mxu0 0
  %1572 = vmatprep.subr.bf16.mxu0 0
  %1573 = vmatpush1.bf16.xpose.msra.mxu0 0
  %1574 = vmatprep.subr.bf16.mxu0 0
  %1575 = vmatpush1.bf16.xpose.msra.mxu0 0
  %1576 = vmatprep.subr.bf16.mxu0 0
  %1577 = vmatpush1.bf16.xpose.msra.mxu0 0
  %1578 = vmatprep.subr.bf16.mxu0 0
  %1579 = vmatpush1.bf16.xpose.msra.mxu0 0
  %1580 = vmatprep.subr.bf16.mxu0 0
  %1581 = vmatpush1.bf16.xpose.msra.mxu0 0
  %1582 = vmatprep.subr.bf16.mxu0 0
  %1583 = vmatpush1.bf16.xpose.msra.mxu0 0
  %1584 = vmatprep.subr.bf16.mxu0 0
  %1585 = vmatpush1.bf16.xpose.msra.mxu0 %v1568
  %1586 = vmatprep.subr.bf16.mxu0 0
  %1587 = vmatpush2.bf16.xpose.msra.mxu0 0
  %1588 = vmatprep.subr.bf16.mxu0 0
  %1589 = vmatpush2.bf16.xpose.msra.mxu0 0
  %1590 = vmatprep.subr.bf16.mxu0 0
  %1591 = vmatpush2.bf16.xpose.msra.mxu0 0
  %1592 = vmatprep.subr.bf16.mxu0 0
  %1593 = vmatpush2.bf16.xpose.msra.mxu0 0
  %1594 = vmatprep.subr.bf16.mxu0 0
  %1595 = vmatpush2.bf16.xpose.msra.mxu0 0
  %1596 = vmatprep.subr.bf16.mxu0 0
  %1597 = vmatpush2.bf16.xpose.msra.mxu0 0
  %1598 = vmatprep.subr.bf16.mxu0 0
  %1599 = vmatpush2.bf16.xpose.msra.mxu0 0
  %1600 = vmatprep.subr.bf16.mxu0 0
  %1601 = vmatpush2.bf16.xpose.msra.mxu0 0
  %1602 = vmatprep.mubr.bf16.mxu0 0
  %1603 = vmatmul.mubr.bf16.gmra.mxu0 %v1565
  %v1604 = vpop.f32.mrf.mxu0
  %v1605 = vadd.f32 %v50, %v1604
  %v1606 = vpop.f32.mrf.mxu0
  %v1607 = vpop.f32.mrf.mxu0
  %v1608 = vpop.f32.mrf.mxu0
  %1609 = vdwg.mxu0
  %1610 = vrot.lane.b32.xlu0 %v141, 104
  %v1611 = vpop.permute.xlu0 %1610
  %1612 = vrot.lane.b32.xlu0 %v141, 72
  %v1613 = vpop.permute.xlu0 %1612
  %v1615 = vsel %vm145, %v1611, 0
  %v1618 = vsel %vm145, %v1613, 0
  %1620 = vmatprep.subr.bf16.mxu0 0
  %1621 = vmatpush1.bf16.xpose.msra.mxu0 0
  %1622 = vmatprep.subr.bf16.mxu0 0
  %1623 = vmatpush1.bf16.xpose.msra.mxu0 0
  %1624 = vmatprep.subr.bf16.mxu0 0
  %1625 = vmatpush1.bf16.xpose.msra.mxu0 0
  %1626 = vmatprep.subr.bf16.mxu0 0
  %1627 = vmatpush1.bf16.xpose.msra.mxu0 0
  %1628 = vmatprep.subr.bf16.mxu0 0
  %1629 = vmatpush1.bf16.xpose.msra.mxu0 0
  %1630 = vmatprep.subr.bf16.mxu0 0
  %1631 = vmatpush1.bf16.xpose.msra.mxu0 0
  %1632 = vmatprep.subr.bf16.mxu0 0
  %1633 = vmatpush1.bf16.xpose.msra.mxu0 0
  %1634 = vmatprep.subr.bf16.mxu0 0
  %1635 = vmatpush1.bf16.xpose.msra.mxu0 %v1618
  %1636 = vmatprep.subr.bf16.mxu0 0
  %1637 = vmatpush2.bf16.xpose.msra.mxu0 0
  %1638 = vmatprep.subr.bf16.mxu0 0
  %1639 = vmatpush2.bf16.xpose.msra.mxu0 0
  %1640 = vmatprep.subr.bf16.mxu0 0
  %1641 = vmatpush2.bf16.xpose.msra.mxu0 0
  %1642 = vmatprep.subr.bf16.mxu0 0
  %1643 = vmatpush2.bf16.xpose.msra.mxu0 0
  %1644 = vmatprep.subr.bf16.mxu0 0
  %1645 = vmatpush2.bf16.xpose.msra.mxu0 0
  %1646 = vmatprep.subr.bf16.mxu0 0
  %1647 = vmatpush2.bf16.xpose.msra.mxu0 0
  %1648 = vmatprep.subr.bf16.mxu0 0
  %1649 = vmatpush2.bf16.xpose.msra.mxu0 0
  %1650 = vmatprep.subr.bf16.mxu0 0
  %1651 = vmatpush2.bf16.xpose.msra.mxu0 0
  %1652 = vmatprep.mubr.bf16.mxu0 0
  %1653 = vmatmul.mubr.bf16.gmra.mxu0 %v1615
  %v1654 = vpop.f32.mrf.mxu0
  %v1655 = vadd.f32 %v54, %v1654
  %v1656 = vpop.f32.mrf.mxu0
  %v1657 = vpop.f32.mrf.mxu0
  %v1658 = vpop.f32.mrf.mxu0
  %1659 = vdwg.mxu0
  %v1660 = vsel %vm145, %v1505, -inf
  %1661 = vmax.xlane.f32.xlu0 %v1660
  %v1662 = vpop.xlane.xlu0 %1661
  %v1663 = vsel %vm145, %v1555, -inf
  %1664 = vmax.xlane.f32.xlu0 %v1663
  %v1665 = vpop.xlane.xlu0 %1664
  %v1666 = vsel %vm145, %v1605, -inf
  %1667 = vmax.xlane.f32.xlu0 %v1666
  %v1668 = vpop.xlane.xlu0 %1667
  %v1669 = vsel %vm145, %v1655, -inf
  %1670 = vmax.xlane.f32.xlu0 %v1669
  %v1671 = vpop.xlane.xlu0 %1670
  %v1672 = vsub.f32 %v1505, %v1662
  %v1673 = vsub.f32 %v1555, %v1665
  %v1674 = vsub.f32 %v1605, %v1668
  %v1675 = vsub.f32 %v1655, %v1671
  %v1676 = vmul.f32 %v1672, 1.442695
  %v1677 = vpow.pop %v1676
  %v1678 = vmul.f32 %v1673, 1.442695
  %v1679 = vpow.pop %v1678
  %v1680 = vmul.f32 %v1674, 1.442695
  %v1681 = vpow.pop %v1680
  %v1682 = vmul.f32 %v1675, 1.442695
  %v1683 = vpow.pop %v1682
  %v1684 = vsel %vm145, %v1677, 0.0
  %1685 = vadd.xlane.f32.xlu0 %v1684
  %v1686 = vpop.xlane.xlu0 %1685
  %v1687 = vsel %vm145, %v1679, 0.0
  %1688 = vadd.xlane.f32.xlu0 %v1687
  %v1689 = vpop.xlane.xlu0 %1688
  %v1690 = vsel %vm145, %v1681, 0.0
  %1691 = vadd.xlane.f32.xlu0 %v1690
  %v1692 = vpop.xlane.xlu0 %1691
  %v1693 = vsel %vm145, %v1683, 0.0
  %1694 = vadd.xlane.f32.xlu0 %v1693
  %v1695 = vpop.xlane.xlu0 %1694
  %v1696 = vrcp.pop %v1686
  %v1697 = vrcp.pop %v1689
  %v1698 = vrcp.pop %v1692
  %v1699 = vrcp.pop %v1695
  %v1700 = vmul.f32 %v1677, %v1696
  %v1701 = vmul.f32 %v1679, %v1697
  %v1702 = vmul.f32 %v1681, %v1698
  %v1703 = vmul.f32 %v1683, %v1699
  %v1704 = vpack.c.bf16 %v1700, %v1700
  %v1705 = vpack.c.bf16 %v1701, %v1701
  %v1706 = vpack.c.bf16 %v1702, %v1702
  %v1707 = vpack.c.bf16 %v1703, %v1703
  %1708 = vrot.lane.b32.xlu0 %v138, 40
  %v1709 = vpop.permute.xlu0 %1708
  %v1711 = vsel %vm145, %v1704, 0
  %v1714 = vsel %vm392, %v1709, 0
  %1716 = vmatprep.subr.bf16.mxu0 0
  %1717 = vmatpush1.bf16.msra.mxu0 0
  %1718 = vmatprep.subr.bf16.mxu0 0
  %1719 = vmatpush1.bf16.msra.mxu0 0
  %1720 = vmatprep.subr.bf16.mxu0 0
  %1721 = vmatpush1.bf16.msra.mxu0 0
  %1722 = vmatprep.subr.bf16.mxu0 0
  %1723 = vmatpush1.bf16.msra.mxu0 0
  %1724 = vmatprep.subr.bf16.mxu0 0
  %1725 = vmatpush1.bf16.msra.mxu0 0
  %1726 = vmatprep.subr.bf16.mxu0 0
  %1727 = vmatpush1.bf16.msra.mxu0 0
  %1728 = vmatprep.subr.bf16.mxu0 0
  %1729 = vmatpush1.bf16.msra.mxu0 0
  %1730 = vmatprep.subr.bf16.mxu0 0
  %1731 = vmatpush1.bf16.msra.mxu0 %v1714
  %1732 = vmatprep.subr.bf16.mxu0 0
  %1733 = vmatpush2.bf16.msra.mxu0 0
  %1734 = vmatprep.subr.bf16.mxu0 0
  %1735 = vmatpush2.bf16.msra.mxu0 0
  %1736 = vmatprep.subr.bf16.mxu0 0
  %1737 = vmatpush2.bf16.msra.mxu0 0
  %1738 = vmatprep.subr.bf16.mxu0 0
  %1739 = vmatpush2.bf16.msra.mxu0 0
  %1740 = vmatprep.subr.bf16.mxu0 0
  %1741 = vmatpush2.bf16.msra.mxu0 0
  %1742 = vmatprep.subr.bf16.mxu0 0
  %1743 = vmatpush2.bf16.msra.mxu0 0
  %1744 = vmatprep.subr.bf16.mxu0 0
  %1745 = vmatpush2.bf16.msra.mxu0 0
  %1746 = vmatprep.subr.bf16.mxu0 0
  %1747 = vmatpush2.bf16.msra.mxu0 0
  %1748 = vmatprep.mubr.bf16.mxu0 0
  %1749 = vmatmul.mubr.bf16.gmra.mxu0 %v1711
  %v1750 = vpop.f32.mrf.mxu0
  %v1751 = vadd.f32 0.0, %v1750
  %v1752 = vpop.f32.mrf.mxu0
  %v1753 = vpop.f32.mrf.mxu0
  %v1754 = vpop.f32.mrf.mxu0
  %1755 = vdwg.mxu0
  %1756 = vrot.lane.b32.xlu0 %v139, 40
  %v1757 = vpop.permute.xlu0 %1756
  %v1759 = vsel %vm145, %v1705, 0
  %v1762 = vsel %vm392, %v1757, 0
  %1764 = vmatprep.subr.bf16.mxu0 0
  %1765 = vmatpush1.bf16.msra.mxu0 0
  %1766 = vmatprep.subr.bf16.mxu0 0
  %1767 = vmatpush1.bf16.msra.mxu0 0
  %1768 = vmatprep.subr.bf16.mxu0 0
  %1769 = vmatpush1.bf16.msra.mxu0 0
  %1770 = vmatprep.subr.bf16.mxu0 0
  %1771 = vmatpush1.bf16.msra.mxu0 0
  %1772 = vmatprep.subr.bf16.mxu0 0
  %1773 = vmatpush1.bf16.msra.mxu0 0
  %1774 = vmatprep.subr.bf16.mxu0 0
  %1775 = vmatpush1.bf16.msra.mxu0 0
  %1776 = vmatprep.subr.bf16.mxu0 0
  %1777 = vmatpush1.bf16.msra.mxu0 0
  %1778 = vmatprep.subr.bf16.mxu0 0
  %1779 = vmatpush1.bf16.msra.mxu0 %v1762
  %1780 = vmatprep.subr.bf16.mxu0 0
  %1781 = vmatpush2.bf16.msra.mxu0 0
  %1782 = vmatprep.subr.bf16.mxu0 0
  %1783 = vmatpush2.bf16.msra.mxu0 0
  %1784 = vmatprep.subr.bf16.mxu0 0
  %1785 = vmatpush2.bf16.msra.mxu0 0
  %1786 = vmatprep.subr.bf16.mxu0 0
  %1787 = vmatpush2.bf16.msra.mxu0 0
  %1788 = vmatprep.subr.bf16.mxu0 0
  %1789 = vmatpush2.bf16.msra.mxu0 0
  %1790 = vmatprep.subr.bf16.mxu0 0
  %1791 = vmatpush2.bf16.msra.mxu0 0
  %1792 = vmatprep.subr.bf16.mxu0 0
  %1793 = vmatpush2.bf16.msra.mxu0 0
  %1794 = vmatprep.subr.bf16.mxu0 0
  %1795 = vmatpush2.bf16.msra.mxu0 0
  %1796 = vmatprep.mubr.bf16.mxu0 0
  %1797 = vmatmul.mubr.bf16.gmra.mxu0 %v1759
  %v1798 = vpop.f32.mrf.mxu0
  %v1799 = vadd.f32 0.0, %v1798
  %v1800 = vpop.f32.mrf.mxu0
  %v1801 = vpop.f32.mrf.mxu0
  %v1802 = vpop.f32.mrf.mxu0
  %1803 = vdwg.mxu0
  %1804 = vrot.lane.b32.xlu0 %v140, 40
  %v1805 = vpop.permute.xlu0 %1804
  %v1807 = vsel %vm145, %v1706, 0
  %v1810 = vsel %vm392, %v1805, 0
  %1812 = vmatprep.subr.bf16.mxu0 0
  %1813 = vmatpush1.bf16.msra.mxu0 0
  %1814 = vmatprep.subr.bf16.mxu0 0
  %1815 = vmatpush1.bf16.msra.mxu0 0
  %1816 = vmatprep.subr.bf16.mxu0 0
  %1817 = vmatpush1.bf16.msra.mxu0 0
  %1818 = vmatprep.subr.bf16.mxu0 0
  %1819 = vmatpush1.bf16.msra.mxu0 0
  %1820 = vmatprep.subr.bf16.mxu0 0
  %1821 = vmatpush1.bf16.msra.mxu0 0
  %1822 = vmatprep.subr.bf16.mxu0 0
  %1823 = vmatpush1.bf16.msra.mxu0 0
  %1824 = vmatprep.subr.bf16.mxu0 0
  %1825 = vmatpush1.bf16.msra.mxu0 0
  %1826 = vmatprep.subr.bf16.mxu0 0
  %1827 = vmatpush1.bf16.msra.mxu0 %v1810
  %1828 = vmatprep.subr.bf16.mxu0 0
  %1829 = vmatpush2.bf16.msra.mxu0 0
  %1830 = vmatprep.subr.bf16.mxu0 0
  %1831 = vmatpush2.bf16.msra.mxu0 0
  %1832 = vmatprep.subr.bf16.mxu0 0
  %1833 = vmatpush2.bf16.msra.mxu0 0
  %1834 = vmatprep.subr.bf16.mxu0 0
  %1835 = vmatpush2.bf16.msra.mxu0 0
  %1836 = vmatprep.subr.bf16.mxu0 0
  %1837 = vmatpush2.bf16.msra.mxu0 0
  %1838 = vmatprep.subr.bf16.mxu0 0
  %1839 = vmatpush2.bf16.msra.mxu0 0
  %1840 = vmatprep.subr.bf16.mxu0 0
  %1841 = vmatpush2.bf16.msra.mxu0 0
  %1842 = vmatprep.subr.bf16.mxu0 0
  %1843 = vmatpush2.bf16.msra.mxu0 0
  %1844 = vmatprep.mubr.bf16.mxu0 0
  %1845 = vmatmul.mubr.bf16.gmra.mxu0 %v1807
  %v1846 = vpop.f32.mrf.mxu0
  %v1847 = vadd.f32 0.0, %v1846
  %v1848 = vpop.f32.mrf.mxu0
  %v1849 = vpop.f32.mrf.mxu0
  %v1850 = vpop.f32.mrf.mxu0
  %1851 = vdwg.mxu0
  %1852 = vrot.lane.b32.xlu0 %v141, 40
  %v1853 = vpop.permute.xlu0 %1852
  %v1855 = vsel %vm145, %v1707, 0
  %v1858 = vsel %vm392, %v1853, 0
  %1860 = vmatprep.subr.bf16.mxu0 0
  %1861 = vmatpush1.bf16.msra.mxu0 0
  %1862 = vmatprep.subr.bf16.mxu0 0
  %1863 = vmatpush1.bf16.msra.mxu0 0
  %1864 = vmatprep.subr.bf16.mxu0 0
  %1865 = vmatpush1.bf16.msra.mxu0 0
  %1866 = vmatprep.subr.bf16.mxu0 0
  %1867 = vmatpush1.bf16.msra.mxu0 0
  %1868 = vmatprep.subr.bf16.mxu0 0
  %1869 = vmatpush1.bf16.msra.mxu0 0
  %1870 = vmatprep.subr.bf16.mxu0 0
  %1871 = vmatpush1.bf16.msra.mxu0 0
  %1872 = vmatprep.subr.bf16.mxu0 0
  %1873 = vmatpush1.bf16.msra.mxu0 0
  %1874 = vmatprep.subr.bf16.mxu0 0
  %1875 = vmatpush1.bf16.msra.mxu0 %v1858
  %1876 = vmatprep.subr.bf16.mxu0 0
  %1877 = vmatpush2.bf16.msra.mxu0 0
  %1878 = vmatprep.subr.bf16.mxu0 0
  %1879 = vmatpush2.bf16.msra.mxu0 0
  %1880 = vmatprep.subr.bf16.mxu0 0
  %1881 = vmatpush2.bf16.msra.mxu0 0
  %1882 = vmatprep.subr.bf16.mxu0 0
  %1883 = vmatpush2.bf16.msra.mxu0 0
  %1884 = vmatprep.subr.bf16.mxu0 0
  %1885 = vmatpush2.bf16.msra.mxu0 0
  %1886 = vmatprep.subr.bf16.mxu0 0
  %1887 = vmatpush2.bf16.msra.mxu0 0
  %1888 = vmatprep.subr.bf16.mxu0 0
  %1889 = vmatpush2.bf16.msra.mxu0 0
  %1890 = vmatprep.subr.bf16.mxu0 0
  %1891 = vmatpush2.bf16.msra.mxu0 0
  %1892 = vmatprep.mubr.bf16.mxu0 0
  %1893 = vmatmul.mubr.bf16.gmra.mxu0 %v1855
  %v1894 = vpop.f32.mrf.mxu0
  %v1895 = vadd.f32 0.0, %v1894
  %v1896 = vpop.f32.mrf.mxu0
  %v1897 = vpop.f32.mrf.mxu0
  %v1898 = vpop.f32.mrf.mxu0
  %1899 = vdwg.mxu0
  %1904 = vrot.lane.b32.xlu0 %v871, 8
  %v1905 = vpop.permute.xlu0 %1904
  %1906 = vrot.lane.b32.xlu0 %v919, 8
  %v1907 = vpop.permute.xlu0 %1906
  %1908 = vrot.lane.b32.xlu0 %v967, 8
  %v1909 = vpop.permute.xlu0 %1908
  %1910 = vrot.lane.b32.xlu0 %v1015, 8
  %v1911 = vpop.permute.xlu0 %1910
  %1920 = vrot.lane.b32.xlu0 %v1311, 16
  %v1921 = vpop.permute.xlu0 %1920
  %1922 = vrot.lane.b32.xlu0 %v1359, 16
  %v1923 = vpop.permute.xlu0 %1922
  %1924 = vrot.lane.b32.xlu0 %v1407, 16
  %v1925 = vpop.permute.xlu0 %1924
  %1926 = vrot.lane.b32.xlu0 %v1455, 16
  %v1927 = vpop.permute.xlu0 %1926
  %1936 = vrot.lane.b32.xlu0 %v1751, 24
  %v1937 = vpop.permute.xlu0 %1936
  %1938 = vrot.lane.b32.xlu0 %v1799, 24
  %v1939 = vpop.permute.xlu0 %1938
  %1940 = vrot.lane.b32.xlu0 %v1847, 24
  %v1941 = vpop.permute.xlu0 %1940
  %1942 = vrot.lane.b32.xlu0 %v1895, 24
  %v1943 = vpop.permute.xlu0 %1942
  %v1948 = vsel %vm145, %v431, %v1905
  %v1949 = vsel %vm145, %v479, %v1907
  %v1950 = vsel %vm145, %v527, %v1909
  %v1951 = vsel %vm145, %v575, %v1911
  %vm1952 = vcmask 130048
  %v1953 = vsel %vm1952, %v1948, %v1921
  %v1954 = vsel %vm1952, %v1949, %v1923
  %v1955 = vsel %vm1952, %v1950, %v1925
  %v1956 = vsel %vm1952, %v1951, %v1927
  %vm1957 = vcmask 195584
  %v1958 = vsel %vm1957, %v1953, %v1937
  %v1959 = vsel %vm1957, %v1954, %v1939
  %v1960 = vsel %vm1957, %v1955, %v1941
  %v1961 = vsel %vm1957, %v1956, %v1943
  %v1962 = vpack.c.bf16 %v1959, %v1958
  %v1963 = vpack.c.bf16 %v1961, %v1960
  %v1964 = vld [vmem:[%s3] sm:$0xf]
  %v1965 = vld [vmem:[%s3 + $0x4] sm:$0xf]
  %v1966 = vld [vmem:[%s3 + $0x8] sm:$0xf]
  %v1967 = vld [vmem:[%s3 + $0xc] sm:$0xf]
  %v1968 = vlaneseq
  %v1969 = vshrl.u32 %v1968, 7
  %v1970 = vsub.s32 2, %v1969
  %v1971 = vrot.slane %v59, %v1970
  %v1976 = vunpack.c.l.b16 %v1964
  %v1977 = vunpack.c.l.b16 %v1965
  %v1978 = vunpack.c.l.b16 %v1966
  %v1979 = vunpack.c.l.b16 %v1967
  %v1980 = vpack.c.b16 %v1977, %v1976
  %v1981 = vpack.c.b16 %v1979, %v1978
  %v1985 = vsel %vm82, %v1962, 0
  %v1988 = vsel %vm82, %v1963, 0
  %1990 = vmatprep.subr.bf16.mxu0 0
  %1991 = vmatpush1.bf16.msra.mxu0 0
  %1992 = vmatprep.subr.bf16.mxu0 0
  %1993 = vmatpush1.bf16.msra.mxu0 0
  %1994 = vmatprep.subr.bf16.mxu0 0
  %1995 = vmatpush1.bf16.msra.mxu0 0
  %1996 = vmatprep.subr.bf16.mxu0 0
  %1997 = vmatpush1.bf16.msra.mxu0 0
  %1998 = vmatprep.subr.bf16.mxu0 0
  %1999 = vmatpush1.bf16.msra.mxu0 0
  %2000 = vmatprep.subr.bf16.mxu0 0
  %2001 = vmatpush1.bf16.msra.mxu0 0
  %2002 = vmatprep.subr.bf16.mxu0 0
  %2003 = vmatpush1.bf16.msra.mxu0 %v1981
  %2004 = vmatprep.subr.bf16.mxu0 0
  %2005 = vmatpush1.bf16.msra.mxu0 %v1980
  %2006 = vmatprep.subr.bf16.mxu0 0
  %2007 = vmatpush2.bf16.msra.mxu0 0
  %2008 = vmatprep.subr.bf16.mxu0 0
  %2009 = vmatpush2.bf16.msra.mxu0 0
  %2010 = vmatprep.subr.bf16.mxu0 0
  %2011 = vmatpush2.bf16.msra.mxu0 0
  %2012 = vmatprep.subr.bf16.mxu0 0
  %2013 = vmatpush2.bf16.msra.mxu0 0
  %2014 = vmatprep.subr.bf16.mxu0 0
  %2015 = vmatpush2.bf16.msra.mxu0 0
  %2016 = vmatprep.subr.bf16.mxu0 0
  %2017 = vmatpush2.bf16.msra.mxu0 0
  %2018 = vmatprep.subr.bf16.mxu0 0
  %2019 = vmatpush2.bf16.msra.mxu0 0
  %2020 = vmatprep.subr.bf16.mxu0 0
  %2021 = vmatpush2.bf16.msra.mxu0 0
  %2022 = vmatprep.mubr.bf16.mxu0 0
  %2023 = vmatmul.mubr.bf16.gmra.mxu0 %v1985
  %v2024 = vpop.f32.mrf.mxu0
  %v2025 = vadd.f32 %v1971, %v2024
  %v2026 = vpop.f32.mrf.mxu0
  %v2027 = vpop.f32.mrf.mxu0
  %v2028 = vadd.f32 %v1971, %v2027
  %v2029 = vpop.f32.mrf.mxu0
  %2030 = vmatprep.mubr.bf16.mxu0 0
  %2031 = vmatmul.mubr.bf16.gmra.mxu0 %v1988
  %v2032 = vpop.f32.mrf.mxu0
  %v2033 = vadd.f32 %v1971, %v2032
  %v2034 = vpop.f32.mrf.mxu0
  %v2035 = vpop.f32.mrf.mxu0
  %v2036 = vadd.f32 %v1971, %v2035
  %v2037 = vpop.f32.mrf.mxu0
  %2038 = vdwg.mxu0
  %v2039 = vadd.f32 %v27, %v2025
  %v2040 = vadd.f32 %v28, %v2028
  %v2041 = vadd.f32 %v29, %v2033
  %v2042 = vadd.f32 %v30, %v2036
  %v2043 = vsel %vm82, %v2039, 0.0
  %2044 = vadd.xlane.f32.xlu0 %v2043
  %v2045 = vpop.xlane.xlu0 %2044
  %v2046 = vsel %vm82, %v2040, 0.0
  %2047 = vadd.xlane.f32.xlu0 %v2046
  %v2048 = vpop.xlane.xlu0 %2047
  %v2049 = vsel %vm82, %v2041, 0.0
  %2050 = vadd.xlane.f32.xlu0 %v2049
  %v2051 = vpop.xlane.xlu0 %2050
  %v2052 = vsel %vm82, %v2042, 0.0
  %2053 = vadd.xlane.f32.xlu0 %v2052
  %v2054 = vpop.xlane.xlu0 %2053
  %v2055 = vrcp.pop 32.0
  %v2056 = vmul.f32 %v2045, %v2055
  %v2057 = vmul.f32 %v2048, %v2055
  %v2058 = vmul.f32 %v2051, %v2055
  %v2059 = vmul.f32 %v2054, %v2055
  %v2060 = vsub.f32 %v2039, %v2056
  %v2061 = vsub.f32 %v2040, %v2057
  %v2062 = vsub.f32 %v2041, %v2058
  %v2063 = vsub.f32 %v2042, %v2059
  %v2064 = vmul.f32 %v2060, %v2060
  %v2065 = vmul.f32 %v2061, %v2061
  %v2066 = vmul.f32 %v2062, %v2062
  %v2067 = vmul.f32 %v2063, %v2063
  %v2068 = vsel %vm82, %v2064, 0.0
  %2069 = vadd.xlane.f32.xlu0 %v2068
  %v2070 = vpop.xlane.xlu0 %2069
  %v2071 = vsel %vm82, %v2065, 0.0
  %2072 = vadd.xlane.f32.xlu0 %v2071
  %v2073 = vpop.xlane.xlu0 %2072
  %v2074 = vsel %vm82, %v2066, 0.0
  %2075 = vadd.xlane.f32.xlu0 %v2074
  %v2076 = vpop.xlane.xlu0 %2075
  %v2077 = vsel %vm82, %v2067, 0.0
  %2078 = vadd.xlane.f32.xlu0 %v2077
  %v2079 = vpop.xlane.xlu0 %2078
  %v2080 = vmul.f32 %v2070, %v2055
  %v2081 = vmul.f32 %v2073, %v2055
  %v2082 = vmul.f32 %v2076, %v2055
  %v2083 = vmul.f32 %v2079, %v2055
  %v2084 = vadd.f32 %v2080, 1e-12
  %v2085 = vadd.f32 %v2081, 1e-12
  %v2086 = vadd.f32 %v2082, 1e-12
  %v2087 = vadd.f32 %v2083, 1e-12
  %v2088 = vrsqrt.pop %v2084
  %v2089 = vrsqrt.pop %v2085
  %v2090 = vrsqrt.pop %v2086
  %v2091 = vrsqrt.pop %v2087
  %v2092 = vmul.f32 %v2060, %v2088
  %v2093 = vmul.f32 %v2061, %v2089
  %v2094 = vmul.f32 %v2062, %v2090
  %v2095 = vmul.f32 %v2063, %v2091
  %v2096 = vlaneseq
  %v2097 = vshrl.u32 %v2096, 7
  %v2098 = vsub.s32 3, %v2097
  %v2099 = vrot.slane %v59, %v2098
  %v2100 = vmul.f32 %v2092, %v2099
  %v2101 = vmul.f32 %v2093, %v2099
  %v2102 = vmul.f32 %v2094, %v2099
  %v2103 = vmul.f32 %v2095, %v2099
  %v2104 = vlaneseq
  %v2105 = vshrl.u32 %v2104, 7
  %v2106 = vsub.s32 4, %v2105
  %v2107 = vrot.slane %v59, %v2106
  %v2108 = vadd.f32 %v2100, %v2107
  %v2109 = vadd.f32 %v2101, %v2107
  %v2110 = vadd.f32 %v2102, %v2107
  %v2111 = vadd.f32 %v2103, %v2107
  %v2112 = vpack.c.bf16 %v2109, %v2108
  %v2113 = vpack.c.bf16 %v2111, %v2110
  %v2114 = vld [vmem:[%s4] sm:$0xf]
  %v2115 = vld [vmem:[%s4 + $0x4] sm:$0xf]
  %v2116 = vld [vmem:[%s4 + $0x8] sm:$0xf]
  %v2117 = vld [vmem:[%s4 + $0xc] sm:$0xf]
  %v2118 = vlaneseq
  %v2119 = vshrl.u32 %v2118, 7
  %v2120 = vsub.s32 1, %v2119
  %v2121 = vrot.slane %v59, %v2120
  %v2126 = vunpack.c.l.b16 %v2114
  %v2127 = vunpack.c.l.b16 %v2115
  %v2128 = vunpack.c.l.b16 %v2116
  %v2129 = vunpack.c.l.b16 %v2117
  %v2130 = vpack.c.b16 %v2127, %v2126
  %v2131 = vpack.c.b16 %v2129, %v2128
  %v2135 = vsel %vm82, %v2112, 0
  %v2138 = vsel %vm82, %v2113, 0
  %2140 = vmatprep.subr.bf16.mxu0 0
  %2141 = vmatpush1.bf16.msra.mxu0 0
  %2142 = vmatprep.subr.bf16.mxu0 0
  %2143 = vmatpush1.bf16.msra.mxu0 0
  %2144 = vmatprep.subr.bf16.mxu0 0
  %2145 = vmatpush1.bf16.msra.mxu0 0
  %2146 = vmatprep.subr.bf16.mxu0 0
  %2147 = vmatpush1.bf16.msra.mxu0 0
  %2148 = vmatprep.subr.bf16.mxu0 0
  %2149 = vmatpush1.bf16.msra.mxu0 0
  %2150 = vmatprep.subr.bf16.mxu0 0
  %2151 = vmatpush1.bf16.msra.mxu0 0
  %2152 = vmatprep.subr.bf16.mxu0 0
  %2153 = vmatpush1.bf16.msra.mxu0 %v2131
  %2154 = vmatprep.subr.bf16.mxu0 0
  %2155 = vmatpush1.bf16.msra.mxu0 %v2130
  %2156 = vmatprep.subr.bf16.mxu0 0
  %2157 = vmatpush2.bf16.msra.mxu0 0
  %2158 = vmatprep.subr.bf16.mxu0 0
  %2159 = vmatpush2.bf16.msra.mxu0 0
  %2160 = vmatprep.subr.bf16.mxu0 0
  %2161 = vmatpush2.bf16.msra.mxu0 0
  %2162 = vmatprep.subr.bf16.mxu0 0
  %2163 = vmatpush2.bf16.msra.mxu0 0
  %2164 = vmatprep.subr.bf16.mxu0 0
  %2165 = vmatpush2.bf16.msra.mxu0 0
  %2166 = vmatprep.subr.bf16.mxu0 0
  %2167 = vmatpush2.bf16.msra.mxu0 0
  %2168 = vmatprep.subr.bf16.mxu0 0
  %2169 = vmatpush2.bf16.msra.mxu0 0
  %2170 = vmatprep.subr.bf16.mxu0 0
  %2171 = vmatpush2.bf16.msra.mxu0 0
  %2172 = vmatprep.mubr.bf16.mxu0 0
  %2173 = vmatmul.mubr.bf16.gmra.mxu0 %v2135
  %v2174 = vpop.f32.mrf.mxu0
  %v2175 = vadd.f32 %v2121, %v2174
  %v2176 = vpop.f32.mrf.mxu0
  %v2177 = vpop.f32.mrf.mxu0
  %v2178 = vadd.f32 %v2121, %v2177
  %v2179 = vpop.f32.mrf.mxu0
  %2180 = vmatprep.mubr.bf16.mxu0 0
  %2181 = vmatmul.mubr.bf16.gmra.mxu0 %v2138
  %v2182 = vpop.f32.mrf.mxu0
  %v2183 = vadd.f32 %v2121, %v2182
  %v2184 = vpop.f32.mrf.mxu0
  %v2185 = vpop.f32.mrf.mxu0
  %v2186 = vadd.f32 %v2121, %v2185
  %v2187 = vpop.f32.mrf.mxu0
  %2188 = vdwg.mxu0
  %v2189 = vmul.f32 %v2175, %v2175
  %v2190 = vmul.f32 %v2178, %v2178
  %v2191 = vmul.f32 %v2183, %v2183
  %v2192 = vmul.f32 %v2186, %v2186
  %v2193 = vmul.f32 %v2175, %v2189
  %v2194 = vmul.f32 %v2178, %v2190
  %v2195 = vmul.f32 %v2183, %v2191
  %v2196 = vmul.f32 %v2186, %v2192
  %v2197 = vmul.f32 %v2193, 0.044715
  %v2198 = vmul.f32 %v2194, 0.044715
  %v2199 = vmul.f32 %v2195, 0.044715
  %v2200 = vmul.f32 %v2196, 0.044715
  %v2201 = vadd.f32 %v2175, %v2197
  %v2202 = vadd.f32 %v2178, %v2198
  %v2203 = vadd.f32 %v2183, %v2199
  %v2204 = vadd.f32 %v2186, %v2200
  %v2205 = vmul.f32 %v2201, 0.7978846
  %v2206 = vmul.f32 %v2202, 0.7978846
  %v2207 = vmul.f32 %v2203, 0.7978846
  %v2208 = vmul.f32 %v2204, 0.7978846
  %v2209 = vtanh.pop %v2205
  %v2210 = vtanh.pop %v2206
  %v2211 = vtanh.pop %v2207
  %v2212 = vtanh.pop %v2208
  %v2213 = vadd.f32 %v2209, 1.0
  %v2214 = vadd.f32 %v2210, 1.0
  %v2215 = vadd.f32 %v2211, 1.0
  %v2216 = vadd.f32 %v2212, 1.0
  %v2217 = vmul.f32 %v2213, 0.5
  %v2218 = vmul.f32 %v2214, 0.5
  %v2219 = vmul.f32 %v2215, 0.5
  %v2220 = vmul.f32 %v2216, 0.5
  %v2221 = vmul.f32 %v2175, %v2217
  %v2222 = vmul.f32 %v2178, %v2218
  %v2223 = vmul.f32 %v2183, %v2219
  %v2224 = vmul.f32 %v2186, %v2220
  %v2225 = vpack.c.bf16 %v2222, %v2221
  %v2226 = vpack.c.bf16 %v2224, %v2223
  %v2227 = vld [vmem:[%s5] sm:$0xf]
  %v2228 = vld [vmem:[%s5 + $0x4] sm:$0xf]
  %v2229 = vld [vmem:[%s5 + $0x8] sm:$0xf]
  %v2230 = vld [vmem:[%s5 + $0xc] sm:$0xf]
  %v2231 = vld [vmem:[%s5 + $0x10] sm:$0xf]
  %v2232 = vld [vmem:[%s5 + $0x14] sm:$0xf]
  %v2233 = vld [vmem:[%s5 + $0x18] sm:$0xf]
  %v2234 = vld [vmem:[%s5 + $0x1c] sm:$0xf]
  %v2235 = vlaneseq
  %v2236 = vshrl.u32 %v2235, 7
  %v2237 = vsub.s32 5, %v2236
  %v2238 = vrot.slane %v59, %v2237
  %v2247 = vunpack.c.l.b16 %v2227
  %v2248 = vunpack.c.l.b16 %v2228
  %v2249 = vunpack.c.l.b16 %v2229
  %v2250 = vunpack.c.l.b16 %v2230
  %v2251 = vunpack.c.l.b16 %v2231
  %v2252 = vunpack.c.l.b16 %v2232
  %v2253 = vunpack.c.l.b16 %v2233
  %v2254 = vunpack.c.l.b16 %v2234
  %v2255 = vpack.c.b16 %v2248, %v2247
  %v2256 = vpack.c.b16 %v2250, %v2249
  %v2257 = vpack.c.b16 %v2252, %v2251
  %v2258 = vpack.c.b16 %v2254, %v2253
  %vm2263 = vcmask 523264
  %v2265 = vsel %vm2263, %v2225, 0
  %v2268 = vsel %vm2263, %v2226, 0
  %2270 = vmatprep.subr.bf16.mxu0 0
  %2271 = vmatpush1.bf16.msra.mxu0 0
  %2272 = vmatprep.subr.bf16.mxu0 0
  %2273 = vmatpush1.bf16.msra.mxu0 0
  %2274 = vmatprep.subr.bf16.mxu0 0
  %2275 = vmatpush1.bf16.msra.mxu0 0
  %2276 = vmatprep.subr.bf16.mxu0 0
  %2277 = vmatpush1.bf16.msra.mxu0 0
  %2278 = vmatprep.subr.bf16.mxu0 0
  %2279 = vmatpush1.bf16.msra.mxu0 %v2258
  %2280 = vmatprep.subr.bf16.mxu0 0
  %2281 = vmatpush1.bf16.msra.mxu0 %v2257
  %2282 = vmatprep.subr.bf16.mxu0 0
  %2283 = vmatpush1.bf16.msra.mxu0 %v2256
  %2284 = vmatprep.subr.bf16.mxu0 0
  %2285 = vmatpush1.bf16.msra.mxu0 %v2255
  %2286 = vmatprep.subr.bf16.mxu0 0
  %2287 = vmatpush2.bf16.msra.mxu0 0
  %2288 = vmatprep.subr.bf16.mxu0 0
  %2289 = vmatpush2.bf16.msra.mxu0 0
  %2290 = vmatprep.subr.bf16.mxu0 0
  %2291 = vmatpush2.bf16.msra.mxu0 0
  %2292 = vmatprep.subr.bf16.mxu0 0
  %2293 = vmatpush2.bf16.msra.mxu0 0
  %2294 = vmatprep.subr.bf16.mxu0 0
  %2295 = vmatpush2.bf16.msra.mxu0 0
  %2296 = vmatprep.subr.bf16.mxu0 0
  %2297 = vmatpush2.bf16.msra.mxu0 0
  %2298 = vmatprep.subr.bf16.mxu0 0
  %2299 = vmatpush2.bf16.msra.mxu0 0
  %2300 = vmatprep.subr.bf16.mxu0 0
  %2301 = vmatpush2.bf16.msra.mxu0 0
  %2302 = vmatprep.mubr.bf16.mxu0 0
  %2303 = vmatmul.mubr.bf16.gmra.mxu0 %v2265
  %v2304 = vpop.f32.mrf.mxu0
  %v2305 = vadd.f32 %v2238, %v2304
  %v2306 = vpop.f32.mrf.mxu0
  %v2307 = vpop.f32.mrf.mxu0
  %v2308 = vadd.f32 %v2238, %v2307
  %v2309 = vpop.f32.mrf.mxu0
  %2310 = vmatprep.mubr.bf16.mxu0 0
  %2311 = vmatmul.mubr.bf16.gmra.mxu0 %v2268
  %v2312 = vpop.f32.mrf.mxu0
  %v2313 = vadd.f32 %v2238, %v2312
  %v2314 = vpop.f32.mrf.mxu0
  %v2315 = vpop.f32.mrf.mxu0
  %v2316 = vadd.f32 %v2238, %v2315
  %v2317 = vpop.f32.mrf.mxu0
  %2318 = vdwg.mxu0
  %v2319 = vadd.f32 %v2108, %v2305
  %v2320 = vadd.f32 %v2109, %v2308
  %v2321 = vadd.f32 %v2110, %v2313
  %v2322 = vadd.f32 %v2111, %v2316
  %v2323 = vsel %vm82, %v2319, 0.0
  %2324 = vadd.xlane.f32.xlu0 %v2323
  %v2325 = vpop.xlane.xlu0 %2324
  %v2326 = vsel %vm82, %v2320, 0.0
  %2327 = vadd.xlane.f32.xlu0 %v2326
  %v2328 = vpop.xlane.xlu0 %2327
  %v2329 = vsel %vm82, %v2321, 0.0
  %2330 = vadd.xlane.f32.xlu0 %v2329
  %v2331 = vpop.xlane.xlu0 %2330
  %v2332 = vsel %vm82, %v2322, 0.0
  %2333 = vadd.xlane.f32.xlu0 %v2332
  %v2334 = vpop.xlane.xlu0 %2333
  %v2335 = vmul.f32 %v2325, %v2055
  %v2336 = vmul.f32 %v2328, %v2055
  %v2337 = vmul.f32 %v2331, %v2055
  %v2338 = vmul.f32 %v2334, %v2055
  %v2339 = vsub.f32 %v2319, %v2335
  %v2340 = vsub.f32 %v2320, %v2336
  %v2341 = vsub.f32 %v2321, %v2337
  %v2342 = vsub.f32 %v2322, %v2338
  %v2343 = vmul.f32 %v2339, %v2339
  %v2344 = vmul.f32 %v2340, %v2340
  %v2345 = vmul.f32 %v2341, %v2341
  %v2346 = vmul.f32 %v2342, %v2342
  %v2347 = vsel %vm82, %v2343, 0.0
  %2348 = vadd.xlane.f32.xlu0 %v2347
  %v2349 = vpop.xlane.xlu0 %2348
  %v2350 = vsel %vm82, %v2344, 0.0
  %2351 = vadd.xlane.f32.xlu0 %v2350
  %v2352 = vpop.xlane.xlu0 %2351
  %v2353 = vsel %vm82, %v2345, 0.0
  %2354 = vadd.xlane.f32.xlu0 %v2353
  %v2355 = vpop.xlane.xlu0 %2354
  %v2356 = vsel %vm82, %v2346, 0.0
  %2357 = vadd.xlane.f32.xlu0 %v2356
  %v2358 = vpop.xlane.xlu0 %2357
  %v2359 = vmul.f32 %v2349, %v2055
  %v2360 = vmul.f32 %v2352, %v2055
  %v2361 = vmul.f32 %v2355, %v2055
  %v2362 = vmul.f32 %v2358, %v2055
  %v2363 = vadd.f32 %v2359, 1e-12
  %v2364 = vadd.f32 %v2360, 1e-12
  %v2365 = vadd.f32 %v2361, 1e-12
  %v2366 = vadd.f32 %v2362, 1e-12
  %v2367 = vrsqrt.pop %v2363
  %v2368 = vrsqrt.pop %v2364
  %v2369 = vrsqrt.pop %v2365
  %v2370 = vrsqrt.pop %v2366
  %v2371 = vmul.f32 %v2339, %v2367
  %v2372 = vmul.f32 %v2340, %v2368
  %v2373 = vmul.f32 %v2341, %v2369
  %v2374 = vmul.f32 %v2342, %v2370
  %v2375 = vlaneseq
  %v2376 = vshrl.u32 %v2375, 7
  %v2377 = vsub.s32 6, %v2376
  %v2378 = vrot.slane %v59, %v2377
  %v2379 = vmul.f32 %v2371, %v2378
  %v2380 = vmul.f32 %v2372, %v2378
  %v2381 = vmul.f32 %v2373, %v2378
  %v2382 = vmul.f32 %v2374, %v2378
  %v2383 = vlaneseq
  %v2384 = vshrl.u32 %v2383, 7
  %v2385 = vsub.s32 7, %v2384
  %v2386 = vrot.slane %v59, %v2385
  %v2387 = vadd.f32 %v2379, %v2386
  %v2388 = vadd.f32 %v2380, %v2386
  %v2389 = vadd.f32 %v2381, %v2386
  %v2390 = vadd.f32 %v2382, %v2386
  %s2391 = scalar_lea.vmem %s6, 8
  %v2392 = vld [vmem:[%s2391] sm:$0xff]
  %v2393 = vpack.c.bf16 %v2388, %v2387
  %v2394 = vpack.c.bf16 %v2390, %v2389
  %s2395 = scalar_lea.vmem %s2, 16
  %v2396 = vld [vmem:[%s2395] sm:$0xf]
  %v2397 = vld [vmem:[%s2395 + $0x4] sm:$0xf]
  %v2398 = vld [vmem:[%s2395 + $0x8] sm:$0xf]
  %v2399 = vld [vmem:[%s2395 + $0xc] sm:$0xf]
  %v2400 = vlaneseq
  %v2401 = vshrl.u32 %v2400, 7
  %v2402 = vsub.s32 0, %v2401
  %v2403 = vrot.slane %v2392, %v2402
  %v2408 = vunpack.c.l.b16 %v2396
  %v2409 = vunpack.c.l.b16 %v2397
  %v2410 = vunpack.c.l.b16 %v2398
  %v2411 = vunpack.c.l.b16 %v2399
  %v2412 = vpack.c.b16 %v2409, %v2408
  %v2413 = vpack.c.b16 %v2411, %v2410
  %v2417 = vsel %vm82, %v2393, 0
  %v2420 = vsel %vm82, %v2394, 0
  %2422 = vmatprep.subr.bf16.mxu0 0
  %2423 = vmatpush1.bf16.msra.mxu0 0
  %2424 = vmatprep.subr.bf16.mxu0 0
  %2425 = vmatpush1.bf16.msra.mxu0 0
  %2426 = vmatprep.subr.bf16.mxu0 0
  %2427 = vmatpush1.bf16.msra.mxu0 0
  %2428 = vmatprep.subr.bf16.mxu0 0
  %2429 = vmatpush1.bf16.msra.mxu0 0
  %2430 = vmatprep.subr.bf16.mxu0 0
  %2431 = vmatpush1.bf16.msra.mxu0 0
  %2432 = vmatprep.subr.bf16.mxu0 0
  %2433 = vmatpush1.bf16.msra.mxu0 0
  %2434 = vmatprep.subr.bf16.mxu0 0
  %2435 = vmatpush1.bf16.msra.mxu0 %v2413
  %2436 = vmatprep.subr.bf16.mxu0 0
  %2437 = vmatpush1.bf16.msra.mxu0 %v2412
  %2438 = vmatprep.subr.bf16.mxu0 0
  %2439 = vmatpush2.bf16.msra.mxu0 0
  %2440 = vmatprep.subr.bf16.mxu0 0
  %2441 = vmatpush2.bf16.msra.mxu0 0
  %2442 = vmatprep.subr.bf16.mxu0 0
  %2443 = vmatpush2.bf16.msra.mxu0 0
  %2444 = vmatprep.subr.bf16.mxu0 0
  %2445 = vmatpush2.bf16.msra.mxu0 0
  %2446 = vmatprep.subr.bf16.mxu0 0
  %2447 = vmatpush2.bf16.msra.mxu0 0
  %2448 = vmatprep.subr.bf16.mxu0 0
  %2449 = vmatpush2.bf16.msra.mxu0 0
  %2450 = vmatprep.subr.bf16.mxu0 0
  %2451 = vmatpush2.bf16.msra.mxu0 0
  %2452 = vmatprep.subr.bf16.mxu0 0
  %2453 = vmatpush2.bf16.msra.mxu0 0
  %2454 = vmatprep.mubr.bf16.mxu0 0
  %2455 = vmatmul.mubr.bf16.gmra.mxu0 %v2417
  %v2456 = vpop.f32.mrf.mxu0
  %v2457 = vadd.f32 %v2403, %v2456
  %v2458 = vpop.f32.mrf.mxu0
  %v2459 = vpop.f32.mrf.mxu0
  %v2460 = vadd.f32 %v2403, %v2459
  %v2461 = vpop.f32.mrf.mxu0
  %2462 = vmatprep.mubr.bf16.mxu0 0
  %2463 = vmatmul.mubr.bf16.gmra.mxu0 %v2420
  %v2464 = vpop.f32.mrf.mxu0
  %v2465 = vadd.f32 %v2403, %v2464
  %v2466 = vpop.f32.mrf.mxu0
  %v2467 = vpop.f32.mrf.mxu0
  %v2468 = vadd.f32 %v2403, %v2467
  %v2469 = vpop.f32.mrf.mxu0
  %2470 = vdwg.mxu0
  %v2471 = vpack.c.bf16 %v2457, %v2457
  %v2472 = vpack.c.bf16 %v2460, %v2460
  %v2473 = vpack.c.bf16 %v2465, %v2465
  %v2474 = vpack.c.bf16 %v2468, %v2468
  %2476 = vrot.lane.b32.xlu0 %v2471, 96
  %v2477 = vpop.permute.xlu0 %2476
  %v2479 = vsel %vm145, %v2471, 0
  %v2482 = vsel %vm145, %v2477, 0
  %2484 = vmatprep.subr.bf16.mxu0 0
  %2485 = vmatpush1.bf16.xpose.msra.mxu0 0
  %2486 = vmatprep.subr.bf16.mxu0 0
  %2487 = vmatpush1.bf16.xpose.msra.mxu0 0
  %2488 = vmatprep.subr.bf16.mxu0 0
  %2489 = vmatpush1.bf16.xpose.msra.mxu0 0
  %2490 = vmatprep.subr.bf16.mxu0 0
  %2491 = vmatpush1.bf16.xpose.msra.mxu0 0
  %2492 = vmatprep.subr.bf16.mxu0 0
  %2493 = vmatpush1.bf16.xpose.msra.mxu0 0
  %2494 = vmatprep.subr.bf16.mxu0 0
  %2495 = vmatpush1.bf16.xpose.msra.mxu0 0
  %2496 = vmatprep.subr.bf16.mxu0 0
  %2497 = vmatpush1.bf16.xpose.msra.mxu0 0
  %2498 = vmatprep.subr.bf16.mxu0 0
  %2499 = vmatpush1.bf16.xpose.msra.mxu0 %v2482
  %2500 = vmatprep.subr.bf16.mxu0 0
  %2501 = vmatpush2.bf16.xpose.msra.mxu0 0
  %2502 = vmatprep.subr.bf16.mxu0 0
  %2503 = vmatpush2.bf16.xpose.msra.mxu0 0
  %2504 = vmatprep.subr.bf16.mxu0 0
  %2505 = vmatpush2.bf16.xpose.msra.mxu0 0
  %2506 = vmatprep.subr.bf16.mxu0 0
  %2507 = vmatpush2.bf16.xpose.msra.mxu0 0
  %2508 = vmatprep.subr.bf16.mxu0 0
  %2509 = vmatpush2.bf16.xpose.msra.mxu0 0
  %2510 = vmatprep.subr.bf16.mxu0 0
  %2511 = vmatpush2.bf16.xpose.msra.mxu0 0
  %2512 = vmatprep.subr.bf16.mxu0 0
  %2513 = vmatpush2.bf16.xpose.msra.mxu0 0
  %2514 = vmatprep.subr.bf16.mxu0 0
  %2515 = vmatpush2.bf16.xpose.msra.mxu0 0
  %2516 = vmatprep.mubr.bf16.mxu0 0
  %2517 = vmatmul.mubr.bf16.gmra.mxu0 %v2479
  %v2518 = vpop.f32.mrf.mxu0
  %v2519 = vadd.f32 %v42, %v2518
  %v2520 = vpop.f32.mrf.mxu0
  %v2521 = vpop.f32.mrf.mxu0
  %v2522 = vpop.f32.mrf.mxu0
  %2523 = vdwg.mxu0
  %2525 = vrot.lane.b32.xlu0 %v2472, 96
  %v2526 = vpop.permute.xlu0 %2525
  %v2528 = vsel %vm145, %v2472, 0
  %v2531 = vsel %vm145, %v2526, 0
  %2533 = vmatprep.subr.bf16.mxu0 0
  %2534 = vmatpush1.bf16.xpose.msra.mxu0 0
  %2535 = vmatprep.subr.bf16.mxu0 0
  %2536 = vmatpush1.bf16.xpose.msra.mxu0 0
  %2537 = vmatprep.subr.bf16.mxu0 0
  %2538 = vmatpush1.bf16.xpose.msra.mxu0 0
  %2539 = vmatprep.subr.bf16.mxu0 0
  %2540 = vmatpush1.bf16.xpose.msra.mxu0 0
  %2541 = vmatprep.subr.bf16.mxu0 0
  %2542 = vmatpush1.bf16.xpose.msra.mxu0 0
  %2543 = vmatprep.subr.bf16.mxu0 0
  %2544 = vmatpush1.bf16.xpose.msra.mxu0 0
  %2545 = vmatprep.subr.bf16.mxu0 0
  %2546 = vmatpush1.bf16.xpose.msra.mxu0 0
  %2547 = vmatprep.subr.bf16.mxu0 0
  %2548 = vmatpush1.bf16.xpose.msra.mxu0 %v2531
  %2549 = vmatprep.subr.bf16.mxu0 0
  %2550 = vmatpush2.bf16.xpose.msra.mxu0 0
  %2551 = vmatprep.subr.bf16.mxu0 0
  %2552 = vmatpush2.bf16.xpose.msra.mxu0 0
  %2553 = vmatprep.subr.bf16.mxu0 0
  %2554 = vmatpush2.bf16.xpose.msra.mxu0 0
  %2555 = vmatprep.subr.bf16.mxu0 0
  %2556 = vmatpush2.bf16.xpose.msra.mxu0 0
  %2557 = vmatprep.subr.bf16.mxu0 0
  %2558 = vmatpush2.bf16.xpose.msra.mxu0 0
  %2559 = vmatprep.subr.bf16.mxu0 0
  %2560 = vmatpush2.bf16.xpose.msra.mxu0 0
  %2561 = vmatprep.subr.bf16.mxu0 0
  %2562 = vmatpush2.bf16.xpose.msra.mxu0 0
  %2563 = vmatprep.subr.bf16.mxu0 0
  %2564 = vmatpush2.bf16.xpose.msra.mxu0 0
  %2565 = vmatprep.mubr.bf16.mxu0 0
  %2566 = vmatmul.mubr.bf16.gmra.mxu0 %v2528
  %v2567 = vpop.f32.mrf.mxu0
  %v2568 = vadd.f32 %v46, %v2567
  %v2569 = vpop.f32.mrf.mxu0
  %v2570 = vpop.f32.mrf.mxu0
  %v2571 = vpop.f32.mrf.mxu0
  %2572 = vdwg.mxu0
  %2574 = vrot.lane.b32.xlu0 %v2473, 96
  %v2575 = vpop.permute.xlu0 %2574
  %v2577 = vsel %vm145, %v2473, 0
  %v2580 = vsel %vm145, %v2575, 0
  %2582 = vmatprep.subr.bf16.mxu0 0
  %2583 = vmatpush1.bf16.xpose.msra.mxu0 0
  %2584 = vmatprep.subr.bf16.mxu0 0
  %2585 = vmatpush1.bf16.xpose.msra.mxu0 0
  %2586 = vmatprep.subr.bf16.mxu0 0
  %2587 = vmatpush1.bf16.xpose.msra.mxu0 0
  %2588 = vmatprep.subr.bf16.mxu0 0
  %2589 = vmatpush1.bf16.xpose.msra.mxu0 0
  %2590 = vmatprep.subr.bf16.mxu0 0
  %2591 = vmatpush1.bf16.xpose.msra.mxu0 0
  %2592 = vmatprep.subr.bf16.mxu0 0
  %2593 = vmatpush1.bf16.xpose.msra.mxu0 0
  %2594 = vmatprep.subr.bf16.mxu0 0
  %2595 = vmatpush1.bf16.xpose.msra.mxu0 0
  %2596 = vmatprep.subr.bf16.mxu0 0
  %2597 = vmatpush1.bf16.xpose.msra.mxu0 %v2580
  %2598 = vmatprep.subr.bf16.mxu0 0
  %2599 = vmatpush2.bf16.xpose.msra.mxu0 0
  %2600 = vmatprep.subr.bf16.mxu0 0
  %2601 = vmatpush2.bf16.xpose.msra.mxu0 0
  %2602 = vmatprep.subr.bf16.mxu0 0
  %2603 = vmatpush2.bf16.xpose.msra.mxu0 0
  %2604 = vmatprep.subr.bf16.mxu0 0
  %2605 = vmatpush2.bf16.xpose.msra.mxu0 0
  %2606 = vmatprep.subr.bf16.mxu0 0
  %2607 = vmatpush2.bf16.xpose.msra.mxu0 0
  %2608 = vmatprep.subr.bf16.mxu0 0
  %2609 = vmatpush2.bf16.xpose.msra.mxu0 0
  %2610 = vmatprep.subr.bf16.mxu0 0
  %2611 = vmatpush2.bf16.xpose.msra.mxu0 0
  %2612 = vmatprep.subr.bf16.mxu0 0
  %2613 = vmatpush2.bf16.xpose.msra.mxu0 0
  %2614 = vmatprep.mubr.bf16.mxu0 0
  %2615 = vmatmul.mubr.bf16.gmra.mxu0 %v2577
  %v2616 = vpop.f32.mrf.mxu0
  %v2617 = vadd.f32 %v50, %v2616
  %v2618 = vpop.f32.mrf.mxu0
  %v2619 = vpop.f32.mrf.mxu0
  %v2620 = vpop.f32.mrf.mxu0
  %2621 = vdwg.mxu0
  %2623 = vrot.lane.b32.xlu0 %v2474, 96
  %v2624 = vpop.permute.xlu0 %2623
  %v2626 = vsel %vm145, %v2474, 0
  %v2629 = vsel %vm145, %v2624, 0
  %2631 = vmatprep.subr.bf16.mxu0 0
  %2632 = vmatpush1.bf16.xpose.msra.mxu0 0
  %2633 = vmatprep.subr.bf16.mxu0 0
  %2634 = vmatpush1.bf16.xpose.msra.mxu0 0
  %2635 = vmatprep.subr.bf16.mxu0 0
  %2636 = vmatpush1.bf16.xpose.msra.mxu0 0
  %2637 = vmatprep.subr.bf16.mxu0 0
  %2638 = vmatpush1.bf16.xpose.msra.mxu0 0
  %2639 = vmatprep.subr.bf16.mxu0 0
  %2640 = vmatpush1.bf16.xpose.msra.mxu0 0
  %2641 = vmatprep.subr.bf16.mxu0 0
  %2642 = vmatpush1.bf16.xpose.msra.mxu0 0
  %2643 = vmatprep.subr.bf16.mxu0 0
  %2644 = vmatpush1.bf16.xpose.msra.mxu0 0
  %2645 = vmatprep.subr.bf16.mxu0 0
  %2646 = vmatpush1.bf16.xpose.msra.mxu0 %v2629
  %2647 = vmatprep.subr.bf16.mxu0 0
  %2648 = vmatpush2.bf16.xpose.msra.mxu0 0
  %2649 = vmatprep.subr.bf16.mxu0 0
  %2650 = vmatpush2.bf16.xpose.msra.mxu0 0
  %2651 = vmatprep.subr.bf16.mxu0 0
  %2652 = vmatpush2.bf16.xpose.msra.mxu0 0
  %2653 = vmatprep.subr.bf16.mxu0 0
  %2654 = vmatpush2.bf16.xpose.msra.mxu0 0
  %2655 = vmatprep.subr.bf16.mxu0 0
  %2656 = vmatpush2.bf16.xpose.msra.mxu0 0
  %2657 = vmatprep.subr.bf16.mxu0 0
  %2658 = vmatpush2.bf16.xpose.msra.mxu0 0
  %2659 = vmatprep.subr.bf16.mxu0 0
  %2660 = vmatpush2.bf16.xpose.msra.mxu0 0
  %2661 = vmatprep.subr.bf16.mxu0 0
  %2662 = vmatpush2.bf16.xpose.msra.mxu0 0
  %2663 = vmatprep.mubr.bf16.mxu0 0
  %2664 = vmatmul.mubr.bf16.gmra.mxu0 %v2626
  %v2665 = vpop.f32.mrf.mxu0
  %v2666 = vadd.f32 %v54, %v2665
  %v2667 = vpop.f32.mrf.mxu0
  %v2668 = vpop.f32.mrf.mxu0
  %v2669 = vpop.f32.mrf.mxu0
  %2670 = vdwg.mxu0
  %v2671 = vsel %vm145, %v2519, -inf
  %2672 = vmax.xlane.f32.xlu0 %v2671
  %v2673 = vpop.xlane.xlu0 %2672
  %v2674 = vsel %vm145, %v2568, -inf
  %2675 = vmax.xlane.f32.xlu0 %v2674
  %v2676 = vpop.xlane.xlu0 %2675
  %v2677 = vsel %vm145, %v2617, -inf
  %2678 = vmax.xlane.f32.xlu0 %v2677
  %v2679 = vpop.xlane.xlu0 %2678
  %v2680 = vsel %vm145, %v2666, -inf
  %2681 = vmax.xlane.f32.xlu0 %v2680
  %v2682 = vpop.xlane.xlu0 %2681
  %v2683 = vsub.f32 %v2519, %v2673
  %v2684 = vsub.f32 %v2568, %v2676
  %v2685 = vsub.f32 %v2617, %v2679
  %v2686 = vsub.f32 %v2666, %v2682
  %v2687 = vmul.f32 %v2683, 1.442695
  %v2688 = vpow.pop %v2687
  %v2689 = vmul.f32 %v2684, 1.442695
  %v2690 = vpow.pop %v2689
  %v2691 = vmul.f32 %v2685, 1.442695
  %v2692 = vpow.pop %v2691
  %v2693 = vmul.f32 %v2686, 1.442695
  %v2694 = vpow.pop %v2693
  %v2695 = vsel %vm145, %v2688, 0.0
  %2696 = vadd.xlane.f32.xlu0 %v2695
  %v2697 = vpop.xlane.xlu0 %2696
  %v2698 = vsel %vm145, %v2690, 0.0
  %2699 = vadd.xlane.f32.xlu0 %v2698
  %v2700 = vpop.xlane.xlu0 %2699
  %v2701 = vsel %vm145, %v2692, 0.0
  %2702 = vadd.xlane.f32.xlu0 %v2701
  %v2703 = vpop.xlane.xlu0 %2702
  %v2704 = vsel %vm145, %v2694, 0.0
  %2705 = vadd.xlane.f32.xlu0 %v2704
  %v2706 = vpop.xlane.xlu0 %2705
  %v2707 = vrcp.pop %v2697
  %v2708 = vrcp.pop %v2700
  %v2709 = vrcp.pop %v2703
  %v2710 = vrcp.pop %v2706
  %v2711 = vmul.f32 %v2688, %v2707
  %v2712 = vmul.f32 %v2690, %v2708
  %v2713 = vmul.f32 %v2692, %v2709
  %v2714 = vmul.f32 %v2694, %v2710
  %v2715 = vpack.c.bf16 %v2711, %v2711
  %v2716 = vpack.c.bf16 %v2712, %v2712
  %v2717 = vpack.c.bf16 %v2713, %v2713
  %v2718 = vpack.c.bf16 %v2714, %v2714
  %2719 = vrot.lane.b32.xlu0 %v2471, 64
  %v2720 = vpop.permute.xlu0 %2719
  %v2722 = vsel %vm145, %v2715, 0
  %v2725 = vsel %vm392, %v2720, 0
  %2727 = vmatprep.subr.bf16.mxu0 0
  %2728 = vmatpush1.bf16.msra.mxu0 0
  %2729 = vmatprep.subr.bf16.mxu0 0
  %2730 = vmatpush1.bf16.msra.mxu0 0
  %2731 = vmatprep.subr.bf16.mxu0 0
  %2732 = vmatpush1.bf16.msra.mxu0 0
  %2733 = vmatprep.subr.bf16.mxu0 0
  %2734 = vmatpush1.bf16.msra.mxu0 0
  %2735 = vmatprep.subr.bf16.mxu0 0
  %2736 = vmatpush1.bf16.msra.mxu0 0
  %2737 = vmatprep.subr.bf16.mxu0 0
  %2738 = vmatpush1.bf16.msra.mxu0 0
  %2739 = vmatprep.subr.bf16.mxu0 0
  %2740 = vmatpush1.bf16.msra.mxu0 0
  %2741 = vmatprep.subr.bf16.mxu0 0
  %2742 = vmatpush1.bf16.msra.mxu0 %v2725
  %2743 = vmatprep.subr.bf16.mxu0 0
  %2744 = vmatpush2.bf16.msra.mxu0 0
  %2745 = vmatprep.subr.bf16.mxu0 0
  %2746 = vmatpush2.bf16.msra.mxu0 0
  %2747 = vmatprep.subr.bf16.mxu0 0
  %2748 = vmatpush2.bf16.msra.mxu0 0
  %2749 = vmatprep.subr.bf16.mxu0 0
  %2750 = vmatpush2.bf16.msra.mxu0 0
  %2751 = vmatprep.subr.bf16.mxu0 0
  %2752 = vmatpush2.bf16.msra.mxu0 0
  %2753 = vmatprep.subr.bf16.mxu0 0
  %2754 = vmatpush2.bf16.msra.mxu0 0
  %2755 = vmatprep.subr.bf16.mxu0 0
  %2756 = vmatpush2.bf16.msra.mxu0 0
  %2757 = vmatprep.subr.bf16.mxu0 0
  %2758 = vmatpush2.bf16.msra.mxu0 0
  %2759 = vmatprep.mubr.bf16.mxu0 0
  %2760 = vmatmul.mubr.bf16.gmra.mxu0 %v2722
  %v2761 = vpop.f32.mrf.mxu0
  %v2762 = vadd.f32 0.0, %v2761
  %v2763 = vpop.f32.mrf.mxu0
  %v2764 = vpop.f32.mrf.mxu0
  %v2765 = vpop.f32.mrf.mxu0
  %2766 = vdwg.mxu0
  %2767 = vrot.lane.b32.xlu0 %v2472, 64
  %v2768 = vpop.permute.xlu0 %2767
  %v2770 = vsel %vm145, %v2716, 0
  %v2773 = vsel %vm392, %v2768, 0
  %2775 = vmatprep.subr.bf16.mxu0 0
  %2776 = vmatpush1.bf16.msra.mxu0 0
  %2777 = vmatprep.subr.bf16.mxu0 0
  %2778 = vmatpush1.bf16.msra.mxu0 0
  %2779 = vmatprep.subr.bf16.mxu0 0
  %2780 = vmatpush1.bf16.msra.mxu0 0
  %2781 = vmatprep.subr.bf16.mxu0 0
  %2782 = vmatpush1.bf16.msra.mxu0 0
  %2783 = vmatprep.subr.bf16.mxu0 0
  %2784 = vmatpush1.bf16.msra.mxu0 0
  %2785 = vmatprep.subr.bf16.mxu0 0
  %2786 = vmatpush1.bf16.msra.mxu0 0
  %2787 = vmatprep.subr.bf16.mxu0 0
  %2788 = vmatpush1.bf16.msra.mxu0 0
  %2789 = vmatprep.subr.bf16.mxu0 0
  %2790 = vmatpush1.bf16.msra.mxu0 %v2773
  %2791 = vmatprep.subr.bf16.mxu0 0
  %2792 = vmatpush2.bf16.msra.mxu0 0
  %2793 = vmatprep.subr.bf16.mxu0 0
  %2794 = vmatpush2.bf16.msra.mxu0 0
  %2795 = vmatprep.subr.bf16.mxu0 0
  %2796 = vmatpush2.bf16.msra.mxu0 0
  %2797 = vmatprep.subr.bf16.mxu0 0
  %2798 = vmatpush2.bf16.msra.mxu0 0
  %2799 = vmatprep.subr.bf16.mxu0 0
  %2800 = vmatpush2.bf16.msra.mxu0 0
  %2801 = vmatprep.subr.bf16.mxu0 0
  %2802 = vmatpush2.bf16.msra.mxu0 0
  %2803 = vmatprep.subr.bf16.mxu0 0
  %2804 = vmatpush2.bf16.msra.mxu0 0
  %2805 = vmatprep.subr.bf16.mxu0 0
  %2806 = vmatpush2.bf16.msra.mxu0 0
  %2807 = vmatprep.mubr.bf16.mxu0 0
  %2808 = vmatmul.mubr.bf16.gmra.mxu0 %v2770
  %v2809 = vpop.f32.mrf.mxu0
  %v2810 = vadd.f32 0.0, %v2809
  %v2811 = vpop.f32.mrf.mxu0
  %v2812 = vpop.f32.mrf.mxu0
  %v2813 = vpop.f32.mrf.mxu0
  %2814 = vdwg.mxu0
  %2815 = vrot.lane.b32.xlu0 %v2473, 64
  %v2816 = vpop.permute.xlu0 %2815
  %v2818 = vsel %vm145, %v2717, 0
  %v2821 = vsel %vm392, %v2816, 0
  %2823 = vmatprep.subr.bf16.mxu0 0
  %2824 = vmatpush1.bf16.msra.mxu0 0
  %2825 = vmatprep.subr.bf16.mxu0 0
  %2826 = vmatpush1.bf16.msra.mxu0 0
  %2827 = vmatprep.subr.bf16.mxu0 0
  %2828 = vmatpush1.bf16.msra.mxu0 0
  %2829 = vmatprep.subr.bf16.mxu0 0
  %2830 = vmatpush1.bf16.msra.mxu0 0
  %2831 = vmatprep.subr.bf16.mxu0 0
  %2832 = vmatpush1.bf16.msra.mxu0 0
  %2833 = vmatprep.subr.bf16.mxu0 0
  %2834 = vmatpush1.bf16.msra.mxu0 0
  %2835 = vmatprep.subr.bf16.mxu0 0
  %2836 = vmatpush1.bf16.msra.mxu0 0
  %2837 = vmatprep.subr.bf16.mxu0 0
  %2838 = vmatpush1.bf16.msra.mxu0 %v2821
  %2839 = vmatprep.subr.bf16.mxu0 0
  %2840 = vmatpush2.bf16.msra.mxu0 0
  %2841 = vmatprep.subr.bf16.mxu0 0
  %2842 = vmatpush2.bf16.msra.mxu0 0
  %2843 = vmatprep.subr.bf16.mxu0 0
  %2844 = vmatpush2.bf16.msra.mxu0 0
  %2845 = vmatprep.subr.bf16.mxu0 0
  %2846 = vmatpush2.bf16.msra.mxu0 0
  %2847 = vmatprep.subr.bf16.mxu0 0
  %2848 = vmatpush2.bf16.msra.mxu0 0
  %2849 = vmatprep.subr.bf16.mxu0 0
  %2850 = vmatpush2.bf16.msra.mxu0 0
  %2851 = vmatprep.subr.bf16.mxu0 0
  %2852 = vmatpush2.bf16.msra.mxu0 0
  %2853 = vmatprep.subr.bf16.mxu0 0
  %2854 = vmatpush2.bf16.msra.mxu0 0
  %2855 = vmatprep.mubr.bf16.mxu0 0
  %2856 = vmatmul.mubr.bf16.gmra.mxu0 %v2818
  %v2857 = vpop.f32.mrf.mxu0
  %v2858 = vadd.f32 0.0, %v2857
  %v2859 = vpop.f32.mrf.mxu0
  %v2860 = vpop.f32.mrf.mxu0
  %v2861 = vpop.f32.mrf.mxu0
  %2862 = vdwg.mxu0
  %2863 = vrot.lane.b32.xlu0 %v2474, 64
  %v2864 = vpop.permute.xlu0 %2863
  %v2866 = vsel %vm145, %v2718, 0
  %v2869 = vsel %vm392, %v2864, 0
  %2871 = vmatprep.subr.bf16.mxu0 0
  %2872 = vmatpush1.bf16.msra.mxu0 0
  %2873 = vmatprep.subr.bf16.mxu0 0
  %2874 = vmatpush1.bf16.msra.mxu0 0
  %2875 = vmatprep.subr.bf16.mxu0 0
  %2876 = vmatpush1.bf16.msra.mxu0 0
  %2877 = vmatprep.subr.bf16.mxu0 0
  %2878 = vmatpush1.bf16.msra.mxu0 0
  %2879 = vmatprep.subr.bf16.mxu0 0
  %2880 = vmatpush1.bf16.msra.mxu0 0
  %2881 = vmatprep.subr.bf16.mxu0 0
  %2882 = vmatpush1.bf16.msra.mxu0 0
  %2883 = vmatprep.subr.bf16.mxu0 0
  %2884 = vmatpush1.bf16.msra.mxu0 0
  %2885 = vmatprep.subr.bf16.mxu0 0
  %2886 = vmatpush1.bf16.msra.mxu0 %v2869
  %2887 = vmatprep.subr.bf16.mxu0 0
  %2888 = vmatpush2.bf16.msra.mxu0 0
  %2889 = vmatprep.subr.bf16.mxu0 0
  %2890 = vmatpush2.bf16.msra.mxu0 0
  %2891 = vmatprep.subr.bf16.mxu0 0
  %2892 = vmatpush2.bf16.msra.mxu0 0
  %2893 = vmatprep.subr.bf16.mxu0 0
  %2894 = vmatpush2.bf16.msra.mxu0 0
  %2895 = vmatprep.subr.bf16.mxu0 0
  %2896 = vmatpush2.bf16.msra.mxu0 0
  %2897 = vmatprep.subr.bf16.mxu0 0
  %2898 = vmatpush2.bf16.msra.mxu0 0
  %2899 = vmatprep.subr.bf16.mxu0 0
  %2900 = vmatpush2.bf16.msra.mxu0 0
  %2901 = vmatprep.subr.bf16.mxu0 0
  %2902 = vmatpush2.bf16.msra.mxu0 0
  %2903 = vmatprep.mubr.bf16.mxu0 0
  %2904 = vmatmul.mubr.bf16.gmra.mxu0 %v2866
  %v2905 = vpop.f32.mrf.mxu0
  %v2906 = vadd.f32 0.0, %v2905
  %v2907 = vpop.f32.mrf.mxu0
  %v2908 = vpop.f32.mrf.mxu0
  %v2909 = vpop.f32.mrf.mxu0
  %2910 = vdwg.mxu0
  %2911 = vrot.lane.b32.xlu0 %v2471, 120
  %v2912 = vpop.permute.xlu0 %2911
  %2913 = vrot.lane.b32.xlu0 %v2471, 88
  %v2914 = vpop.permute.xlu0 %2913
  %v2916 = vsel %vm145, %v2912, 0
  %v2919 = vsel %vm145, %v2914, 0
  %2921 = vmatprep.subr.bf16.mxu0 0
  %2922 = vmatpush1.bf16.xpose.msra.mxu0 0
  %2923 = vmatprep.subr.bf16.mxu0 0
  %2924 = vmatpush1.bf16.xpose.msra.mxu0 0
  %2925 = vmatprep.subr.bf16.mxu0 0
  %2926 = vmatpush1.bf16.xpose.msra.mxu0 0
  %2927 = vmatprep.subr.bf16.mxu0 0
  %2928 = vmatpush1.bf16.xpose.msra.mxu0 0
  %2929 = vmatprep.subr.bf16.mxu0 0
  %2930 = vmatpush1.bf16.xpose.msra.mxu0 0
  %2931 = vmatprep.subr.bf16.mxu0 0
  %2932 = vmatpush1.bf16.xpose.msra.mxu0 0
  %2933 = vmatprep.subr.bf16.mxu0 0
  %2934 = vmatpush1.bf16.xpose.msra.mxu0 0
  %2935 = vmatprep.subr.bf16.mxu0 0
  %2936 = vmatpush1.bf16.xpose.msra.mxu0 %v2919
  %2937 = vmatprep.subr.bf16.mxu0 0
  %2938 = vmatpush2.bf16.xpose.msra.mxu0 0
  %2939 = vmatprep.subr.bf16.mxu0 0
  %2940 = vmatpush2.bf16.xpose.msra.mxu0 0
  %2941 = vmatprep.subr.bf16.mxu0 0
  %2942 = vmatpush2.bf16.xpose.msra.mxu0 0
  %2943 = vmatprep.subr.bf16.mxu0 0
  %2944 = vmatpush2.bf16.xpose.msra.mxu0 0
  %2945 = vmatprep.subr.bf16.mxu0 0
  %2946 = vmatpush2.bf16.xpose.msra.mxu0 0
  %2947 = vmatprep.subr.bf16.mxu0 0
  %2948 = vmatpush2.bf16.xpose.msra.mxu0 0
  %2949 = vmatprep.subr.bf16.mxu0 0
  %2950 = vmatpush2.bf16.xpose.msra.mxu0 0
  %2951 = vmatprep.subr.bf16.mxu0 0
  %2952 = vmatpush2.bf16.xpose.msra.mxu0 0
  %2953 = vmatprep.mubr.bf16.mxu0 0
  %2954 = vmatmul.mubr.bf16.gmra.mxu0 %v2916
  %v2955 = vpop.f32.mrf.mxu0
  %v2956 = vadd.f32 %v42, %v2955
  %v2957 = vpop.f32.mrf.mxu0
  %v2958 = vpop.f32.mrf.mxu0
  %v2959 = vpop.f32.mrf.mxu0
  %2960 = vdwg.mxu0
  %2961 = vrot.lane.b32.xlu0 %v2472, 120
  %v2962 = vpop.permute.xlu0 %2961
  %2963 = vrot.lane.b32.xlu0 %v2472, 88
  %v2964 = vpop.permute.xlu0 %2963
  %v2966 = vsel %vm145, %v2962, 0
  %v2969 = vsel %vm145, %v2964, 0
  %2971 = vmatprep.subr.bf16.mxu0 0
  %2972 = vmatpush1.bf16.xpose.msra.mxu0 0
  %2973 = vmatprep.subr.bf16.mxu0 0
  %2974 = vmatpush1.bf16.xpose.msra.mxu0 0
  %2975 = vmatprep.subr.bf16.mxu0 0
  %2976 = vmatpush1.bf16.xpose.msra.mxu0 0
  %2977 = vmatprep.subr.bf16.mxu0 0
  %2978 = vmatpush1.bf16.xpose.msra.mxu0 0
  %2979 = vmatprep.subr.bf16.mxu0 0
  %2980 = vmatpush1.bf16.xpose.msra.mxu0 0
  %2981 = vmatprep.subr.bf16.mxu0 0
  %2982 = vmatpush1.bf16.xpose.msra.mxu0 0
  %2983 = vmatprep.subr.bf16.mxu0 0
  %2984 = vmatpush1.bf16.xpose.msra.mxu0 0
  %2985 = vmatprep.subr.bf16.mxu0 0
  %2986 = vmatpush1.bf16.xpose.msra.mxu0 %v2969
  %2987 = vmatprep.subr.bf16.mxu0 0
  %2988 = vmatpush2.bf16.xpose.msra.mxu0 0
  %2989 = vmatprep.subr.bf16.mxu0 0
  %2990 = vmatpush2.bf16.xpose.msra.mxu0 0
  %2991 = vmatprep.subr.bf16.mxu0 0
  %2992 = vmatpush2.bf16.xpose.msra.mxu0 0
  %2993 = vmatprep.subr.bf16.mxu0 0
  %2994 = vmatpush2.bf16.xpose.msra.mxu0 0
  %2995 = vmatprep.subr.bf16.mxu0 0
  %2996 = vmatpush2.bf16.xpose.msra.mxu0 0
  %2997 = vmatprep.subr.bf16.mxu0 0
  %2998 = vmatpush2.bf16.xpose.msra.mxu0 0
  %2999 = vmatprep.subr.bf16.mxu0 0
  %3000 = vmatpush2.bf16.xpose.msra.mxu0 0
  %3001 = vmatprep.subr.bf16.mxu0 0
  %3002 = vmatpush2.bf16.xpose.msra.mxu0 0
  %3003 = vmatprep.mubr.bf16.mxu0 0
  %3004 = vmatmul.mubr.bf16.gmra.mxu0 %v2966
  %v3005 = vpop.f32.mrf.mxu0
  %v3006 = vadd.f32 %v46, %v3005
  %v3007 = vpop.f32.mrf.mxu0
  %v3008 = vpop.f32.mrf.mxu0
  %v3009 = vpop.f32.mrf.mxu0
  %3010 = vdwg.mxu0
  %3011 = vrot.lane.b32.xlu0 %v2473, 120
  %v3012 = vpop.permute.xlu0 %3011
  %3013 = vrot.lane.b32.xlu0 %v2473, 88
  %v3014 = vpop.permute.xlu0 %3013
  %v3016 = vsel %vm145, %v3012, 0
  %v3019 = vsel %vm145, %v3014, 0
  %3021 = vmatprep.subr.bf16.mxu0 0
  %3022 = vmatpush1.bf16.xpose.msra.mxu0 0
  %3023 = vmatprep.subr.bf16.mxu0 0
  %3024 = vmatpush1.bf16.xpose.msra.mxu0 0
  %3025 = vmatprep.subr.bf16.mxu0 0
  %3026 = vmatpush1.bf16.xpose.msra.mxu0 0
  %3027 = vmatprep.subr.bf16.mxu0 0
  %3028 = vmatpush1.bf16.xpose.msra.mxu0 0
  %3029 = vmatprep.subr.bf16.mxu0 0
  %3030 = vmatpush1.bf16.xpose.msra.mxu0 0
  %3031 = vmatprep.subr.bf16.mxu0 0
  %3032 = vmatpush1.bf16.xpose.msra.mxu0 0
  %3033 = vmatprep.subr.bf16.mxu0 0
  %3034 = vmatpush1.bf16.xpose.msra.mxu0 0
  %3035 = vmatprep.subr.bf16.mxu0 0
  %3036 = vmatpush1.bf16.xpose.msra.mxu0 %v3019
  %3037 = vmatprep.subr.bf16.mxu0 0
  %3038 = vmatpush2.bf16.xpose.msra.mxu0 0
  %3039 = vmatprep.subr.bf16.mxu0 0
  %3040 = vmatpush2.bf16.xpose.msra.mxu0 0
  %3041 = vmatprep.subr.bf16.mxu0 0
  %3042 = vmatpush2.bf16.xpose.msra.mxu0 0
  %3043 = vmatprep.subr.bf16.mxu0 0
  %3044 = vmatpush2.bf16.xpose.msra.mxu0 0
  %3045 = vmatprep.subr.bf16.mxu0 0
  %3046 = vmatpush2.bf16.xpose.msra.mxu0 0
  %3047 = vmatprep.subr.bf16.mxu0 0
  %3048 = vmatpush2.bf16.xpose.msra.mxu0 0
  %3049 = vmatprep.subr.bf16.mxu0 0
  %3050 = vmatpush2.bf16.xpose.msra.mxu0 0
  %3051 = vmatprep.subr.bf16.mxu0 0
  %3052 = vmatpush2.bf16.xpose.msra.mxu0 0
  %3053 = vmatprep.mubr.bf16.mxu0 0
  %3054 = vmatmul.mubr.bf16.gmra.mxu0 %v3016
  %v3055 = vpop.f32.mrf.mxu0
  %v3056 = vadd.f32 %v50, %v3055
  %v3057 = vpop.f32.mrf.mxu0
  %v3058 = vpop.f32.mrf.mxu0
  %v3059 = vpop.f32.mrf.mxu0
  %3060 = vdwg.mxu0
  %3061 = vrot.lane.b32.xlu0 %v2474, 120
  %v3062 = vpop.permute.xlu0 %3061
  %3063 = vrot.lane.b32.xlu0 %v2474, 88
  %v3064 = vpop.permute.xlu0 %3063
  %v3066 = vsel %vm145, %v3062, 0
  %v3069 = vsel %vm145, %v3064, 0
  %3071 = vmatprep.subr.bf16.mxu0 0
  %3072 = vmatpush1.bf16.xpose.msra.mxu0 0
  %3073 = vmatprep.subr.bf16.mxu0 0
  %3074 = vmatpush1.bf16.xpose.msra.mxu0 0
  %3075 = vmatprep.subr.bf16.mxu0 0
  %3076 = vmatpush1.bf16.xpose.msra.mxu0 0
  %3077 = vmatprep.subr.bf16.mxu0 0
  %3078 = vmatpush1.bf16.xpose.msra.mxu0 0
  %3079 = vmatprep.subr.bf16.mxu0 0
  %3080 = vmatpush1.bf16.xpose.msra.mxu0 0
  %3081 = vmatprep.subr.bf16.mxu0 0
  %3082 = vmatpush1.bf16.xpose.msra.mxu0 0
  %3083 = vmatprep.subr.bf16.mxu0 0
  %3084 = vmatpush1.bf16.xpose.msra.mxu0 0
  %3085 = vmatprep.subr.bf16.mxu0 0
  %3086 = vmatpush1.bf16.xpose.msra.mxu0 %v3069
  %3087 = vmatprep.subr.bf16.mxu0 0
  %3088 = vmatpush2.bf16.xpose.msra.mxu0 0
  %3089 = vmatprep.subr.bf16.mxu0 0
  %3090 = vmatpush2.bf16.xpose.msra.mxu0 0
  %3091 = vmatprep.subr.bf16.mxu0 0
  %3092 = vmatpush2.bf16.xpose.msra.mxu0 0
  %3093 = vmatprep.subr.bf16.mxu0 0
  %3094 = vmatpush2.bf16.xpose.msra.mxu0 0
  %3095 = vmatprep.subr.bf16.mxu0 0
  %3096 = vmatpush2.bf16.xpose.msra.mxu0 0
  %3097 = vmatprep.subr.bf16.mxu0 0
  %3098 = vmatpush2.bf16.xpose.msra.mxu0 0
  %3099 = vmatprep.subr.bf16.mxu0 0
  %3100 = vmatpush2.bf16.xpose.msra.mxu0 0
  %3101 = vmatprep.subr.bf16.mxu0 0
  %3102 = vmatpush2.bf16.xpose.msra.mxu0 0
  %3103 = vmatprep.mubr.bf16.mxu0 0
  %3104 = vmatmul.mubr.bf16.gmra.mxu0 %v3066
  %v3105 = vpop.f32.mrf.mxu0
  %v3106 = vadd.f32 %v54, %v3105
  %v3107 = vpop.f32.mrf.mxu0
  %v3108 = vpop.f32.mrf.mxu0
  %v3109 = vpop.f32.mrf.mxu0
  %3110 = vdwg.mxu0
  %v3111 = vsel %vm145, %v2956, -inf
  %3112 = vmax.xlane.f32.xlu0 %v3111
  %v3113 = vpop.xlane.xlu0 %3112
  %v3114 = vsel %vm145, %v3006, -inf
  %3115 = vmax.xlane.f32.xlu0 %v3114
  %v3116 = vpop.xlane.xlu0 %3115
  %v3117 = vsel %vm145, %v3056, -inf
  %3118 = vmax.xlane.f32.xlu0 %v3117
  %v3119 = vpop.xlane.xlu0 %3118
  %v3120 = vsel %vm145, %v3106, -inf
  %3121 = vmax.xlane.f32.xlu0 %v3120
  %v3122 = vpop.xlane.xlu0 %3121
  %v3123 = vsub.f32 %v2956, %v3113
  %v3124 = vsub.f32 %v3006, %v3116
  %v3125 = vsub.f32 %v3056, %v3119
  %v3126 = vsub.f32 %v3106, %v3122
  %v3127 = vmul.f32 %v3123, 1.442695
  %v3128 = vpow.pop %v3127
  %v3129 = vmul.f32 %v3124, 1.442695
  %v3130 = vpow.pop %v3129
  %v3131 = vmul.f32 %v3125, 1.442695
  %v3132 = vpow.pop %v3131
  %v3133 = vmul.f32 %v3126, 1.442695
  %v3134 = vpow.pop %v3133
  %v3135 = vsel %vm145, %v3128, 0.0
  %3136 = vadd.xlane.f32.xlu0 %v3135
  %v3137 = vpop.xlane.xlu0 %3136
  %v3138 = vsel %vm145, %v3130, 0.0
  %3139 = vadd.xlane.f32.xlu0 %v3138
  %v3140 = vpop.xlane.xlu0 %3139
  %v3141 = vsel %vm145, %v3132, 0.0
  %3142 = vadd.xlane.f32.xlu0 %v3141
  %v3143 = vpop.xlane.xlu0 %3142
  %v3144 = vsel %vm145, %v3134, 0.0
  %3145 = vadd.xlane.f32.xlu0 %v3144
  %v3146 = vpop.xlane.xlu0 %3145
  %v3147 = vrcp.pop %v3137
  %v3148 = vrcp.pop %v3140
  %v3149 = vrcp.pop %v3143
  %v3150 = vrcp.pop %v3146
  %v3151 = vmul.f32 %v3128, %v3147
  %v3152 = vmul.f32 %v3130, %v3148
  %v3153 = vmul.f32 %v3132, %v3149
  %v3154 = vmul.f32 %v3134, %v3150
  %v3155 = vpack.c.bf16 %v3151, %v3151
  %v3156 = vpack.c.bf16 %v3152, %v3152
  %v3157 = vpack.c.bf16 %v3153, %v3153
  %v3158 = vpack.c.bf16 %v3154, %v3154
  %3159 = vrot.lane.b32.xlu0 %v2471, 56
  %v3160 = vpop.permute.xlu0 %3159
  %v3162 = vsel %vm145, %v3155, 0
  %v3165 = vsel %vm392, %v3160, 0
  %3167 = vmatprep.subr.bf16.mxu0 0
  %3168 = vmatpush1.bf16.msra.mxu0 0
  %3169 = vmatprep.subr.bf16.mxu0 0
  %3170 = vmatpush1.bf16.msra.mxu0 0
  %3171 = vmatprep.subr.bf16.mxu0 0
  %3172 = vmatpush1.bf16.msra.mxu0 0
  %3173 = vmatprep.subr.bf16.mxu0 0
  %3174 = vmatpush1.bf16.msra.mxu0 0
  %3175 = vmatprep.subr.bf16.mxu0 0
  %3176 = vmatpush1.bf16.msra.mxu0 0
  %3177 = vmatprep.subr.bf16.mxu0 0
  %3178 = vmatpush1.bf16.msra.mxu0 0
  %3179 = vmatprep.subr.bf16.mxu0 0
  %3180 = vmatpush1.bf16.msra.mxu0 0
  %3181 = vmatprep.subr.bf16.mxu0 0
  %3182 = vmatpush1.bf16.msra.mxu0 %v3165
  %3183 = vmatprep.subr.bf16.mxu0 0
  %3184 = vmatpush2.bf16.msra.mxu0 0
  %3185 = vmatprep.subr.bf16.mxu0 0
  %3186 = vmatpush2.bf16.msra.mxu0 0
  %3187 = vmatprep.subr.bf16.mxu0 0
  %3188 = vmatpush2.bf16.msra.mxu0 0
  %3189 = vmatprep.subr.bf16.mxu0 0
  %3190 = vmatpush2.bf16.msra.mxu0 0
  %3191 = vmatprep.subr.bf16.mxu0 0
  %3192 = vmatpush2.bf16.msra.mxu0 0
  %3193 = vmatprep.subr.bf16.mxu0 0
  %3194 = vmatpush2.bf16.msra.mxu0 0
  %3195 = vmatprep.subr.bf16.mxu0 0
  %3196 = vmatpush2.bf16.msra.mxu0 0
  %3197 = vmatprep.subr.bf16.mxu0 0
  %3198 = vmatpush2.bf16.msra.mxu0 0
  %3199 = vmatprep.mubr.bf16.mxu0 0
  %3200 = vmatmul.mubr.bf16.gmra.mxu0 %v3162
  %v3201 = vpop.f32.mrf.mxu0
  %v3202 = vadd.f32 0.0, %v3201
  %v3203 = vpop.f32.mrf.mxu0
  %v3204 = vpop.f32.mrf.mxu0
  %v3205 = vpop.f32.mrf.mxu0
  %3206 = vdwg.mxu0
  %3207 = vrot.lane.b32.xlu0 %v2472, 56
  %v3208 = vpop.permute.xlu0 %3207
  %v3210 = vsel %vm145, %v3156, 0
  %v3213 = vsel %vm392, %v3208, 0
  %3215 = vmatprep.subr.bf16.mxu0 0
  %3216 = vmatpush1.bf16.msra.mxu0 0
  %3217 = vmatprep.subr.bf16.mxu0 0
  %3218 = vmatpush1.bf16.msra.mxu0 0
  %3219 = vmatprep.subr.bf16.mxu0 0
  %3220 = vmatpush1.bf16.msra.mxu0 0
  %3221 = vmatprep.subr.bf16.mxu0 0
  %3222 = vmatpush1.bf16.msra.mxu0 0
  %3223 = vmatprep.subr.bf16.mxu0 0
  %3224 = vmatpush1.bf16.msra.mxu0 0
  %3225 = vmatprep.subr.bf16.mxu0 0
  %3226 = vmatpush1.bf16.msra.mxu0 0
  %3227 = vmatprep.subr.bf16.mxu0 0
  %3228 = vmatpush1.bf16.msra.mxu0 0
  %3229 = vmatprep.subr.bf16.mxu0 0
  %3230 = vmatpush1.bf16.msra.mxu0 %v3213
  %3231 = vmatprep.subr.bf16.mxu0 0
  %3232 = vmatpush2.bf16.msra.mxu0 0
  %3233 = vmatprep.subr.bf16.mxu0 0
  %3234 = vmatpush2.bf16.msra.mxu0 0
  %3235 = vmatprep.subr.bf16.mxu0 0
  %3236 = vmatpush2.bf16.msra.mxu0 0
  %3237 = vmatprep.subr.bf16.mxu0 0
  %3238 = vmatpush2.bf16.msra.mxu0 0
  %3239 = vmatprep.subr.bf16.mxu0 0
  %3240 = vmatpush2.bf16.msra.mxu0 0
  %3241 = vmatprep.subr.bf16.mxu0 0
  %3242 = vmatpush2.bf16.msra.mxu0 0
  %3243 = vmatprep.subr.bf16.mxu0 0
  %3244 = vmatpush2.bf16.msra.mxu0 0
  %3245 = vmatprep.subr.bf16.mxu0 0
  %3246 = vmatpush2.bf16.msra.mxu0 0
  %3247 = vmatprep.mubr.bf16.mxu0 0
  %3248 = vmatmul.mubr.bf16.gmra.mxu0 %v3210
  %v3249 = vpop.f32.mrf.mxu0
  %v3250 = vadd.f32 0.0, %v3249
  %v3251 = vpop.f32.mrf.mxu0
  %v3252 = vpop.f32.mrf.mxu0
  %v3253 = vpop.f32.mrf.mxu0
  %3254 = vdwg.mxu0
  %3255 = vrot.lane.b32.xlu0 %v2473, 56
  %v3256 = vpop.permute.xlu0 %3255
  %v3258 = vsel %vm145, %v3157, 0
  %v3261 = vsel %vm392, %v3256, 0
  %3263 = vmatprep.subr.bf16.mxu0 0
  %3264 = vmatpush1.bf16.msra.mxu0 0
  %3265 = vmatprep.subr.bf16.mxu0 0
  %3266 = vmatpush1.bf16.msra.mxu0 0
  %3267 = vmatprep.subr.bf16.mxu0 0
  %3268 = vmatpush1.bf16.msra.mxu0 0
  %3269 = vmatprep.subr.bf16.mxu0 0
  %3270 = vmatpush1.bf16.msra.mxu0 0
  %3271 = vmatprep.subr.bf16.mxu0 0
  %3272 = vmatpush1.bf16.msra.mxu0 0
  %3273 = vmatprep.subr.bf16.mxu0 0
  %3274 = vmatpush1.bf16.msra.mxu0 0
  %3275 = vmatprep.subr.bf16.mxu0 0
  %3276 = vmatpush1.bf16.msra.mxu0 0
  %3277 = vmatprep.subr.bf16.mxu0 0
  %3278 = vmatpush1.bf16.msra.mxu0 %v3261
  %3279 = vmatprep.subr.bf16.mxu0 0
  %3280 = vmatpush2.bf16.msra.mxu0 0
  %3281 = vmatprep.subr.bf16.mxu0 0
  %3282 = vmatpush2.bf16.msra.mxu0 0
  %3283 = vmatprep.subr.bf16.mxu0 0
  %3284 = vmatpush2.bf16.msra.mxu0 0
  %3285 = vmatprep.subr.bf16.mxu0 0
  %3286 = vmatpush2.bf16.msra.mxu0 0
  %3287 = vmatprep.subr.bf16.mxu0 0
  %3288 = vmatpush2.bf16.msra.mxu0 0
  %3289 = vmatprep.subr.bf16.mxu0 0
  %3290 = vmatpush2.bf16.msra.mxu0 0
  %3291 = vmatprep.subr.bf16.mxu0 0
  %3292 = vmatpush2.bf16.msra.mxu0 0
  %3293 = vmatprep.subr.bf16.mxu0 0
  %3294 = vmatpush2.bf16.msra.mxu0 0
  %3295 = vmatprep.mubr.bf16.mxu0 0
  %3296 = vmatmul.mubr.bf16.gmra.mxu0 %v3258
  %v3297 = vpop.f32.mrf.mxu0
  %v3298 = vadd.f32 0.0, %v3297
  %v3299 = vpop.f32.mrf.mxu0
  %v3300 = vpop.f32.mrf.mxu0
  %v3301 = vpop.f32.mrf.mxu0
  %3302 = vdwg.mxu0
  %3303 = vrot.lane.b32.xlu0 %v2474, 56
  %v3304 = vpop.permute.xlu0 %3303
  %v3306 = vsel %vm145, %v3158, 0
  %v3309 = vsel %vm392, %v3304, 0
  %3311 = vmatprep.subr.bf16.mxu0 0
  %3312 = vmatpush1.bf16.msra.mxu0 0
  %3313 = vmatprep.subr.bf16.mxu0 0
  %3314 = vmatpush1.bf16.msra.mxu0 0
  %3315 = vmatprep.subr.bf16.mxu0 0
  %3316 = vmatpush1.bf16.msra.mxu0 0
  %3317 = vmatprep.subr.bf16.mxu0 0
  %3318 = vmatpush1.bf16.msra.mxu0 0
  %3319 = vmatprep.subr.bf16.mxu0 0
  %3320 = vmatpush1.bf16.msra.mxu0 0
  %3321 = vmatprep.subr.bf16.mxu0 0
  %3322 = vmatpush1.bf16.msra.mxu0 0
  %3323 = vmatprep.subr.bf16.mxu0 0
  %3324 = vmatpush1.bf16.msra.mxu0 0
  %3325 = vmatprep.subr.bf16.mxu0 0
  %3326 = vmatpush1.bf16.msra.mxu0 %v3309
  %3327 = vmatprep.subr.bf16.mxu0 0
  %3328 = vmatpush2.bf16.msra.mxu0 0
  %3329 = vmatprep.subr.bf16.mxu0 0
  %3330 = vmatpush2.bf16.msra.mxu0 0
  %3331 = vmatprep.subr.bf16.mxu0 0
  %3332 = vmatpush2.bf16.msra.mxu0 0
  %3333 = vmatprep.subr.bf16.mxu0 0
  %3334 = vmatpush2.bf16.msra.mxu0 0
  %3335 = vmatprep.subr.bf16.mxu0 0
  %3336 = vmatpush2.bf16.msra.mxu0 0
  %3337 = vmatprep.subr.bf16.mxu0 0
  %3338 = vmatpush2.bf16.msra.mxu0 0
  %3339 = vmatprep.subr.bf16.mxu0 0
  %3340 = vmatpush2.bf16.msra.mxu0 0
  %3341 = vmatprep.subr.bf16.mxu0 0
  %3342 = vmatpush2.bf16.msra.mxu0 0
  %3343 = vmatprep.mubr.bf16.mxu0 0
  %3344 = vmatmul.mubr.bf16.gmra.mxu0 %v3306
  %v3345 = vpop.f32.mrf.mxu0
  %v3346 = vadd.f32 0.0, %v3345
  %v3347 = vpop.f32.mrf.mxu0
  %v3348 = vpop.f32.mrf.mxu0
  %v3349 = vpop.f32.mrf.mxu0
  %3350 = vdwg.mxu0
  %3351 = vrot.lane.b32.xlu0 %v2471, 112
  %v3352 = vpop.permute.xlu0 %3351
  %3353 = vrot.lane.b32.xlu0 %v2471, 80
  %v3354 = vpop.permute.xlu0 %3353
  %v3356 = vsel %vm145, %v3352, 0
  %v3359 = vsel %vm145, %v3354, 0
  %3361 = vmatprep.subr.bf16.mxu0 0
  %3362 = vmatpush1.bf16.xpose.msra.mxu0 0
  %3363 = vmatprep.subr.bf16.mxu0 0
  %3364 = vmatpush1.bf16.xpose.msra.mxu0 0
  %3365 = vmatprep.subr.bf16.mxu0 0
  %3366 = vmatpush1.bf16.xpose.msra.mxu0 0
  %3367 = vmatprep.subr.bf16.mxu0 0
  %3368 = vmatpush1.bf16.xpose.msra.mxu0 0
  %3369 = vmatprep.subr.bf16.mxu0 0
  %3370 = vmatpush1.bf16.xpose.msra.mxu0 0
  %3371 = vmatprep.subr.bf16.mxu0 0
  %3372 = vmatpush1.bf16.xpose.msra.mxu0 0
  %3373 = vmatprep.subr.bf16.mxu0 0
  %3374 = vmatpush1.bf16.xpose.msra.mxu0 0
  %3375 = vmatprep.subr.bf16.mxu0 0
  %3376 = vmatpush1.bf16.xpose.msra.mxu0 %v3359
  %3377 = vmatprep.subr.bf16.mxu0 0
  %3378 = vmatpush2.bf16.xpose.msra.mxu0 0
  %3379 = vmatprep.subr.bf16.mxu0 0
  %3380 = vmatpush2.bf16.xpose.msra.mxu0 0
  %3381 = vmatprep.subr.bf16.mxu0 0
  %3382 = vmatpush2.bf16.xpose.msra.mxu0 0
  %3383 = vmatprep.subr.bf16.mxu0 0
  %3384 = vmatpush2.bf16.xpose.msra.mxu0 0
  %3385 = vmatprep.subr.bf16.mxu0 0
  %3386 = vmatpush2.bf16.xpose.msra.mxu0 0
  %3387 = vmatprep.subr.bf16.mxu0 0
  %3388 = vmatpush2.bf16.xpose.msra.mxu0 0
  %3389 = vmatprep.subr.bf16.mxu0 0
  %3390 = vmatpush2.bf16.xpose.msra.mxu0 0
  %3391 = vmatprep.subr.bf16.mxu0 0
  %3392 = vmatpush2.bf16.xpose.msra.mxu0 0
  %3393 = vmatprep.mubr.bf16.mxu0 0
  %3394 = vmatmul.mubr.bf16.gmra.mxu0 %v3356
  %v3395 = vpop.f32.mrf.mxu0
  %v3396 = vadd.f32 %v42, %v3395
  %v3397 = vpop.f32.mrf.mxu0
  %v3398 = vpop.f32.mrf.mxu0
  %v3399 = vpop.f32.mrf.mxu0
  %3400 = vdwg.mxu0
  %3401 = vrot.lane.b32.xlu0 %v2472, 112
  %v3402 = vpop.permute.xlu0 %3401
  %3403 = vrot.lane.b32.xlu0 %v2472, 80
  %v3404 = vpop.permute.xlu0 %3403
  %v3406 = vsel %vm145, %v3402, 0
  %v3409 = vsel %vm145, %v3404, 0
  %3411 = vmatprep.subr.bf16.mxu0 0
  %3412 = vmatpush1.bf16.xpose.msra.mxu0 0
  %3413 = vmatprep.subr.bf16.mxu0 0
  %3414 = vmatpush1.bf16.xpose.msra.mxu0 0
  %3415 = vmatprep.subr.bf16.mxu0 0
  %3416 = vmatpush1.bf16.xpose.msra.mxu0 0
  %3417 = vmatprep.subr.bf16.mxu0 0
  %3418 = vmatpush1.bf16.xpose.msra.mxu0 0
  %3419 = vmatprep.subr.bf16.mxu0 0
  %3420 = vmatpush1.bf16.xpose.msra.mxu0 0
  %3421 = vmatprep.subr.bf16.mxu0 0
  %3422 = vmatpush1.bf16.xpose.msra.mxu0 0
  %3423 = vmatprep.subr.bf16.mxu0 0
  %3424 = vmatpush1.bf16.xpose.msra.mxu0 0
  %3425 = vmatprep.subr.bf16.mxu0 0
  %3426 = vmatpush1.bf16.xpose.msra.mxu0 %v3409
  %3427 = vmatprep.subr.bf16.mxu0 0
  %3428 = vmatpush2.bf16.xpose.msra.mxu0 0
  %3429 = vmatprep.subr.bf16.mxu0 0
  %3430 = vmatpush2.bf16.xpose.msra.mxu0 0
  %3431 = vmatprep.subr.bf16.mxu0 0
  %3432 = vmatpush2.bf16.xpose.msra.mxu0 0
  %3433 = vmatprep.subr.bf16.mxu0 0
  %3434 = vmatpush2.bf16.xpose.msra.mxu0 0
  %3435 = vmatprep.subr.bf16.mxu0 0
  %3436 = vmatpush2.bf16.xpose.msra.mxu0 0
  %3437 = vmatprep.subr.bf16.mxu0 0
  %3438 = vmatpush2.bf16.xpose.msra.mxu0 0
  %3439 = vmatprep.subr.bf16.mxu0 0
  %3440 = vmatpush2.bf16.xpose.msra.mxu0 0
  %3441 = vmatprep.subr.bf16.mxu0 0
  %3442 = vmatpush2.bf16.xpose.msra.mxu0 0
  %3443 = vmatprep.mubr.bf16.mxu0 0
  %3444 = vmatmul.mubr.bf16.gmra.mxu0 %v3406
  %v3445 = vpop.f32.mrf.mxu0
  %v3446 = vadd.f32 %v46, %v3445
  %v3447 = vpop.f32.mrf.mxu0
  %v3448 = vpop.f32.mrf.mxu0
  %v3449 = vpop.f32.mrf.mxu0
  %3450 = vdwg.mxu0
  %3451 = vrot.lane.b32.xlu0 %v2473, 112
  %v3452 = vpop.permute.xlu0 %3451
  %3453 = vrot.lane.b32.xlu0 %v2473, 80
  %v3454 = vpop.permute.xlu0 %3453
  %v3456 = vsel %vm145, %v3452, 0
  %v3459 = vsel %vm145, %v3454, 0
  %3461 = vmatprep.subr.bf16.mxu0 0
  %3462 = vmatpush1.bf16.xpose.msra.mxu0 0
  %3463 = vmatprep.subr.bf16.mxu0 0
  %3464 = vmatpush1.bf16.xpose.msra.mxu0 0
  %3465 = vmatprep.subr.bf16.mxu0 0
  %3466 = vmatpush1.bf16.xpose.msra.mxu0 0
  %3467 = vmatprep.subr.bf16.mxu0 0
  %3468 = vmatpush1.bf16.xpose.msra.mxu0 0
  %3469 = vmatprep.subr.bf16.mxu0 0
  %3470 = vmatpush1.bf16.xpose.msra.mxu0 0
  %3471 = vmatprep.subr.bf16.mxu0 0
  %3472 = vmatpush1.bf16.xpose.msra.mxu0 0
  %3473 = vmatprep.subr.bf16.mxu0 0
  %3474 = vmatpush1.bf16.xpose.msra.mxu0 0
  %3475 = vmatprep.subr.bf16.mxu0 0
  %3476 = vmatpush1.bf16.xpose.msra.mxu0 %v3459
  %3477 = vmatprep.subr.bf16.mxu0 0
  %3478 = vmatpush2.bf16.xpose.msra.mxu0 0
  %3479 = vmatprep.subr.bf16.mxu0 0
  %3480 = vmatpush2.bf16.xpose.msra.mxu0 0
  %3481 = vmatprep.subr.bf16.mxu0 0
  %3482 = vmatpush2.bf16.xpose.msra.mxu0 0
  %3483 = vmatprep.subr.bf16.mxu0 0
  %3484 = vmatpush2.bf16.xpose.msra.mxu0 0
  %3485 = vmatprep.subr.bf16.mxu0 0
  %3486 = vmatpush2.bf16.xpose.msra.mxu0 0
  %3487 = vmatprep.subr.bf16.mxu0 0
  %3488 = vmatpush2.bf16.xpose.msra.mxu0 0
  %3489 = vmatprep.subr.bf16.mxu0 0
  %3490 = vmatpush2.bf16.xpose.msra.mxu0 0
  %3491 = vmatprep.subr.bf16.mxu0 0
  %3492 = vmatpush2.bf16.xpose.msra.mxu0 0
  %3493 = vmatprep.mubr.bf16.mxu0 0
  %3494 = vmatmul.mubr.bf16.gmra.mxu0 %v3456
  %v3495 = vpop.f32.mrf.mxu0
  %v3496 = vadd.f32 %v50, %v3495
  %v3497 = vpop.f32.mrf.mxu0
  %v3498 = vpop.f32.mrf.mxu0
  %v3499 = vpop.f32.mrf.mxu0
  %3500 = vdwg.mxu0
  %3501 = vrot.lane.b32.xlu0 %v2474, 112
  %v3502 = vpop.permute.xlu0 %3501
  %3503 = vrot.lane.b32.xlu0 %v2474, 80
  %v3504 = vpop.permute.xlu0 %3503
  %v3506 = vsel %vm145, %v3502, 0
  %v3509 = vsel %vm145, %v3504, 0
  %3511 = vmatprep.subr.bf16.mxu0 0
  %3512 = vmatpush1.bf16.xpose.msra.mxu0 0
  %3513 = vmatprep.subr.bf16.mxu0 0
  %3514 = vmatpush1.bf16.xpose.msra.mxu0 0
  %3515 = vmatprep.subr.bf16.mxu0 0
  %3516 = vmatpush1.bf16.xpose.msra.mxu0 0
  %3517 = vmatprep.subr.bf16.mxu0 0
  %3518 = vmatpush1.bf16.xpose.msra.mxu0 0
  %3519 = vmatprep.subr.bf16.mxu0 0
  %3520 = vmatpush1.bf16.xpose.msra.mxu0 0
  %3521 = vmatprep.subr.bf16.mxu0 0
  %3522 = vmatpush1.bf16.xpose.msra.mxu0 0
  %3523 = vmatprep.subr.bf16.mxu0 0
  %3524 = vmatpush1.bf16.xpose.msra.mxu0 0
  %3525 = vmatprep.subr.bf16.mxu0 0
  %3526 = vmatpush1.bf16.xpose.msra.mxu0 %v3509
  %3527 = vmatprep.subr.bf16.mxu0 0
  %3528 = vmatpush2.bf16.xpose.msra.mxu0 0
  %3529 = vmatprep.subr.bf16.mxu0 0
  %3530 = vmatpush2.bf16.xpose.msra.mxu0 0
  %3531 = vmatprep.subr.bf16.mxu0 0
  %3532 = vmatpush2.bf16.xpose.msra.mxu0 0
  %3533 = vmatprep.subr.bf16.mxu0 0
  %3534 = vmatpush2.bf16.xpose.msra.mxu0 0
  %3535 = vmatprep.subr.bf16.mxu0 0
  %3536 = vmatpush2.bf16.xpose.msra.mxu0 0
  %3537 = vmatprep.subr.bf16.mxu0 0
  %3538 = vmatpush2.bf16.xpose.msra.mxu0 0
  %3539 = vmatprep.subr.bf16.mxu0 0
  %3540 = vmatpush2.bf16.xpose.msra.mxu0 0
  %3541 = vmatprep.subr.bf16.mxu0 0
  %3542 = vmatpush2.bf16.xpose.msra.mxu0 0
  %3543 = vmatprep.mubr.bf16.mxu0 0
  %3544 = vmatmul.mubr.bf16.gmra.mxu0 %v3506
  %v3545 = vpop.f32.mrf.mxu0
  %v3546 = vadd.f32 %v54, %v3545
  %v3547 = vpop.f32.mrf.mxu0
  %v3548 = vpop.f32.mrf.mxu0
  %v3549 = vpop.f32.mrf.mxu0
  %3550 = vdwg.mxu0
  %v3551 = vsel %vm145, %v3396, -inf
  %3552 = vmax.xlane.f32.xlu0 %v3551
  %v3553 = vpop.xlane.xlu0 %3552
  %v3554 = vsel %vm145, %v3446, -inf
  %3555 = vmax.xlane.f32.xlu0 %v3554
  %v3556 = vpop.xlane.xlu0 %3555
  %v3557 = vsel %vm145, %v3496, -inf
  %3558 = vmax.xlane.f32.xlu0 %v3557
  %v3559 = vpop.xlane.xlu0 %3558
  %v3560 = vsel %vm145, %v3546, -inf
  %3561 = vmax.xlane.f32.xlu0 %v3560
  %v3562 = vpop.xlane.xlu0 %3561
  %v3563 = vsub.f32 %v3396, %v3553
  %v3564 = vsub.f32 %v3446, %v3556
  %v3565 = vsub.f32 %v3496, %v3559
  %v3566 = vsub.f32 %v3546, %v3562
  %v3567 = vmul.f32 %v3563, 1.442695
  %v3568 = vpow.pop %v3567
  %v3569 = vmul.f32 %v3564, 1.442695
  %v3570 = vpow.pop %v3569
  %v3571 = vmul.f32 %v3565, 1.442695
  %v3572 = vpow.pop %v3571
  %v3573 = vmul.f32 %v3566, 1.442695
  %v3574 = vpow.pop %v3573
  %v3575 = vsel %vm145, %v3568, 0.0
  %3576 = vadd.xlane.f32.xlu0 %v3575
  %v3577 = vpop.xlane.xlu0 %3576
  %v3578 = vsel %vm145, %v3570, 0.0
  %3579 = vadd.xlane.f32.xlu0 %v3578
  %v3580 = vpop.xlane.xlu0 %3579
  %v3581 = vsel %vm145, %v3572, 0.0
  %3582 = vadd.xlane.f32.xlu0 %v3581
  %v3583 = vpop.xlane.xlu0 %3582
  %v3584 = vsel %vm145, %v3574, 0.0
  %3585 = vadd.xlane.f32.xlu0 %v3584
  %v3586 = vpop.xlane.xlu0 %3585
  %v3587 = vrcp.pop %v3577
  %v3588 = vrcp.pop %v3580
  %v3589 = vrcp.pop %v3583
  %v3590 = vrcp.pop %v3586
  %v3591 = vmul.f32 %v3568, %v3587
  %v3592 = vmul.f32 %v3570, %v3588
  %v3593 = vmul.f32 %v3572, %v3589
  %v3594 = vmul.f32 %v3574, %v3590
  %v3595 = vpack.c.bf16 %v3591, %v3591
  %v3596 = vpack.c.bf16 %v3592, %v3592
  %v3597 = vpack.c.bf16 %v3593, %v3593
  %v3598 = vpack.c.bf16 %v3594, %v3594
  %3599 = vrot.lane.b32.xlu0 %v2471, 48
  %v3600 = vpop.permute.xlu0 %3599
  %v3602 = vsel %vm145, %v3595, 0
  %v3605 = vsel %vm392, %v3600, 0
  %3607 = vmatprep.subr.bf16.mxu0 0
  %3608 = vmatpush1.bf16.msra.mxu0 0
  %3609 = vmatprep.subr.bf16.mxu0 0
  %3610 = vmatpush1.bf16.msra.mxu0 0
  %3611 = vmatprep.subr.bf16.mxu0 0
  %3612 = vmatpush1.bf16.msra.mxu0 0
  %3613 = vmatprep.subr.bf16.mxu0 0
  %3614 = vmatpush1.bf16.msra.mxu0 0
  %3615 = vmatprep.subr.bf16.mxu0 0
  %3616 = vmatpush1.bf16.msra.mxu0 0
  %3617 = vmatprep.subr.bf16.mxu0 0
  %3618 = vmatpush1.bf16.msra.mxu0 0
  %3619 = vmatprep.subr.bf16.mxu0 0
  %3620 = vmatpush1.bf16.msra.mxu0 0
  %3621 = vmatprep.subr.bf16.mxu0 0
  %3622 = vmatpush1.bf16.msra.mxu0 %v3605
  %3623 = vmatprep.subr.bf16.mxu0 0
  %3624 = vmatpush2.bf16.msra.mxu0 0
  %3625 = vmatprep.subr.bf16.mxu0 0
  %3626 = vmatpush2.bf16.msra.mxu0 0
  %3627 = vmatprep.subr.bf16.mxu0 0
  %3628 = vmatpush2.bf16.msra.mxu0 0
  %3629 = vmatprep.subr.bf16.mxu0 0
  %3630 = vmatpush2.bf16.msra.mxu0 0
  %3631 = vmatprep.subr.bf16.mxu0 0
  %3632 = vmatpush2.bf16.msra.mxu0 0
  %3633 = vmatprep.subr.bf16.mxu0 0
  %3634 = vmatpush2.bf16.msra.mxu0 0
  %3635 = vmatprep.subr.bf16.mxu0 0
  %3636 = vmatpush2.bf16.msra.mxu0 0
  %3637 = vmatprep.subr.bf16.mxu0 0
  %3638 = vmatpush2.bf16.msra.mxu0 0
  %3639 = vmatprep.mubr.bf16.mxu0 0
  %3640 = vmatmul.mubr.bf16.gmra.mxu0 %v3602
  %v3641 = vpop.f32.mrf.mxu0
  %v3642 = vadd.f32 0.0, %v3641
  %v3643 = vpop.f32.mrf.mxu0
  %v3644 = vpop.f32.mrf.mxu0
  %v3645 = vpop.f32.mrf.mxu0
  %3646 = vdwg.mxu0
  %3647 = vrot.lane.b32.xlu0 %v2472, 48
  %v3648 = vpop.permute.xlu0 %3647
  %v3650 = vsel %vm145, %v3596, 0
  %v3653 = vsel %vm392, %v3648, 0
  %3655 = vmatprep.subr.bf16.mxu0 0
  %3656 = vmatpush1.bf16.msra.mxu0 0
  %3657 = vmatprep.subr.bf16.mxu0 0
  %3658 = vmatpush1.bf16.msra.mxu0 0
  %3659 = vmatprep.subr.bf16.mxu0 0
  %3660 = vmatpush1.bf16.msra.mxu0 0
  %3661 = vmatprep.subr.bf16.mxu0 0
  %3662 = vmatpush1.bf16.msra.mxu0 0
  %3663 = vmatprep.subr.bf16.mxu0 0
  %3664 = vmatpush1.bf16.msra.mxu0 0
  %3665 = vmatprep.subr.bf16.mxu0 0
  %3666 = vmatpush1.bf16.msra.mxu0 0
  %3667 = vmatprep.subr.bf16.mxu0 0
  %3668 = vmatpush1.bf16.msra.mxu0 0
  %3669 = vmatprep.subr.bf16.mxu0 0
  %3670 = vmatpush1.bf16.msra.mxu0 %v3653
  %3671 = vmatprep.subr.bf16.mxu0 0
  %3672 = vmatpush2.bf16.msra.mxu0 0
  %3673 = vmatprep.subr.bf16.mxu0 0
  %3674 = vmatpush2.bf16.msra.mxu0 0
  %3675 = vmatprep.subr.bf16.mxu0 0
  %3676 = vmatpush2.bf16.msra.mxu0 0
  %3677 = vmatprep.subr.bf16.mxu0 0
  %3678 = vmatpush2.bf16.msra.mxu0 0
  %3679 = vmatprep.subr.bf16.mxu0 0
  %3680 = vmatpush2.bf16.msra.mxu0 0
  %3681 = vmatprep.subr.bf16.mxu0 0
  %3682 = vmatpush2.bf16.msra.mxu0 0
  %3683 = vmatprep.subr.bf16.mxu0 0
  %3684 = vmatpush2.bf16.msra.mxu0 0
  %3685 = vmatprep.subr.bf16.mxu0 0
  %3686 = vmatpush2.bf16.msra.mxu0 0
  %3687 = vmatprep.mubr.bf16.mxu0 0
  %3688 = vmatmul.mubr.bf16.gmra.mxu0 %v3650
  %v3689 = vpop.f32.mrf.mxu0
  %v3690 = vadd.f32 0.0, %v3689
  %v3691 = vpop.f32.mrf.mxu0
  %v3692 = vpop.f32.mrf.mxu0
  %v3693 = vpop.f32.mrf.mxu0
  %3694 = vdwg.mxu0
  %3695 = vrot.lane.b32.xlu0 %v2473, 48
  %v3696 = vpop.permute.xlu0 %3695
  %v3698 = vsel %vm145, %v3597, 0
  %v3701 = vsel %vm392, %v3696, 0
  %3703 = vmatprep.subr.bf16.mxu0 0
  %3704 = vmatpush1.bf16.msra.mxu0 0
  %3705 = vmatprep.subr.bf16.mxu0 0
  %3706 = vmatpush1.bf16.msra.mxu0 0
  %3707 = vmatprep.subr.bf16.mxu0 0
  %3708 = vmatpush1.bf16.msra.mxu0 0
  %3709 = vmatprep.subr.bf16.mxu0 0
  %3710 = vmatpush1.bf16.msra.mxu0 0
  %3711 = vmatprep.subr.bf16.mxu0 0
  %3712 = vmatpush1.bf16.msra.mxu0 0
  %3713 = vmatprep.subr.bf16.mxu0 0
  %3714 = vmatpush1.bf16.msra.mxu0 0
  %3715 = vmatprep.subr.bf16.mxu0 0
  %3716 = vmatpush1.bf16.msra.mxu0 0
  %3717 = vmatprep.subr.bf16.mxu0 0
  %3718 = vmatpush1.bf16.msra.mxu0 %v3701
  %3719 = vmatprep.subr.bf16.mxu0 0
  %3720 = vmatpush2.bf16.msra.mxu0 0
  %3721 = vmatprep.subr.bf16.mxu0 0
  %3722 = vmatpush2.bf16.msra.mxu0 0
  %3723 = vmatprep.subr.bf16.mxu0 0
  %3724 = vmatpush2.bf16.msra.mxu0 0
  %3725 = vmatprep.subr.bf16.mxu0 0
  %3726 = vmatpush2.bf16.msra.mxu0 0
  %3727 = vmatprep.subr.bf16.mxu0 0
  %3728 = vmatpush2.bf16.msra.mxu0 0
  %3729 = vmatprep.subr.bf16.mxu0 0
  %3730 = vmatpush2.bf16.msra.mxu0 0
  %3731 = vmatprep.subr.bf16.mxu0 0
  %3732 = vmatpush2.bf16.msra.mxu0 0
  %3733 = vmatprep.subr.bf16.mxu0 0
  %3734 = vmatpush2.bf16.msra.mxu0 0
  %3735 = vmatprep.mubr.bf16.mxu0 0
  %3736 = vmatmul.mubr.bf16.gmra.mxu0 %v3698
  %v3737 = vpop.f32.mrf.mxu0
  %v3738 = vadd.f32 0.0, %v3737
  %v3739 = vpop.f32.mrf.mxu0
  %v3740 = vpop.f32.mrf.mxu0
  %v3741 = vpop.f32.mrf.mxu0
  %3742 = vdwg.mxu0
  %3743 = vrot.lane.b32.xlu0 %v2474, 48
  %v3744 = vpop.permute.xlu0 %3743
  %v3746 = vsel %vm145, %v3598, 0
  %v3749 = vsel %vm392, %v3744, 0
  %3751 = vmatprep.subr.bf16.mxu0 0
  %3752 = vmatpush1.bf16.msra.mxu0 0
  %3753 = vmatprep.subr.bf16.mxu0 0
  %3754 = vmatpush1.bf16.msra.mxu0 0
  %3755 = vmatprep.subr.bf16.mxu0 0
  %3756 = vmatpush1.bf16.msra.mxu0 0
  %3757 = vmatprep.subr.bf16.mxu0 0
  %3758 = vmatpush1.bf16.msra.mxu0 0
  %3759 = vmatprep.subr.bf16.mxu0 0
  %3760 = vmatpush1.bf16.msra.mxu0 0
  %3761 = vmatprep.subr.bf16.mxu0 0
  %3762 = vmatpush1.bf16.msra.mxu0 0
  %3763 = vmatprep.subr.bf16.mxu0 0
  %3764 = vmatpush1.bf16.msra.mxu0 0
  %3765 = vmatprep.subr.bf16.mxu0 0
  %3766 = vmatpush1.bf16.msra.mxu0 %v3749
  %3767 = vmatprep.subr.bf16.mxu0 0
  %3768 = vmatpush2.bf16.msra.mxu0 0
  %3769 = vmatprep.subr.bf16.mxu0 0
  %3770 = vmatpush2.bf16.msra.mxu0 0
  %3771 = vmatprep.subr.bf16.mxu0 0
  %3772 = vmatpush2.bf16.msra.mxu0 0
  %3773 = vmatprep.subr.bf16.mxu0 0
  %3774 = vmatpush2.bf16.msra.mxu0 0
  %3775 = vmatprep.subr.bf16.mxu0 0
  %3776 = vmatpush2.bf16.msra.mxu0 0
  %3777 = vmatprep.subr.bf16.mxu0 0
  %3778 = vmatpush2.bf16.msra.mxu0 0
  %3779 = vmatprep.subr.bf16.mxu0 0
  %3780 = vmatpush2.bf16.msra.mxu0 0
  %3781 = vmatprep.subr.bf16.mxu0 0
  %3782 = vmatpush2.bf16.msra.mxu0 0
  %3783 = vmatprep.mubr.bf16.mxu0 0
  %3784 = vmatmul.mubr.bf16.gmra.mxu0 %v3746
  %v3785 = vpop.f32.mrf.mxu0
  %v3786 = vadd.f32 0.0, %v3785
  %v3787 = vpop.f32.mrf.mxu0
  %v3788 = vpop.f32.mrf.mxu0
  %v3789 = vpop.f32.mrf.mxu0
  %3790 = vdwg.mxu0
  %3791 = vrot.lane.b32.xlu0 %v2471, 104
  %v3792 = vpop.permute.xlu0 %3791
  %3793 = vrot.lane.b32.xlu0 %v2471, 72
  %v3794 = vpop.permute.xlu0 %3793
  %v3796 = vsel %vm145, %v3792, 0
  %v3799 = vsel %vm145, %v3794, 0
  %3801 = vmatprep.subr.bf16.mxu0 0
  %3802 = vmatpush1.bf16.xpose.msra.mxu0 0
  %3803 = vmatprep.subr.bf16.mxu0 0
  %3804 = vmatpush1.bf16.xpose.msra.mxu0 0
  %3805 = vmatprep.subr.bf16.mxu0 0
  %3806 = vmatpush1.bf16.xpose.msra.mxu0 0
  %3807 = vmatprep.subr.bf16.mxu0 0
  %3808 = vmatpush1.bf16.xpose.msra.mxu0 0
  %3809 = vmatprep.subr.bf16.mxu0 0
  %3810 = vmatpush1.bf16.xpose.msra.mxu0 0
  %3811 = vmatprep.subr.bf16.mxu0 0
  %3812 = vmatpush1.bf16.xpose.msra.mxu0 0
  %3813 = vmatprep.subr.bf16.mxu0 0
  %3814 = vmatpush1.bf16.xpose.msra.mxu0 0
  %3815 = vmatprep.subr.bf16.mxu0 0
  %3816 = vmatpush1.bf16.xpose.msra.mxu0 %v3799
  %3817 = vmatprep.subr.bf16.mxu0 0
  %3818 = vmatpush2.bf16.xpose.msra.mxu0 0
  %3819 = vmatprep.subr.bf16.mxu0 0
  %3820 = vmatpush2.bf16.xpose.msra.mxu0 0
  %3821 = vmatprep.subr.bf16.mxu0 0
  %3822 = vmatpush2.bf16.xpose.msra.mxu0 0
  %3823 = vmatprep.subr.bf16.mxu0 0
  %3824 = vmatpush2.bf16.xpose.msra.mxu0 0
  %3825 = vmatprep.subr.bf16.mxu0 0
  %3826 = vmatpush2.bf16.xpose.msra.mxu0 0
  %3827 = vmatprep.subr.bf16.mxu0 0
  %3828 = vmatpush2.bf16.xpose.msra.mxu0 0
  %3829 = vmatprep.subr.bf16.mxu0 0
  %3830 = vmatpush2.bf16.xpose.msra.mxu0 0
  %3831 = vmatprep.subr.bf16.mxu0 0
  %3832 = vmatpush2.bf16.xpose.msra.mxu0 0
  %3833 = vmatprep.mubr.bf16.mxu0 0
  %3834 = vmatmul.mubr.bf16.gmra.mxu0 %v3796
  %v3835 = vpop.f32.mrf.mxu0
  %v3836 = vadd.f32 %v42, %v3835
  %v3837 = vpop.f32.mrf.mxu0
  %v3838 = vpop.f32.mrf.mxu0
  %v3839 = vpop.f32.mrf.mxu0
  %3840 = vdwg.mxu0
  %3841 = vrot.lane.b32.xlu0 %v2472, 104
  %v3842 = vpop.permute.xlu0 %3841
  %3843 = vrot.lane.b32.xlu0 %v2472, 72
  %v3844 = vpop.permute.xlu0 %3843
  %v3846 = vsel %vm145, %v3842, 0
  %v3849 = vsel %vm145, %v3844, 0
  %3851 = vmatprep.subr.bf16.mxu0 0
  %3852 = vmatpush1.bf16.xpose.msra.mxu0 0
  %3853 = vmatprep.subr.bf16.mxu0 0
  %3854 = vmatpush1.bf16.xpose.msra.mxu0 0
  %3855 = vmatprep.subr.bf16.mxu0 0
  %3856 = vmatpush1.bf16.xpose.msra.mxu0 0
  %3857 = vmatprep.subr.bf16.mxu0 0
  %3858 = vmatpush1.bf16.xpose.msra.mxu0 0
  %3859 = vmatprep.subr.bf16.mxu0 0
  %3860 = vmatpush1.bf16.xpose.msra.mxu0 0
  %3861 = vmatprep.subr.bf16.mxu0 0
  %3862 = vmatpush1.bf16.xpose.msra.mxu0 0
  %3863 = vmatprep.subr.bf16.mxu0 0
  %3864 = vmatpush1.bf16.xpose.msra.mxu0 0
  %3865 = vmatprep.subr.bf16.mxu0 0
  %3866 = vmatpush1.bf16.xpose.msra.mxu0 %v3849
  %3867 = vmatprep.subr.bf16.mxu0 0
  %3868 = vmatpush2.bf16.xpose.msra.mxu0 0
  %3869 = vmatprep.subr.bf16.mxu0 0
  %3870 = vmatpush2.bf16.xpose.msra.mxu0 0
  %3871 = vmatprep.subr.bf16.mxu0 0
  %3872 = vmatpush2.bf16.xpose.msra.mxu0 0
  %3873 = vmatprep.subr.bf16.mxu0 0
  %3874 = vmatpush2.bf16.xpose.msra.mxu0 0
  %3875 = vmatprep.subr.bf16.mxu0 0
  %3876 = vmatpush2.bf16.xpose.msra.mxu0 0
  %3877 = vmatprep.subr.bf16.mxu0 0
  %3878 = vmatpush2.bf16.xpose.msra.mxu0 0
  %3879 = vmatprep.subr.bf16.mxu0 0
  %3880 = vmatpush2.bf16.xpose.msra.mxu0 0
  %3881 = vmatprep.subr.bf16.mxu0 0
  %3882 = vmatpush2.bf16.xpose.msra.mxu0 0
  %3883 = vmatprep.mubr.bf16.mxu0 0
  %3884 = vmatmul.mubr.bf16.gmra.mxu0 %v3846
  %v3885 = vpop.f32.mrf.mxu0
  %v3886 = vadd.f32 %v46, %v3885
  %v3887 = vpop.f32.mrf.mxu0
  %v3888 = vpop.f32.mrf.mxu0
  %v3889 = vpop.f32.mrf.mxu0
  %3890 = vdwg.mxu0
  %3891 = vrot.lane.b32.xlu0 %v2473, 104
  %v3892 = vpop.permute.xlu0 %3891
  %3893 = vrot.lane.b32.xlu0 %v2473, 72
  %v3894 = vpop.permute.xlu0 %3893
  %v3896 = vsel %vm145, %v3892, 0
  %v3899 = vsel %vm145, %v3894, 0
  %3901 = vmatprep.subr.bf16.mxu0 0
  %3902 = vmatpush1.bf16.xpose.msra.mxu0 0
  %3903 = vmatprep.subr.bf16.mxu0 0
  %3904 = vmatpush1.bf16.xpose.msra.mxu0 0
  %3905 = vmatprep.subr.bf16.mxu0 0
  %3906 = vmatpush1.bf16.xpose.msra.mxu0 0
  %3907 = vmatprep.subr.bf16.mxu0 0
  %3908 = vmatpush1.bf16.xpose.msra.mxu0 0
  %3909 = vmatprep.subr.bf16.mxu0 0
  %3910 = vmatpush1.bf16.xpose.msra.mxu0 0
  %3911 = vmatprep.subr.bf16.mxu0 0
  %3912 = vmatpush1.bf16.xpose.msra.mxu0 0
  %3913 = vmatprep.subr.bf16.mxu0 0
  %3914 = vmatpush1.bf16.xpose.msra.mxu0 0
  %3915 = vmatprep.subr.bf16.mxu0 0
  %3916 = vmatpush1.bf16.xpose.msra.mxu0 %v3899
  %3917 = vmatprep.subr.bf16.mxu0 0
  %3918 = vmatpush2.bf16.xpose.msra.mxu0 0
  %3919 = vmatprep.subr.bf16.mxu0 0
  %3920 = vmatpush2.bf16.xpose.msra.mxu0 0
  %3921 = vmatprep.subr.bf16.mxu0 0
  %3922 = vmatpush2.bf16.xpose.msra.mxu0 0
  %3923 = vmatprep.subr.bf16.mxu0 0
  %3924 = vmatpush2.bf16.xpose.msra.mxu0 0
  %3925 = vmatprep.subr.bf16.mxu0 0
  %3926 = vmatpush2.bf16.xpose.msra.mxu0 0
  %3927 = vmatprep.subr.bf16.mxu0 0
  %3928 = vmatpush2.bf16.xpose.msra.mxu0 0
  %3929 = vmatprep.subr.bf16.mxu0 0
  %3930 = vmatpush2.bf16.xpose.msra.mxu0 0
  %3931 = vmatprep.subr.bf16.mxu0 0
  %3932 = vmatpush2.bf16.xpose.msra.mxu0 0
  %3933 = vmatprep.mubr.bf16.mxu0 0
  %3934 = vmatmul.mubr.bf16.gmra.mxu0 %v3896
  %v3935 = vpop.f32.mrf.mxu0
  %v3936 = vadd.f32 %v50, %v3935
  %v3937 = vpop.f32.mrf.mxu0
  %v3938 = vpop.f32.mrf.mxu0
  %v3939 = vpop.f32.mrf.mxu0
  %3940 = vdwg.mxu0
  %3941 = vrot.lane.b32.xlu0 %v2474, 104
  %v3942 = vpop.permute.xlu0 %3941
  %3943 = vrot.lane.b32.xlu0 %v2474, 72
  %v3944 = vpop.permute.xlu0 %3943
  %v3946 = vsel %vm145, %v3942, 0
  %v3949 = vsel %vm145, %v3944, 0
  %3951 = vmatprep.subr.bf16.mxu0 0
  %3952 = vmatpush1.bf16.xpose.msra.mxu0 0
  %3953 = vmatprep.subr.bf16.mxu0 0
  %3954 = vmatpush1.bf16.xpose.msra.mxu0 0
  %3955 = vmatprep.subr.bf16.mxu0 0
  %3956 = vmatpush1.bf16.xpose.msra.mxu0 0
  %3957 = vmatprep.subr.bf16.mxu0 0
  %3958 = vmatpush1.bf16.xpose.msra.mxu0 0
  %3959 = vmatprep.subr.bf16.mxu0 0
  %3960 = vmatpush1.bf16.xpose.msra.mxu0 0
  %3961 = vmatprep.subr.bf16.mxu0 0
  %3962 = vmatpush1.bf16.xpose.msra.mxu0 0
  %3963 = vmatprep.subr.bf16.mxu0 0
  %3964 = vmatpush1.bf16.xpose.msra.mxu0 0
  %3965 = vmatprep.subr.bf16.mxu0 0
  %3966 = vmatpush1.bf16.xpose.msra.mxu0 %v3949
  %3967 = vmatprep.subr.bf16.mxu0 0
  %3968 = vmatpush2.bf16.xpose.msra.mxu0 0
  %3969 = vmatprep.subr.bf16.mxu0 0
  %3970 = vmatpush2.bf16.xpose.msra.mxu0 0
  %3971 = vmatprep.subr.bf16.mxu0 0
  %3972 = vmatpush2.bf16.xpose.msra.mxu0 0
  %3973 = vmatprep.subr.bf16.mxu0 0
  %3974 = vmatpush2.bf16.xpose.msra.mxu0 0
  %3975 = vmatprep.subr.bf16.mxu0 0
  %3976 = vmatpush2.bf16.xpose.msra.mxu0 0
  %3977 = vmatprep.subr.bf16.mxu0 0
  %3978 = vmatpush2.bf16.xpose.msra.mxu0 0
  %3979 = vmatprep.subr.bf16.mxu0 0
  %3980 = vmatpush2.bf16.xpose.msra.mxu0 0
  %3981 = vmatprep.subr.bf16.mxu0 0
  %3982 = vmatpush2.bf16.xpose.msra.mxu0 0
  %3983 = vmatprep.mubr.bf16.mxu0 0
  %3984 = vmatmul.mubr.bf16.gmra.mxu0 %v3946
  %v3985 = vpop.f32.mrf.mxu0
  %v3986 = vadd.f32 %v54, %v3985
  %v3987 = vpop.f32.mrf.mxu0
  %v3988 = vpop.f32.mrf.mxu0
  %v3989 = vpop.f32.mrf.mxu0
  %3990 = vdwg.mxu0
  %v3991 = vsel %vm145, %v3836, -inf
  %3992 = vmax.xlane.f32.xlu0 %v3991
  %v3993 = vpop.xlane.xlu0 %3992
  %v3994 = vsel %vm145, %v3886, -inf
  %3995 = vmax.xlane.f32.xlu0 %v3994
  %v3996 = vpop.xlane.xlu0 %3995
  %v3997 = vsel %vm145, %v3936, -inf
  %3998 = vmax.xlane.f32.xlu0 %v3997
  %v3999 = vpop.xlane.xlu0 %3998
  %v4000 = vsel %vm145, %v3986, -inf
  %4001 = vmax.xlane.f32.xlu0 %v4000
  %v4002 = vpop.xlane.xlu0 %4001
  %v4003 = vsub.f32 %v3836, %v3993
  %v4004 = vsub.f32 %v3886, %v3996
  %v4005 = vsub.f32 %v3936, %v3999
  %v4006 = vsub.f32 %v3986, %v4002
  %v4007 = vmul.f32 %v4003, 1.442695
  %v4008 = vpow.pop %v4007
  %v4009 = vmul.f32 %v4004, 1.442695
  %v4010 = vpow.pop %v4009
  %v4011 = vmul.f32 %v4005, 1.442695
  %v4012 = vpow.pop %v4011
  %v4013 = vmul.f32 %v4006, 1.442695
  %v4014 = vpow.pop %v4013
  %v4015 = vsel %vm145, %v4008, 0.0
  %4016 = vadd.xlane.f32.xlu0 %v4015
  %v4017 = vpop.xlane.xlu0 %4016
  %v4018 = vsel %vm145, %v4010, 0.0
  %4019 = vadd.xlane.f32.xlu0 %v4018
  %v4020 = vpop.xlane.xlu0 %4019
  %v4021 = vsel %vm145, %v4012, 0.0
  %4022 = vadd.xlane.f32.xlu0 %v4021
  %v4023 = vpop.xlane.xlu0 %4022
  %v4024 = vsel %vm145, %v4014, 0.0
  %4025 = vadd.xlane.f32.xlu0 %v4024
  %v4026 = vpop.xlane.xlu0 %4025
  %v4027 = vrcp.pop %v4017
  %v4028 = vrcp.pop %v4020
  %v4029 = vrcp.pop %v4023
  %v4030 = vrcp.pop %v4026
  %v4031 = vmul.f32 %v4008, %v4027
  %v4032 = vmul.f32 %v4010, %v4028
  %v4033 = vmul.f32 %v4012, %v4029
  %v4034 = vmul.f32 %v4014, %v4030
  %v4035 = vpack.c.bf16 %v4031, %v4031
  %v4036 = vpack.c.bf16 %v4032, %v4032
  %v4037 = vpack.c.bf16 %v4033, %v4033
  %v4038 = vpack.c.bf16 %v4034, %v4034
  %4039 = vrot.lane.b32.xlu0 %v2471, 40
  %v4040 = vpop.permute.xlu0 %4039
  %v4042 = vsel %vm145, %v4035, 0
  %v4045 = vsel %vm392, %v4040, 0
  %4047 = vmatprep.subr.bf16.mxu0 0
  %4048 = vmatpush1.bf16.msra.mxu0 0
  %4049 = vmatprep.subr.bf16.mxu0 0
  %4050 = vmatpush1.bf16.msra.mxu0 0
  %4051 = vmatprep.subr.bf16.mxu0 0
  %4052 = vmatpush1.bf16.msra.mxu0 0
  %4053 = vmatprep.subr.bf16.mxu0 0
  %4054 = vmatpush1.bf16.msra.mxu0 0
  %4055 = vmatprep.subr.bf16.mxu0 0
  %4056 = vmatpush1.bf16.msra.mxu0 0
  %4057 = vmatprep.subr.bf16.mxu0 0
  %4058 = vmatpush1.bf16.msra.mxu0 0
  %4059 = vmatprep.subr.bf16.mxu0 0
  %4060 = vmatpush1.bf16.msra.mxu0 0
  %4061 = vmatprep.subr.bf16.mxu0 0
  %4062 = vmatpush1.bf16.msra.mxu0 %v4045
  %4063 = vmatprep.subr.bf16.mxu0 0
  %4064 = vmatpush2.bf16.msra.mxu0 0
  %4065 = vmatprep.subr.bf16.mxu0 0
  %4066 = vmatpush2.bf16.msra.mxu0 0
  %4067 = vmatprep.subr.bf16.mxu0 0
  %4068 = vmatpush2.bf16.msra.mxu0 0
  %4069 = vmatprep.subr.bf16.mxu0 0
  %4070 = vmatpush2.bf16.msra.mxu0 0
  %4071 = vmatprep.subr.bf16.mxu0 0
  %4072 = vmatpush2.bf16.msra.mxu0 0
  %4073 = vmatprep.subr.bf16.mxu0 0
  %4074 = vmatpush2.bf16.msra.mxu0 0
  %4075 = vmatprep.subr.bf16.mxu0 0
  %4076 = vmatpush2.bf16.msra.mxu0 0
  %4077 = vmatprep.subr.bf16.mxu0 0
  %4078 = vmatpush2.bf16.msra.mxu0 0
  %4079 = vmatprep.mubr.bf16.mxu0 0
  %4080 = vmatmul.mubr.bf16.gmra.mxu0 %v4042
  %v4081 = vpop.f32.mrf.mxu0
  %v4082 = vadd.f32 0.0, %v4081
  %v4083 = vpop.f32.mrf.mxu0
  %v4084 = vpop.f32.mrf.mxu0
  %v4085 = vpop.f32.mrf.mxu0
  %4086 = vdwg.mxu0
  %4087 = vrot.lane.b32.xlu0 %v2472, 40
  %v4088 = vpop.permute.xlu0 %4087
  %v4090 = vsel %vm145, %v4036, 0
  %v4093 = vsel %vm392, %v4088, 0
  %4095 = vmatprep.subr.bf16.mxu0 0
  %4096 = vmatpush1.bf16.msra.mxu0 0
  %4097 = vmatprep.subr.bf16.mxu0 0
  %4098 = vmatpush1.bf16.msra.mxu0 0
  %4099 = vmatprep.subr.bf16.mxu0 0
  %4100 = vmatpush1.bf16.msra.mxu0 0
  %4101 = vmatprep.subr.bf16.mxu0 0
  %4102 = vmatpush1.bf16.msra.mxu0 0
  %4103 = vmatprep.subr.bf16.mxu0 0
  %4104 = vmatpush1.bf16.msra.mxu0 0
  %4105 = vmatprep.subr.bf16.mxu0 0
  %4106 = vmatpush1.bf16.msra.mxu0 0
  %4107 = vmatprep.subr.bf16.mxu0 0
  %4108 = vmatpush1.bf16.msra.mxu0 0
  %4109 = vmatprep.subr.bf16.mxu0 0
  %4110 = vmatpush1.bf16.msra.mxu0 %v4093
  %4111 = vmatprep.subr.bf16.mxu0 0
  %4112 = vmatpush2.bf16.msra.mxu0 0
  %4113 = vmatprep.subr.bf16.mxu0 0
  %4114 = vmatpush2.bf16.msra.mxu0 0
  %4115 = vmatprep.subr.bf16.mxu0 0
  %4116 = vmatpush2.bf16.msra.mxu0 0
  %4117 = vmatprep.subr.bf16.mxu0 0
  %4118 = vmatpush2.bf16.msra.mxu0 0
  %4119 = vmatprep.subr.bf16.mxu0 0
  %4120 = vmatpush2.bf16.msra.mxu0 0
  %4121 = vmatprep.subr.bf16.mxu0 0
  %4122 = vmatpush2.bf16.msra.mxu0 0
  %4123 = vmatprep.subr.bf16.mxu0 0
  %4124 = vmatpush2.bf16.msra.mxu0 0
  %4125 = vmatprep.subr.bf16.mxu0 0
  %4126 = vmatpush2.bf16.msra.mxu0 0
  %4127 = vmatprep.mubr.bf16.mxu0 0
  %4128 = vmatmul.mubr.bf16.gmra.mxu0 %v4090
  %v4129 = vpop.f32.mrf.mxu0
  %v4130 = vadd.f32 0.0, %v4129
  %v4131 = vpop.f32.mrf.mxu0
  %v4132 = vpop.f32.mrf.mxu0
  %v4133 = vpop.f32.mrf.mxu0
  %4134 = vdwg.mxu0
  %4135 = vrot.lane.b32.xlu0 %v2473, 40
  %v4136 = vpop.permute.xlu0 %4135
  %v4138 = vsel %vm145, %v4037, 0
  %v4141 = vsel %vm392, %v4136, 0
  %4143 = vmatprep.subr.bf16.mxu0 0
  %4144 = vmatpush1.bf16.msra.mxu0 0
  %4145 = vmatprep.subr.bf16.mxu0 0
  %4146 = vmatpush1.bf16.msra.mxu0 0
  %4147 = vmatprep.subr.bf16.mxu0 0
  %4148 = vmatpush1.bf16.msra.mxu0 0
  %4149 = vmatprep.subr.bf16.mxu0 0
  %4150 = vmatpush1.bf16.msra.mxu0 0
  %4151 = vmatprep.subr.bf16.mxu0 0
  %4152 = vmatpush1.bf16.msra.mxu0 0
  %4153 = vmatprep.subr.bf16.mxu0 0
  %4154 = vmatpush1.bf16.msra.mxu0 0
  %4155 = vmatprep.subr.bf16.mxu0 0
  %4156 = vmatpush1.bf16.msra.mxu0 0
  %4157 = vmatprep.subr.bf16.mxu0 0
  %4158 = vmatpush1.bf16.msra.mxu0 %v4141
  %4159 = vmatprep.subr.bf16.mxu0 0
  %4160 = vmatpush2.bf16.msra.mxu0 0
  %4161 = vmatprep.subr.bf16.mxu0 0
  %4162 = vmatpush2.bf16.msra.mxu0 0
  %4163 = vmatprep.subr.bf16.mxu0 0
  %4164 = vmatpush2.bf16.msra.mxu0 0
  %4165 = vmatprep.subr.bf16.mxu0 0
  %4166 = vmatpush2.bf16.msra.mxu0 0
  %4167 = vmatprep.subr.bf16.mxu0 0
  %4168 = vmatpush2.bf16.msra.mxu0 0
  %4169 = vmatprep.subr.bf16.mxu0 0
  %4170 = vmatpush2.bf16.msra.mxu0 0
  %4171 = vmatprep.subr.bf16.mxu0 0
  %4172 = vmatpush2.bf16.msra.mxu0 0
  %4173 = vmatprep.subr.bf16.mxu0 0
  %4174 = vmatpush2.bf16.msra.mxu0 0
  %4175 = vmatprep.mubr.bf16.mxu0 0
  %4176 = vmatmul.mubr.bf16.gmra.mxu0 %v4138
  %v4177 = vpop.f32.mrf.mxu0
  %v4178 = vadd.f32 0.0, %v4177
  %v4179 = vpop.f32.mrf.mxu0
  %v4180 = vpop.f32.mrf.mxu0
  %v4181 = vpop.f32.mrf.mxu0
  %4182 = vdwg.mxu0
  %4183 = vrot.lane.b32.xlu0 %v2474, 40
  %v4184 = vpop.permute.xlu0 %4183
  %v4186 = vsel %vm145, %v4038, 0
  %v4189 = vsel %vm392, %v4184, 0
  %4191 = vmatprep.subr.bf16.mxu0 0
  %4192 = vmatpush1.bf16.msra.mxu0 0
  %4193 = vmatprep.subr.bf16.mxu0 0
  %4194 = vmatpush1.bf16.msra.mxu0 0
  %4195 = vmatprep.subr.bf16.mxu0 0
  %4196 = vmatpush1.bf16.msra.mxu0 0
  %4197 = vmatprep.subr.bf16.mxu0 0
  %4198 = vmatpush1.bf16.msra.mxu0 0
  %4199 = vmatprep.subr.bf16.mxu0 0
  %4200 = vmatpush1.bf16.msra.mxu0 0
  %4201 = vmatprep.subr.bf16.mxu0 0
  %4202 = vmatpush1.bf16.msra.mxu0 0
  %4203 = vmatprep.subr.bf16.mxu0 0
  %4204 = vmatpush1.bf16.msra.mxu0 0
  %4205 = vmatprep.subr.bf16.mxu0 0
  %4206 = vmatpush1.bf16.msra.mxu0 %v4189
  %4207 = vmatprep.subr.bf16.mxu0 0
  %4208 = vmatpush2.bf16.msra.mxu0 0
  %4209 = vmatprep.subr.bf16.mxu0 0
  %4210 = vmatpush2.bf16.msra.mxu0 0
  %4211 = vmatprep.subr.bf16.mxu0 0
  %4212 = vmatpush2.bf16.msra.mxu0 0
  %4213 = vmatprep.subr.bf16.mxu0 0
  %4214 = vmatpush2.bf16.msra.mxu0 0
  %4215 = vmatprep.subr.bf16.mxu0 0
  %4216 = vmatpush2.bf16.msra.mxu0 0
  %4217 = vmatprep.subr.bf16.mxu0 0
  %4218 = vmatpush2.bf16.msra.mxu0 0
  %4219 = vmatprep.subr.bf16.mxu0 0
  %4220 = vmatpush2.bf16.msra.mxu0 0
  %4221 = vmatprep.subr.bf16.mxu0 0
  %4222 = vmatpush2.bf16.msra.mxu0 0
  %4223 = vmatprep.mubr.bf16.mxu0 0
  %4224 = vmatmul.mubr.bf16.gmra.mxu0 %v4186
  %v4225 = vpop.f32.mrf.mxu0
  %v4226 = vadd.f32 0.0, %v4225
  %v4227 = vpop.f32.mrf.mxu0
  %v4228 = vpop.f32.mrf.mxu0
  %v4229 = vpop.f32.mrf.mxu0
  %4230 = vdwg.mxu0
  %4235 = vrot.lane.b32.xlu0 %v3202, 8
  %v4236 = vpop.permute.xlu0 %4235
  %4237 = vrot.lane.b32.xlu0 %v3250, 8
  %v4238 = vpop.permute.xlu0 %4237
  %4239 = vrot.lane.b32.xlu0 %v3298, 8
  %v4240 = vpop.permute.xlu0 %4239
  %4241 = vrot.lane.b32.xlu0 %v3346, 8
  %v4242 = vpop.permute.xlu0 %4241
  %4251 = vrot.lane.b32.xlu0 %v3642, 16
  %v4252 = vpop.permute.xlu0 %4251
  %4253 = vrot.lane.b32.xlu0 %v3690, 16
  %v4254 = vpop.permute.xlu0 %4253
  %4255 = vrot.lane.b32.xlu0 %v3738, 16
  %v4256 = vpop.permute.xlu0 %4255
  %4257 = vrot.lane.b32.xlu0 %v3786, 16
  %v4258 = vpop.permute.xlu0 %4257
  %4267 = vrot.lane.b32.xlu0 %v4082, 24
  %v4268 = vpop.permute.xlu0 %4267
  %4269 = vrot.lane.b32.xlu0 %v4130, 24
  %v4270 = vpop.permute.xlu0 %4269
  %4271 = vrot.lane.b32.xlu0 %v4178, 24
  %v4272 = vpop.permute.xlu0 %4271
  %4273 = vrot.lane.b32.xlu0 %v4226, 24
  %v4274 = vpop.permute.xlu0 %4273
  %v4279 = vsel %vm145, %v2762, %v4236
  %v4280 = vsel %vm145, %v2810, %v4238
  %v4281 = vsel %vm145, %v2858, %v4240
  %v4282 = vsel %vm145, %v2906, %v4242
  %v4283 = vsel %vm1952, %v4279, %v4252
  %v4284 = vsel %vm1952, %v4280, %v4254
  %v4285 = vsel %vm1952, %v4281, %v4256
  %v4286 = vsel %vm1952, %v4282, %v4258
  %v4287 = vsel %vm1957, %v4283, %v4268
  %v4288 = vsel %vm1957, %v4284, %v4270
  %v4289 = vsel %vm1957, %v4285, %v4272
  %v4290 = vsel %vm1957, %v4286, %v4274
  %v4291 = vpack.c.bf16 %v4288, %v4287
  %v4292 = vpack.c.bf16 %v4290, %v4289
  %s4293 = scalar_lea.vmem %s3, 16
  %v4294 = vld [vmem:[%s4293] sm:$0xf]
  %v4295 = vld [vmem:[%s4293 + $0x4] sm:$0xf]
  %v4296 = vld [vmem:[%s4293 + $0x8] sm:$0xf]
  %v4297 = vld [vmem:[%s4293 + $0xc] sm:$0xf]
  %v4298 = vlaneseq
  %v4299 = vshrl.u32 %v4298, 7
  %v4300 = vsub.s32 2, %v4299
  %v4301 = vrot.slane %v2392, %v4300
  %v4306 = vunpack.c.l.b16 %v4294
  %v4307 = vunpack.c.l.b16 %v4295
  %v4308 = vunpack.c.l.b16 %v4296
  %v4309 = vunpack.c.l.b16 %v4297
  %v4310 = vpack.c.b16 %v4307, %v4306
  %v4311 = vpack.c.b16 %v4309, %v4308
  %v4315 = vsel %vm82, %v4291, 0
  %v4318 = vsel %vm82, %v4292, 0
  %4320 = vmatprep.subr.bf16.mxu0 0
  %4321 = vmatpush1.bf16.msra.mxu0 0
  %4322 = vmatprep.subr.bf16.mxu0 0
  %4323 = vmatpush1.bf16.msra.mxu0 0
  %4324 = vmatprep.subr.bf16.mxu0 0
  %4325 = vmatpush1.bf16.msra.mxu0 0
  %4326 = vmatprep.subr.bf16.mxu0 0
  %4327 = vmatpush1.bf16.msra.mxu0 0
  %4328 = vmatprep.subr.bf16.mxu0 0
  %4329 = vmatpush1.bf16.msra.mxu0 0
  %4330 = vmatprep.subr.bf16.mxu0 0
  %4331 = vmatpush1.bf16.msra.mxu0 0
  %4332 = vmatprep.subr.bf16.mxu0 0
  %4333 = vmatpush1.bf16.msra.mxu0 %v4311
  %4334 = vmatprep.subr.bf16.mxu0 0
  %4335 = vmatpush1.bf16.msra.mxu0 %v4310
  %4336 = vmatprep.subr.bf16.mxu0 0
  %4337 = vmatpush2.bf16.msra.mxu0 0
  %4338 = vmatprep.subr.bf16.mxu0 0
  %4339 = vmatpush2.bf16.msra.mxu0 0
  %4340 = vmatprep.subr.bf16.mxu0 0
  %4341 = vmatpush2.bf16.msra.mxu0 0
  %4342 = vmatprep.subr.bf16.mxu0 0
  %4343 = vmatpush2.bf16.msra.mxu0 0
  %4344 = vmatprep.subr.bf16.mxu0 0
  %4345 = vmatpush2.bf16.msra.mxu0 0
  %4346 = vmatprep.subr.bf16.mxu0 0
  %4347 = vmatpush2.bf16.msra.mxu0 0
  %4348 = vmatprep.subr.bf16.mxu0 0
  %4349 = vmatpush2.bf16.msra.mxu0 0
  %4350 = vmatprep.subr.bf16.mxu0 0
  %4351 = vmatpush2.bf16.msra.mxu0 0
  %4352 = vmatprep.mubr.bf16.mxu0 0
  %4353 = vmatmul.mubr.bf16.gmra.mxu0 %v4315
  %v4354 = vpop.f32.mrf.mxu0
  %v4355 = vadd.f32 %v4301, %v4354
  %v4356 = vpop.f32.mrf.mxu0
  %v4357 = vpop.f32.mrf.mxu0
  %v4358 = vadd.f32 %v4301, %v4357
  %v4359 = vpop.f32.mrf.mxu0
  %4360 = vmatprep.mubr.bf16.mxu0 0
  %4361 = vmatmul.mubr.bf16.gmra.mxu0 %v4318
  %v4362 = vpop.f32.mrf.mxu0
  %v4363 = vadd.f32 %v4301, %v4362
  %v4364 = vpop.f32.mrf.mxu0
  %v4365 = vpop.f32.mrf.mxu0
  %v4366 = vadd.f32 %v4301, %v4365
  %v4367 = vpop.f32.mrf.mxu0
  %4368 = vdwg.mxu0
  %v4369 = vadd.f32 %v2387, %v4355
  %v4370 = vadd.f32 %v2388, %v4358
  %v4371 = vadd.f32 %v2389, %v4363
  %v4372 = vadd.f32 %v2390, %v4366
  %v4373 = vsel %vm82, %v4369, 0.0
  %4374 = vadd.xlane.f32.xlu0 %v4373
  %v4375 = vpop.xlane.xlu0 %4374
  %v4376 = vsel %vm82, %v4370, 0.0
  %4377 = vadd.xlane.f32.xlu0 %v4376
  %v4378 = vpop.xlane.xlu0 %4377
  %v4379 = vsel %vm82, %v4371, 0.0
  %4380 = vadd.xlane.f32.xlu0 %v4379
  %v4381 = vpop.xlane.xlu0 %4380
  %v4382 = vsel %vm82, %v4372, 0.0
  %4383 = vadd.xlane.f32.xlu0 %v4382
  %v4384 = vpop.xlane.xlu0 %4383
  %v4385 = vmul.f32 %v4375, %v2055
  %v4386 = vmul.f32 %v4378, %v2055
  %v4387 = vmul.f32 %v4381, %v2055
  %v4388 = vmul.f32 %v4384, %v2055
  %v4389 = vsub.f32 %v4369, %v4385
  %v4390 = vsub.f32 %v4370, %v4386
  %v4391 = vsub.f32 %v4371, %v4387
  %v4392 = vsub.f32 %v4372, %v4388
  %v4393 = vmul.f32 %v4389, %v4389
  %v4394 = vmul.f32 %v4390, %v4390
  %v4395 = vmul.f32 %v4391, %v4391
  %v4396 = vmul.f32 %v4392, %v4392
  %v4397 = vsel %vm82, %v4393, 0.0
  %4398 = vadd.xlane.f32.xlu0 %v4397
  %v4399 = vpop.xlane.xlu0 %4398
  %v4400 = vsel %vm82, %v4394, 0.0
  %4401 = vadd.xlane.f32.xlu0 %v4400
  %v4402 = vpop.xlane.xlu0 %4401
  %v4403 = vsel %vm82, %v4395, 0.0
  %4404 = vadd.xlane.f32.xlu0 %v4403
  %v4405 = vpop.xlane.xlu0 %4404
  %v4406 = vsel %vm82, %v4396, 0.0
  %4407 = vadd.xlane.f32.xlu0 %v4406
  %v4408 = vpop.xlane.xlu0 %4407
  %v4409 = vmul.f32 %v4399, %v2055
  %v4410 = vmul.f32 %v4402, %v2055
  %v4411 = vmul.f32 %v4405, %v2055
  %v4412 = vmul.f32 %v4408, %v2055
  %v4413 = vadd.f32 %v4409, 1e-12
  %v4414 = vadd.f32 %v4410, 1e-12
  %v4415 = vadd.f32 %v4411, 1e-12
  %v4416 = vadd.f32 %v4412, 1e-12
  %v4417 = vrsqrt.pop %v4413
  %v4418 = vrsqrt.pop %v4414
  %v4419 = vrsqrt.pop %v4415
  %v4420 = vrsqrt.pop %v4416
  %v4421 = vmul.f32 %v4389, %v4417
  %v4422 = vmul.f32 %v4390, %v4418
  %v4423 = vmul.f32 %v4391, %v4419
  %v4424 = vmul.f32 %v4392, %v4420
  %v4425 = vlaneseq
  %v4426 = vshrl.u32 %v4425, 7
  %v4427 = vsub.s32 3, %v4426
  %v4428 = vrot.slane %v2392, %v4427
  %v4429 = vmul.f32 %v4421, %v4428
  %v4430 = vmul.f32 %v4422, %v4428
  %v4431 = vmul.f32 %v4423, %v4428
  %v4432 = vmul.f32 %v4424, %v4428
  %v4433 = vlaneseq
  %v4434 = vshrl.u32 %v4433, 7
  %v4435 = vsub.s32 4, %v4434
  %v4436 = vrot.slane %v2392, %v4435
  %v4437 = vadd.f32 %v4429, %v4436
  %v4438 = vadd.f32 %v4430, %v4436
  %v4439 = vadd.f32 %v4431, %v4436
  %v4440 = vadd.f32 %v4432, %v4436
  %v4441 = vpack.c.bf16 %v4438, %v4437
  %v4442 = vpack.c.bf16 %v4440, %v4439
  %s4443 = scalar_lea.vmem %s4, 16
  %v4444 = vld [vmem:[%s4443] sm:$0xf]
  %v4445 = vld [vmem:[%s4443 + $0x4] sm:$0xf]
  %v4446 = vld [vmem:[%s4443 + $0x8] sm:$0xf]
  %v4447 = vld [vmem:[%s4443 + $0xc] sm:$0xf]
  %v4448 = vlaneseq
  %v4449 = vshrl.u32 %v4448, 7
  %v4450 = vsub.s32 1, %v4449
  %v4451 = vrot.slane %v2392, %v4450
  %v4456 = vunpack.c.l.b16 %v4444
  %v4457 = vunpack.c.l.b16 %v4445
  %v4458 = vunpack.c.l.b16 %v4446
  %v4459 = vunpack.c.l.b16 %v4447
  %v4460 = vpack.c.b16 %v4457, %v4456
  %v4461 = vpack.c.b16 %v4459, %v4458
  %v4465 = vsel %vm82, %v4441, 0
  %v4468 = vsel %vm82, %v4442, 0
  %4470 = vmatprep.subr.bf16.mxu0 0
  %4471 = vmatpush1.bf16.msra.mxu0 0
  %4472 = vmatprep.subr.bf16.mxu0 0
  %4473 = vmatpush1.bf16.msra.mxu0 0
  %4474 = vmatprep.subr.bf16.mxu0 0
  %4475 = vmatpush1.bf16.msra.mxu0 0
  %4476 = vmatprep.subr.bf16.mxu0 0
  %4477 = vmatpush1.bf16.msra.mxu0 0
  %4478 = vmatprep.subr.bf16.mxu0 0
  %4479 = vmatpush1.bf16.msra.mxu0 0
  %4480 = vmatprep.subr.bf16.mxu0 0
  %4481 = vmatpush1.bf16.msra.mxu0 0
  %4482 = vmatprep.subr.bf16.mxu0 0
  %4483 = vmatpush1.bf16.msra.mxu0 %v4461
  %4484 = vmatprep.subr.bf16.mxu0 0
  %4485 = vmatpush1.bf16.msra.mxu0 %v4460
  %4486 = vmatprep.subr.bf16.mxu0 0
  %4487 = vmatpush2.bf16.msra.mxu0 0
  %4488 = vmatprep.subr.bf16.mxu0 0
  %4489 = vmatpush2.bf16.msra.mxu0 0
  %4490 = vmatprep.subr.bf16.mxu0 0
  %4491 = vmatpush2.bf16.msra.mxu0 0
  %4492 = vmatprep.subr.bf16.mxu0 0
  %4493 = vmatpush2.bf16.msra.mxu0 0
  %4494 = vmatprep.subr.bf16.mxu0 0
  %4495 = vmatpush2.bf16.msra.mxu0 0
  %4496 = vmatprep.subr.bf16.mxu0 0
  %4497 = vmatpush2.bf16.msra.mxu0 0
  %4498 = vmatprep.subr.bf16.mxu0 0
  %4499 = vmatpush2.bf16.msra.mxu0 0
  %4500 = vmatprep.subr.bf16.mxu0 0
  %4501 = vmatpush2.bf16.msra.mxu0 0
  %4502 = vmatprep.mubr.bf16.mxu0 0
  %4503 = vmatmul.mubr.bf16.gmra.mxu0 %v4465
  %v4504 = vpop.f32.mrf.mxu0
  %v4505 = vadd.f32 %v4451, %v4504
  %v4506 = vpop.f32.mrf.mxu0
  %v4507 = vpop.f32.mrf.mxu0
  %v4508 = vadd.f32 %v4451, %v4507
  %v4509 = vpop.f32.mrf.mxu0
  %4510 = vmatprep.mubr.bf16.mxu0 0
  %4511 = vmatmul.mubr.bf16.gmra.mxu0 %v4468
  %v4512 = vpop.f32.mrf.mxu0
  %v4513 = vadd.f32 %v4451, %v4512
  %v4514 = vpop.f32.mrf.mxu0
  %v4515 = vpop.f32.mrf.mxu0
  %v4516 = vadd.f32 %v4451, %v4515
  %v4517 = vpop.f32.mrf.mxu0
  %4518 = vdwg.mxu0
  %v4519 = vmul.f32 %v4505, %v4505
  %v4520 = vmul.f32 %v4508, %v4508
  %v4521 = vmul.f32 %v4513, %v4513
  %v4522 = vmul.f32 %v4516, %v4516
  %v4523 = vmul.f32 %v4505, %v4519
  %v4524 = vmul.f32 %v4508, %v4520
  %v4525 = vmul.f32 %v4513, %v4521
  %v4526 = vmul.f32 %v4516, %v4522
  %v4527 = vmul.f32 %v4523, 0.044715
  %v4528 = vmul.f32 %v4524, 0.044715
  %v4529 = vmul.f32 %v4525, 0.044715
  %v4530 = vmul.f32 %v4526, 0.044715
  %v4531 = vadd.f32 %v4505, %v4527
  %v4532 = vadd.f32 %v4508, %v4528
  %v4533 = vadd.f32 %v4513, %v4529
  %v4534 = vadd.f32 %v4516, %v4530
  %v4535 = vmul.f32 %v4531, 0.7978846
  %v4536 = vmul.f32 %v4532, 0.7978846
  %v4537 = vmul.f32 %v4533, 0.7978846
  %v4538 = vmul.f32 %v4534, 0.7978846
  %v4539 = vtanh.pop %v4535
  %v4540 = vtanh.pop %v4536
  %v4541 = vtanh.pop %v4537
  %v4542 = vtanh.pop %v4538
  %v4543 = vadd.f32 %v4539, 1.0
  %v4544 = vadd.f32 %v4540, 1.0
  %v4545 = vadd.f32 %v4541, 1.0
  %v4546 = vadd.f32 %v4542, 1.0
  %v4547 = vmul.f32 %v4543, 0.5
  %v4548 = vmul.f32 %v4544, 0.5
  %v4549 = vmul.f32 %v4545, 0.5
  %v4550 = vmul.f32 %v4546, 0.5
  %v4551 = vmul.f32 %v4505, %v4547
  %v4552 = vmul.f32 %v4508, %v4548
  %v4553 = vmul.f32 %v4513, %v4549
  %v4554 = vmul.f32 %v4516, %v4550
  %v4555 = vpack.c.bf16 %v4552, %v4551
  %v4556 = vpack.c.bf16 %v4554, %v4553
  %s4557 = scalar_lea.vmem %s5, 32
  %v4558 = vld [vmem:[%s4557] sm:$0xf]
  %v4559 = vld [vmem:[%s4557 + $0x4] sm:$0xf]
  %v4560 = vld [vmem:[%s4557 + $0x8] sm:$0xf]
  %v4561 = vld [vmem:[%s4557 + $0xc] sm:$0xf]
  %v4562 = vld [vmem:[%s4557 + $0x10] sm:$0xf]
  %v4563 = vld [vmem:[%s4557 + $0x14] sm:$0xf]
  %v4564 = vld [vmem:[%s4557 + $0x18] sm:$0xf]
  %v4565 = vld [vmem:[%s4557 + $0x1c] sm:$0xf]
  %v4566 = vlaneseq
  %v4567 = vshrl.u32 %v4566, 7
  %v4568 = vsub.s32 5, %v4567
  %v4569 = vrot.slane %v2392, %v4568
  %v4578 = vunpack.c.l.b16 %v4558
  %v4579 = vunpack.c.l.b16 %v4559
  %v4580 = vunpack.c.l.b16 %v4560
  %v4581 = vunpack.c.l.b16 %v4561
  %v4582 = vunpack.c.l.b16 %v4562
  %v4583 = vunpack.c.l.b16 %v4563
  %v4584 = vunpack.c.l.b16 %v4564
  %v4585 = vunpack.c.l.b16 %v4565
  %v4586 = vpack.c.b16 %v4579, %v4578
  %v4587 = vpack.c.b16 %v4581, %v4580
  %v4588 = vpack.c.b16 %v4583, %v4582
  %v4589 = vpack.c.b16 %v4585, %v4584
  %v4595 = vsel %vm2263, %v4555, 0
  %v4598 = vsel %vm2263, %v4556, 0
  %4600 = vmatprep.subr.bf16.mxu0 0
  %4601 = vmatpush1.bf16.msra.mxu0 0
  %4602 = vmatprep.subr.bf16.mxu0 0
  %4603 = vmatpush1.bf16.msra.mxu0 0
  %4604 = vmatprep.subr.bf16.mxu0 0
  %4605 = vmatpush1.bf16.msra.mxu0 0
  %4606 = vmatprep.subr.bf16.mxu0 0
  %4607 = vmatpush1.bf16.msra.mxu0 0
  %4608 = vmatprep.subr.bf16.mxu0 0
  %4609 = vmatpush1.bf16.msra.mxu0 %v4589
  %4610 = vmatprep.subr.bf16.mxu0 0
  %4611 = vmatpush1.bf16.msra.mxu0 %v4588
  %4612 = vmatprep.subr.bf16.mxu0 0
  %4613 = vmatpush1.bf16.msra.mxu0 %v4587
  %4614 = vmatprep.subr.bf16.mxu0 0
  %4615 = vmatpush1.bf16.msra.mxu0 %v4586
  %4616 = vmatprep.subr.bf16.mxu0 0
  %4617 = vmatpush2.bf16.msra.mxu0 0
  %4618 = vmatprep.subr.bf16.mxu0 0
  %4619 = vmatpush2.bf16.msra.mxu0 0
  %4620 = vmatprep.subr.bf16.mxu0 0
  %4621 = vmatpush2.bf16.msra.mxu0 0
  %4622 = vmatprep.subr.bf16.mxu0 0
  %4623 = vmatpush2.bf16.msra.mxu0 0
  %4624 = vmatprep.subr.bf16.mxu0 0
  %4625 = vmatpush2.bf16.msra.mxu0 0
  %4626 = vmatprep.subr.bf16.mxu0 0
  %4627 = vmatpush2.bf16.msra.mxu0 0
  %4628 = vmatprep.subr.bf16.mxu0 0
  %4629 = vmatpush2.bf16.msra.mxu0 0
  %4630 = vmatprep.subr.bf16.mxu0 0
  %4631 = vmatpush2.bf16.msra.mxu0 0
  %4632 = vmatprep.mubr.bf16.mxu0 0
  %4633 = vmatmul.mubr.bf16.gmra.mxu0 %v4595
  %v4634 = vpop.f32.mrf.mxu0
  %v4635 = vadd.f32 %v4569, %v4634
  %v4636 = vpop.f32.mrf.mxu0
  %v4637 = vpop.f32.mrf.mxu0
  %v4638 = vadd.f32 %v4569, %v4637
  %v4639 = vpop.f32.mrf.mxu0
  %4640 = vmatprep.mubr.bf16.mxu0 0
  %4641 = vmatmul.mubr.bf16.gmra.mxu0 %v4598
  %v4642 = vpop.f32.mrf.mxu0
  %v4643 = vadd.f32 %v4569, %v4642
  %v4644 = vpop.f32.mrf.mxu0
  %v4645 = vpop.f32.mrf.mxu0
  %v4646 = vadd.f32 %v4569, %v4645
  %v4647 = vpop.f32.mrf.mxu0
  %4648 = vdwg.mxu0
  %v4649 = vadd.f32 %v4437, %v4635
  %v4650 = vadd.f32 %v4438, %v4638
  %v4651 = vadd.f32 %v4439, %v4643
  %v4652 = vadd.f32 %v4440, %v4646
  %v4653 = vsel %vm82, %v4649, 0.0
  %4654 = vadd.xlane.f32.xlu0 %v4653
  %v4655 = vpop.xlane.xlu0 %4654
  %v4656 = vsel %vm82, %v4650, 0.0
  %4657 = vadd.xlane.f32.xlu0 %v4656
  %v4658 = vpop.xlane.xlu0 %4657
  %v4659 = vsel %vm82, %v4651, 0.0
  %4660 = vadd.xlane.f32.xlu0 %v4659
  %v4661 = vpop.xlane.xlu0 %4660
  %v4662 = vsel %vm82, %v4652, 0.0
  %4663 = vadd.xlane.f32.xlu0 %v4662
  %v4664 = vpop.xlane.xlu0 %4663
  %v4665 = vmul.f32 %v4655, %v2055
  %v4666 = vmul.f32 %v4658, %v2055
  %v4667 = vmul.f32 %v4661, %v2055
  %v4668 = vmul.f32 %v4664, %v2055
  %v4669 = vsub.f32 %v4649, %v4665
  %v4670 = vsub.f32 %v4650, %v4666
  %v4671 = vsub.f32 %v4651, %v4667
  %v4672 = vsub.f32 %v4652, %v4668
  %v4673 = vmul.f32 %v4669, %v4669
  %v4674 = vmul.f32 %v4670, %v4670
  %v4675 = vmul.f32 %v4671, %v4671
  %v4676 = vmul.f32 %v4672, %v4672
  %v4677 = vsel %vm82, %v4673, 0.0
  %4678 = vadd.xlane.f32.xlu0 %v4677
  %v4679 = vpop.xlane.xlu0 %4678
  %v4680 = vsel %vm82, %v4674, 0.0
  %4681 = vadd.xlane.f32.xlu0 %v4680
  %v4682 = vpop.xlane.xlu0 %4681
  %v4683 = vsel %vm82, %v4675, 0.0
  %4684 = vadd.xlane.f32.xlu0 %v4683
  %v4685 = vpop.xlane.xlu0 %4684
  %v4686 = vsel %vm82, %v4676, 0.0
  %4687 = vadd.xlane.f32.xlu0 %v4686
  %v4688 = vpop.xlane.xlu0 %4687
  %v4689 = vmul.f32 %v4679, %v2055
  %v4690 = vmul.f32 %v4682, %v2055
  %v4691 = vmul.f32 %v4685, %v2055
  %v4692 = vmul.f32 %v4688, %v2055
  %v4693 = vadd.f32 %v4689, 1e-12
  %v4694 = vadd.f32 %v4690, 1e-12
  %v4695 = vadd.f32 %v4691, 1e-12
  %v4696 = vadd.f32 %v4692, 1e-12
  %v4697 = vrsqrt.pop %v4693
  %v4698 = vrsqrt.pop %v4694
  %v4699 = vrsqrt.pop %v4695
  %v4700 = vrsqrt.pop %v4696
  %v4701 = vmul.f32 %v4669, %v4697
  %v4702 = vmul.f32 %v4670, %v4698
  %v4703 = vmul.f32 %v4671, %v4699
  %v4704 = vmul.f32 %v4672, %v4700
  %v4705 = vlaneseq
  %v4706 = vshrl.u32 %v4705, 7
  %v4707 = vsub.s32 6, %v4706
  %v4708 = vrot.slane %v2392, %v4707
  %v4709 = vmul.f32 %v4701, %v4708
  %v4710 = vmul.f32 %v4702, %v4708
  %v4711 = vmul.f32 %v4703, %v4708
  %v4712 = vmul.f32 %v4704, %v4708
  %v4713 = vlaneseq
  %v4714 = vshrl.u32 %v4713, 7
  %v4715 = vsub.s32 7, %v4714
  %v4716 = vrot.slane %v2392, %v4715
  %v4717 = vadd.f32 %v4709, %v4716
  %v4718 = vadd.f32 %v4710, %v4716
  %v4719 = vadd.f32 %v4711, %v4716
  %v4720 = vadd.f32 %v4712, %v4716
  %v4721 = vsel %vm82, %v4717, 0.0
  %v4722 = vrot.slane %v4721, 4
  %v4723 = vadd.f32 %v4721, %v4722
  %v4724 = vrot.slane %v4723, 2
  %v4725 = vadd.f32 %v4723, %v4724
  %v4726 = vrot.slane %v4725, 1
  %v4727 = vadd.f32 %v4725, %v4726
  %v4728 = vsel %vm82, %v4718, 0.0
  %v4729 = vrot.slane %v4728, 4
  %v4730 = vadd.f32 %v4728, %v4729
  %v4731 = vrot.slane %v4730, 2
  %v4732 = vadd.f32 %v4730, %v4731
  %v4733 = vrot.slane %v4732, 1
  %v4734 = vadd.f32 %v4732, %v4733
  %v4735 = vsel %vm82, %v4719, 0.0
  %v4736 = vrot.slane %v4735, 4
  %v4737 = vadd.f32 %v4735, %v4736
  %v4738 = vrot.slane %v4737, 2
  %v4739 = vadd.f32 %v4737, %v4738
  %v4740 = vrot.slane %v4739, 1
  %v4741 = vadd.f32 %v4739, %v4740
  %v4742 = vsel %vm82, %v4720, 0.0
  %v4743 = vrot.slane %v4742, 4
  %v4744 = vadd.f32 %v4742, %v4743
  %v4745 = vrot.slane %v4744, 2
  %v4746 = vadd.f32 %v4744, %v4745
  %v4747 = vrot.slane %v4746, 1
  %v4748 = vadd.f32 %v4746, %v4747
  %v4749 = vrcp.pop 8.0
  %v4750 = vmul.f32 %v4727, %v4749
  %v4751 = vmul.f32 %v4734, %v4749
  %v4752 = vmul.f32 %v4741, %v4749
  %v4753 = vmul.f32 %v4748, %v4749
  %vm4758 = vcmask 1041409
  %v4759 = vsel %vm4758, %v4751, %v4750
  %vm4760 = vcmask 1042434
  %v4761 = vsel %vm4760, %v4752, %v4759
  %vm4762 = vcmask 1043459
  %v4763 = vsel %vm4762, %v4753, %v4761
  %vm4765 = vcmask 257024
  %4766 = vst.msk [vmem:[%s7] sm:$0xf] %vm4765, %v4763
  // Predicated region
  $region30: #{bi_encoder_forward.1} parent=0 // pred_check
    _
  $region31: #{bi_encoder_forward.1} parent=0 // pred_check_branch
    %4768 = sbr.rel (0) target = $region33
  $region32: #{bi_encoder_forward.1} parent=0 // pred_region
    _
  $region33: #{bi_encoder_forward.1} parent=0 // pred_fallthru
    _
  // Predicated region
  $region34: #{bi_encoder_forward.1} parent=0 // pred_check
    _
  $region35: #{bi_encoder_forward.1} parent=0 // pred_check_branch
    %4770 = sbr.rel (0) target = $region37
  $region36: #{bi_encoder_forward.1} parent=0 // pred_region
    _
  $region37: #{bi_encoder_forward.1} parent=0 // pred_fallthru
    _

</llo_original>
